<compile_context>
chip_gen: v5e
topology: v5e:2x2
jax: 0.10.0
libtpu: 0.0.40
codegen_flags: <defaults>
</compile_context>

<pallas_src>
import functools
import math

import jax
import jax.numpy as jnp
from jax.experimental import pallas as pl
from jax.experimental.pallas import tpu as pltpu

FW = 3           # char conv filter width
LANE = 128       # TPU lane width
ROW_BLOCK = 512  # row tile for the token-encoder kernel (multiple of 128)


def _rup(n, m):
    return -(-n // m) * m


def _pad1(v, n):
    return jnp.pad(v, (0, n - v.shape[0]))


def _pad2(w, r, c):
    return jnp.pad(w, ((0, r - w.shape[0]), (0, c - w.shape[1])))


@functools.lru_cache(maxsize=None)
def _vmem_limit_bytes():
    # Generation-aware scoped-VMEM budget: v5e/v6e have 128 MiB physical VMEM,
    # v7x has 64 MiB per TensorCore; default stays conservative for unknown chips.
    try:
        kind = jax.devices()[0].device_kind.lower()
    except Exception:
        kind = ""
    if "v5" in kind or "v6" in kind:
        return 96 * 1024 * 1024
    if "v7" in kind or "7x" in kind:
        return 48 * 1024 * 1024
    return 32 * 1024 * 1024


def _cparams(n_parallel):
    return pltpu.CompilerParams(dimension_semantics=("parallel",) * n_parallel,
                                vmem_limit_bytes=_vmem_limit_bytes())


# --------------------------------------------------------------------------
# Kernel 1: token encoder = char-CNN (im2col) + word-embed concat + highway + pre_enc
# --------------------------------------------------------------------------


def _token_enc_kernel(win_ref, wemb_ref, cw_ref, cb_ref, wt_ref, bt_ref, wh_ref, bh_ref,
                      pw_ref, pb_ref, o_ref, *, nw, n_layers):
    # char conv as one matmul per window (im2col) + relu + max-pool over positions
    # TODO(synk): self.conv undefined in the module __init__; width-3 conv approximation.
    best = None
    for i in range(nw):
        y = jnp.dot(win_ref[i, 0], cw_ref[...],
                    preferred_element_type=jnp.float32) + cb_ref[...]
        y = jnp.maximum(y, 0.0)
        best = y if best is None else jnp.maximum(best, y)

    # concat with the word embedding and run the highway stack in f32
    x = jnp.concatenate([best, wemb_ref[0].astype(jnp.float32)], axis=-1)   # (blk, dw)
    for l in range(n_layers):
        xb = x.astype(jnp.bfloat16)
        t = jax.nn.sigmoid(jnp.dot(xb, wt_ref[l],
                                   preferred_element_type=jnp.float32) + bt_ref[l])
        g = jnp.maximum(jnp.dot(xb, wh_ref[l],
                                preferred_element_type=jnp.float32) + bh_ref[l], 0.0)
        x = t * g + (1.0 - t) * x

    # shared pre_encoder
    # TODO(synk): self.pre_encoder undefined (BiLSTM in original); tanh projection here.
    y = jnp.dot(x.astype(jnp.bfloat16), pw_ref[...],
                preferred_element_type=jnp.float32) + pb_ref[...]
    o_ref[0] = jnp.tanh(y).astype(o_ref.dtype)


def token_enc_pallas(wins, wemb, cw, cb, wt, bt, wh, bh, pw, pb, *, dw):
    nw, B, R, fwdcp = wins.shape
    d_embed = wemb.shape[-1]
    d_char_out = cw.shape[1]
    nlayers = wt.shape[0]
    D2p = pw.shape[1]
    blk = math.gcd(R, ROW_BLOCK)          # R is a multiple of 128, so blk >= 128
    return pl.pallas_call(
        functools.partial(_token_enc_kernel, nw=nw, n_layers=nlayers),
        grid=(B, R // blk),
        in_specs=[
            pl.BlockSpec((nw, 1, blk, fwdcp), lambda b, t: (0, b, t, 0)),
            pl.BlockSpec((1, blk, d_embed), lambda b, t: (b, t, 0)),
            pl.BlockSpec((fwdcp, d_char_out), lambda b, t: (0, 0)),
            pl.BlockSpec((1, d_char_out), lambda b, t: (0, 0)),
            pl.BlockSpec((nlayers, dw, dw), lambda b, t: (0, 0, 0)),
            pl.BlockSpec((nlayers, 1, dw), lambda b, t: (0, 0, 0)),
            pl.BlockSpec((nlayers, dw, dw), lambda b, t: (0, 0, 0)),
            pl.BlockSpec((nlayers, 1, dw), lambda b, t: (0, 0, 0)),
            pl.BlockSpec((dw, D2p), lambda b, t: (0, 0)),
            pl.BlockSpec((1, D2p), lambda b, t: (0, 0)),
        ],
        out_specs=pl.BlockSpec((1, blk, D2p), lambda b, t: (b, t, 0)),
        out_shape=jax.ShapeDtypeStruct((B, R, D2p), jnp.bfloat16),
        compiler_params=_cparams(2),
    )(wins, wemb, cw, cb, wt, bt, wh, bh, pw, pb)


# --------------------------------------------------------------------------
# Kernel 2: fused attention + start/end answer chain (per batch element)
# --------------------------------------------------------------------------


def _attend_answer_kernel(h_ref, u_ref, qm_ref, tm_ref, attw_ref, encw_ref, encb_ref,
                          logw_ref, sp_ref, ep_ref):
    h = h_ref[0]                                   # (Tp, D2p) bf16
    u = u_ref[0]                                   # (JQp, D2p) bf16
    qm = qm_ref[0]                                 # (1, JQp) f32
    tm = tm_ref[0]                                 # (1, Tp) f32
    aw = attw_ref[...]                             # (2, D2p) bf16: [wu, whu]
    eb = encb_ref[...]                             # (3, D2p) f32: [s0_b, s1_b, e_b]
    lw = logw_ref[...]                             # (4, D2p) bf16: [ls_we, ls_wa, le_we, le_wa]
    cdims = (((1,), (1,)), ((), ()))

    # ---- context-to-query attention ----
    # Row-constant similarity terms (wh·h_t, bias) dropped: row softmax is invariant.
    # TODO(synk): self.attend undefined in the module; trilinear BiDAF C2Q attention.
    s_u = jax.lax.dot_general(aw[0:1], u, cdims, preferred_element_type=jnp.float32)
    s = jax.lax.dot_general(h * aw[1:2], u, cdims,
                            preferred_element_type=jnp.float32) + s_u       # (Tp, JQp)
    s = jnp.where(qm > 0.0, s, -1e30)              # mask padded query columns only
    e = jnp.exp(s - jnp.max(s, axis=-1, keepdims=True))
    a = e * pl.reciprocal(jnp.sum(e, axis=-1, keepdims=True), approx=True)
    attn = jnp.dot(a.astype(jnp.bfloat16), u, preferred_element_type=jnp.float32)
    attn_b = attn.astype(jnp.bfloat16)             # (Tp, D2p)

    # ---- start encoders s0 -> s1 ----
    # TODO(synk): start_encoder0/1 undefined (BiLSTMs); tanh projections here.
    h0 = jnp.tanh(jnp.dot(attn_b, encw_ref[0],
                          preferred_element_type=jnp.float32) + eb[0:1])
    enc_start = jnp.tanh(jnp.dot(h0.astype(jnp.bfloat16), encw_ref[1],
                                 preferred_element_type=jnp.float32) + eb[1:2])
    es_b = enc_start.astype(jnp.bfloat16)

    # ---- lin_start logits (scalar bias dropped: softmax-invariant) + softmax + softsel
    lg = (jax.lax.dot_general(lw[0:1], es_b, cdims, preferred_element_type=jnp.float32)
          + jax.lax.dot_general(lw[1:2], attn_b, cdims,
                                preferred_element_type=jnp.float32))        # (1, Tp)
    lg = jnp.where(tm > 0.0, lg, -1e30)
    ex_s = jnp.exp(lg - jnp.max(lg, axis=-1, keepdims=True))
    p_start = ex_s / jnp.sum(ex_s, axis=-1, keepdims=True)    # exact normalization
    sp_ref[0] = p_start
    a1 = jnp.dot(p_start.astype(jnp.bfloat16), es_b,
                 preferred_element_type=jnp.float32)          # (1, D2p) softsel
    a1_b = a1.astype(jnp.bfloat16)

    # ---- end encoder over the implicit span concat [attn|enc_start|a1|enc_start*a1] --
    # TODO(synk): end_encoder undefined (BiLSTM); tanh projection over span here.
    z = (jnp.dot(attn_b, encw_ref[2], preferred_element_type=jnp.float32)
         + jnp.dot(es_b, encw_ref[3], preferred_element_type=jnp.float32)
         + jnp.dot(a1_b, encw_ref[4], preferred_element_type=jnp.float32)
         + jnp.dot(es_b * a1_b, encw_ref[5], preferred_element_type=jnp.float32)
         + eb[2:3])
    enc_end = jnp.tanh(z).astype(jnp.bfloat16)

    # ---- lin_end logits + masked softmax (dead end-pass softsel not computed) ----
    lge = (jax.lax.dot_general(lw[2:3], enc_end, cdims, preferred_element_type=jnp.float32)
           + jax.lax.dot_general(lw[3:4], attn_b, cdims,
                                 preferred_element_type=jnp.float32))
    lge = jnp.where(tm > 0.0, lge, -1e30)
    ex_e = jnp.exp(lge - jnp.max(lge, axis=-1, keepdims=True))
    ep_ref[0] = ex_e / jnp.sum(ex_e, axis=-1, keepdims=True)


def attend_answer_pallas(h, u, qm, tm, att_w, enc_w, enc_b, log_w):
    B, Tp, D2p = h.shape
    JQp = u.shape[1]
    return pl.pallas_call(
        _attend_answer_kernel,
        grid=(B,),
        in_specs=[
            pl.BlockSpec((1, Tp, D2p), lambda b: (b, 0, 0)),
            pl.BlockSpec((1, JQp, D2p), lambda b: (b, 0, 0)),
            pl.BlockSpec((1, 1, JQp), lambda b: (b, 0, 0)),
            pl.BlockSpec((1, 1, Tp), lambda b: (b, 0, 0)),
            pl.BlockSpec((2, D2p), lambda b: (0, 0)),
            pl.BlockSpec((6, D2p, D2p), lambda b: (0, 0, 0)),
            pl.BlockSpec((3, D2p), lambda b: (0, 0)),
            pl.BlockSpec((4, D2p), lambda b: (0, 0)),
        ],
        out_specs=(pl.BlockSpec((1, 1, Tp), lambda b: (b, 0, 0)),
                   pl.BlockSpec((1, 1, Tp), lambda b: (b, 0, 0))),
        out_shape=(jax.ShapeDtypeStruct((B, 1, Tp), jnp.float32),
                   jax.ShapeDtypeStruct((B, 1, Tp), jnp.float32)),
        compiler_params=_cparams(1),
    )(h, u, qm, tm, att_w, enc_w, enc_b, log_w)


# --------------------------------------------------------------------------
# BIDAF forward (glue around the two Pallas kernels)
# --------------------------------------------------------------------------


def bidaf_forward(p, ctext, text, text_mask, cquery, query, query_mask):
    B, M, JX, W = ctext.shape
    JQ = cquery.shape[1]
    T = M * JX
    nw = W - FW + 1

    dc = p["char_emb"].shape[1]
    d_char_out = p["conv_w"].shape[1]
    d_embed = p["word_emb"].shape[1]
    dw = d_char_out + d_embed
    D2 = p["pre_w"].shape[1]                       # 2 * d_hidden

    fwdc = FW * dc
    fwdcp = _rup(fwdc, LANE)
    D2p = _rup(D2, LANE)
    Tp, JQp = _rup(T, LANE), _rup(JQ, LANE)

    f32, bf16 = jnp.float32, jnp.bfloat16

    # ---- parameter views (constant-folded under jit) ----
    char_emb = p["char_emb"].astype(bf16)                          # raw dc width
    word_emb = p["word_emb"].astype(bf16)
    conv_w = _pad2(p["conv_w"], fwdcp, d_char_out).astype(bf16)    # native im2col form
    conv_b = p["conv_b"].reshape(1, d_char_out).astype(f32)

    hw_wt = jnp.stack([wt for (wt, bt, wh, bh) in p["highway"]]).astype(bf16)
    hw_bt = jnp.stack([bt.reshape(1, dw) for (wt, bt, wh, bh) in p["highway"]]).astype(f32)
    hw_wh = jnp.stack([wh for (wt, bt, wh, bh) in p["highway"]]).astype(bf16)
    hw_bh = jnp.stack([bh.reshape(1, dw) for (wt, bt, wh, bh) in p["highway"]]).astype(f32)
    pre_w = _pad2(p["pre_w"], dw, D2p).astype(bf16)
    pre_b = _pad1(p["pre_b"], D2p).reshape(1, D2p).astype(f32)

    # attention: att_wh / att_b are row-constant under the row softmax -> not used
    att_w = jnp.stack([_pad1(p["att_wu"], D2p),
                       _pad1(p["att_whu"], D2p)]).astype(bf16)     # (2, D2p)

    enc_w = jnp.concatenate([
        _pad2(p["s0_w"], D2p, D2p)[None],
        _pad2(p["s1_w"], D2p, D2p)[None],
        jnp.pad(p["e_w"].reshape(4, D2, D2),
                ((0, 0), (0, D2p - D2), (0, D2p - D2))),
    ], axis=0).astype(bf16)                                        # (6, D2p, D2p)
    enc_b = jnp.stack([_pad1(p["s0_b"], D2p), _pad1(p["s1_b"], D2p),
                       _pad1(p["e_b"], D2p)]).astype(f32)          # (3, D2p)

    # logits: scalar biases ls_b / le_b cancel in the softmax -> not used
    log_w = jnp.stack([_pad1(p["ls_we"], D2p), _pad1(p["ls_wa"], D2p),
                       _pad1(p["le_we"], D2p), _pad1(p["le_wa"], D2p)]).astype(bf16)

    # ---- token-level inputs built directly in the padded (B, Rp, ...) layouts ----
    def token_inputs(cids, wids, rows_pad):
        Bq, L, _ = cids.shape
        cids = jnp.pad(cids, ((0, 0), (0, rows_pad - L), (0, 0)))
        wids = jnp.pad(wids, ((0, 0), (0, rows_pad - L)))
        cemb = jnp.take(char_emb, cids, axis=0)                    # (B, Rp, W, dc) raw dc
        wins = jnp.stack([cemb[:, :, i:i + FW, :].reshape(Bq, rows_pad, fwdc)
                          for i in range(nw)], axis=0)             # (nw, B, Rp, FW*dc)
        wins = jnp.pad(wins, ((0, 0), (0, 0), (0, 0), (0, fwdcp - fwdc)))
        wemb = jnp.take(word_emb, wids, axis=0)                    # (B, Rp, d_embed)
        return wins, wemb

    t_wins, t_wemb = token_inputs(ctext.reshape(B, T, W), text.reshape(B, T), Tp)
    q_wins, q_wemb = token_inputs(cquery, query, JQp)

    # fused char-CNN + word-embed + highway + pre_encoder, row-gridded, padded layouts
    h = token_enc_pallas(t_wins, t_wemb, conv_w, conv_b, hw_wt, hw_bt, hw_wh, hw_bh,
                         pre_w, pre_b, dw=dw)                      # (B, Tp, D2p) bf16
    u = token_enc_pallas(q_wins, q_wemb, conv_w, conv_b, hw_wt, hw_bt, hw_wh, hw_bh,
                         pre_w, pre_b, dw=dw)                      # (B, JQp, D2p) bf16

    tm = jnp.pad(text_mask.reshape(B, T).astype(f32), ((0, 0), (0, Tp - T)))[:, None, :]
    qm = jnp.pad(query_mask.astype(f32), ((0, 0), (0, JQp - JQ)))[:, None, :]

    # fused attention + start/end answer chain (attn/enc_start/enc_end stay in VMEM)
    start_prob, end_prob = attend_answer_pallas(h, u, qm, tm, att_w, enc_w, enc_b, log_w)

    start = start_prob[:, 0, :T].reshape(B, M, JX)
    end = end_prob[:, 0, :T].reshape(B, M, JX)
    return start, end


# --------------------------------------------------------------------------
# Main
# --------------------------------------------------------------------------

if __name__ == "__main__":
    B, M, JX, JQ, W = 2, 2, 8, 6, 5
    d_char_embed, d_embed, d_char_out = 8, 16, 16
    d_hidden = 16
    n_hway_layers = 2
    word_vocab_size, char_vocab_size = 50, 30
    D2 = 2 * d_hidden
    dw = d_char_out + d_embed

    pkey, ikey = jax.random.split(jax.random.PRNGKey(0))
    pkeys = iter(jax.random.split(pkey, 40))

    def nrm(shape, scale):
        return (scale * jax.random.normal(next(pkeys), shape)).astype(jnp.float32)

    def glorot(shape):
        return (jax.random.normal(next(pkeys), shape) / (float(shape[0]) ** 0.5)
                ).astype(jnp.float32)

    params = {
        "char_emb": nrm((char_vocab_size, d_char_embed), 0.1),
        "word_emb": nrm((word_vocab_size, d_embed), 0.1),
        "conv_w": glorot((FW * d_char_embed, d_char_out)),
        "conv_b": jnp.zeros((d_char_out,), jnp.float32),
        "highway": [(glorot((dw, dw)), jnp.full((dw,), -1.0, jnp.float32),
                     glorot((dw, dw)), jnp.zeros((dw,), jnp.float32))
                    for _ in range(n_hway_layers)],
        "pre_w": glorot((dw, D2)), "pre_b": jnp.zeros((D2,), jnp.float32),
        "att_wh": nrm((D2,), float(D2) ** -0.5),   # unused: cancels in row softmax
        "att_wu": nrm((D2,), float(D2) ** -0.5),
        "att_whu": nrm((D2,), float(D2) ** -0.5),
        "att_b": jnp.zeros((), jnp.float32),       # unused: cancels in row softmax
        "s0_w": glorot((D2, D2)), "s0_b": jnp.zeros((D2,), jnp.float32),
        "s1_w": glorot((D2, D2)), "s1_b": jnp.zeros((D2,), jnp.float32),
        "e_w": glorot((4 * D2, D2)), "e_b": jnp.zeros((D2,), jnp.float32),
        "ls_we": nrm((D2,), float(D2) ** -0.5),
        "ls_wa": nrm((D2,), float(D2) ** -0.5),
        "ls_b": jnp.zeros((), jnp.float32),        # unused: cancels in softmax
        "le_we": nrm((D2,), float(D2) ** -0.5),
        "le_wa": nrm((D2,), float(D2) ** -0.5),
        "le_b": jnp.zeros((), jnp.float32),        # unused: cancels in softmax
    }

    ikeys = jax.random.split(ikey, 6)
    ctext = jax.random.randint(ikeys[0], (B, M, JX, W), 0, char_vocab_size)
    text = jax.random.randint(ikeys[1], (B, M, JX), 0, word_vocab_size)
    cquery = jax.random.randint(ikeys[2], (B, JQ, W), 0, char_vocab_size)
    query = jax.random.randint(ikeys[3], (B, JQ), 0, word_vocab_size)
    tlen = jax.random.randint(ikeys[4], (B, M), 1, JX + 1)
    text_mask = (jnp.arange(JX)[None, None, :] < tlen[:, :, None]).astype(jnp.float32)
    qlen = jax.random.randint(ikeys[5], (B,), 1, JQ + 1)
    query_mask = (jnp.arange(JQ)[None, :] < qlen[:, None]).astype(jnp.float32)

    fwd = jax.jit(bidaf_forward)
    start, end = fwd(params, ctext, text, text_mask, cquery, query, query_mask)
    start = jax.block_until_ready(start)
    end = jax.block_until_ready(end)

    assert start.shape == (B, M, JX) and end.shape == (B, M, JX)
    assert bool(jnp.all(jnp.isfinite(start))) and bool(jnp.all(jnp.isfinite(end)))
    # softmax3d over flattened (M*JX) positions sums to ~1 per batch element
    # (final normalization is exact f32; only the internal attention uses approx recip).
    assert bool(jnp.allclose(jnp.sum(start.reshape(B, -1), axis=-1), 1.0, atol=1e-3))
    assert bool(jnp.allclose(jnp.sum(end.reshape(B, -1), axis=-1), 1.0, atol=1e-3))
    print("KERNEL_OK")
</pallas_src>

<mosaic_0001>
module attributes {stable_mosaic.version = 11 : i64} {
  func.func @_token_enc_kernel(%arg0: i32, %arg1: i32, %arg2: memref<3x1x128x128xbf16, #tpu.memory_space<vmem>>, %arg3: memref<1x128x16xbf16, #tpu.memory_space<vmem>>, %arg4: memref<128x16xbf16, #tpu.memory_space<vmem>>, %arg5: memref<1x16xf32, #tpu.memory_space<vmem>>, %arg6: memref<2x32x32xbf16, #tpu.memory_space<vmem>>, %arg7: memref<2x1x32xf32, #tpu.memory_space<vmem>>, %arg8: memref<2x32x32xbf16, #tpu.memory_space<vmem>>, %arg9: memref<2x1x32xf32, #tpu.memory_space<vmem>>, %arg10: memref<32x128xbf16, #tpu.memory_space<vmem>>, %arg11: memref<1x128xf32, #tpu.memory_space<vmem>>, %arg12: memref<1x128x128xbf16, #tpu.memory_space<vmem>>) attributes {dimension_semantics = [#tpu.dimension_semantics<parallel>, #tpu.dimension_semantics<parallel>], iteration_bounds = array<i64: 2, 1>, scalar_prefetch = 0 : i64, scratch_operands = 0 : i64, tpu.core_type = #tpu.core_type<tc>, window_params = [{transform_indices = @transform_0, window_bounds = array<i64: 3, 1, 128, 128>}, {transform_indices = @transform_1, window_bounds = array<i64: 1, 128, 16>}, {pipeline_mode = #tpu.pipeline_mode<synchronous>, transform_indices = @transform_2, window_bounds = array<i64: 128, 16>}, {pipeline_mode = #tpu.pipeline_mode<synchronous>, transform_indices = @transform_3, window_bounds = array<i64: 1, 16>}, {pipeline_mode = #tpu.pipeline_mode<synchronous>, transform_indices = @transform_4, window_bounds = array<i64: 2, 32, 32>}, {pipeline_mode = #tpu.pipeline_mode<synchronous>, transform_indices = @transform_5, window_bounds = array<i64: 2, 1, 32>}, {pipeline_mode = #tpu.pipeline_mode<synchronous>, transform_indices = @transform_6, window_bounds = array<i64: 2, 32, 32>}, {pipeline_mode = #tpu.pipeline_mode<synchronous>, transform_indices = @transform_7, window_bounds = array<i64: 2, 1, 32>}, {pipeline_mode = #tpu.pipeline_mode<synchronous>, transform_indices = @transform_8, window_bounds = array<i64: 32, 128>}, {pipeline_mode = #tpu.pipeline_mode<synchronous>, transform_indices = @transform_9, window_bounds = array<i64: 1, 128>}, {transform_indices = @transform_10, window_bounds = array<i64: 1, 128, 128>}]} {
    %c0 = arith.constant 0 : index
    %c0_0 = arith.constant 0 : index
    %c0_1 = arith.constant 0 : index
    %c0_2 = arith.constant 0 : index
    %0 = vector.load %arg2[%c0, %c0_0, %c0_1, %c0_2] : memref<3x1x128x128xbf16, #tpu.memory_space<vmem>>, vector<1x1x128x128xbf16>
    %1 = vector.shape_cast %0 : vector<1x1x128x128xbf16> to vector<128x128xbf16>
    %c0_3 = arith.constant 0 : index
    %c0_4 = arith.constant 0 : index
    %2 = vector.load %arg4[%c0_3, %c0_4] : memref<128x16xbf16, #tpu.memory_space<vmem>>, vector<128x16xbf16>
    %cst = arith.constant dense<0.000000e+00> : vector<128x16xf32>
    %3 = tpu.matmul %1, %2, %cst {dimension_numbers = #tpu.dot_dimension_numbers<[1], [0], [0], [1], [0, 0, 1, 1], [], []>} : vector<128x128xbf16>, vector<128x16xbf16>, vector<128x16xf32> -> vector<128x16xf32>
    %c0_5 = arith.constant 0 : index
    %c0_6 = arith.constant 0 : index
    %4 = vector.load %arg5[%c0_5, %c0_6] : memref<1x16xf32, #tpu.memory_space<vmem>>, vector<1x16xf32>
    %5 = vector.broadcast %4 : vector<1x16xf32> to vector<128x16xf32>
    %6 = arith.addf %3, %5 : vector<128x16xf32>
    %cst_7 = arith.constant 0.000000e+00 : f32
    %7 = vector.broadcast %cst_7 : f32 to vector<128x16xf32>
    %8 = arith.maximumf %6, %7 : vector<128x16xf32>
    %c1 = arith.constant 1 : index
    %c0_8 = arith.constant 0 : index
    %c0_9 = arith.constant 0 : index
    %c0_10 = arith.constant 0 : index
    %9 = vector.load %arg2[%c1, %c0_8, %c0_9, %c0_10] : memref<3x1x128x128xbf16, #tpu.memory_space<vmem>>, vector<1x1x128x128xbf16>
    %10 = vector.shape_cast %9 : vector<1x1x128x128xbf16> to vector<128x128xbf16>
    %c0_11 = arith.constant 0 : index
    %c0_12 = arith.constant 0 : index
    %11 = vector.load %arg4[%c0_11, %c0_12] : memref<128x16xbf16, #tpu.memory_space<vmem>>, vector<128x16xbf16>
    %cst_13 = arith.constant dense<0.000000e+00> : vector<128x16xf32>
    %12 = tpu.matmul %10, %11, %cst_13 {dimension_numbers = #tpu.dot_dimension_numbers<[1], [0], [0], [1], [0, 0, 1, 1], [], []>} : vector<128x128xbf16>, vector<128x16xbf16>, vector<128x16xf32> -> vector<128x16xf32>
    %c0_14 = arith.constant 0 : index
    %c0_15 = arith.constant 0 : index
    %13 = vector.load %arg5[%c0_14, %c0_15] : memref<1x16xf32, #tpu.memory_space<vmem>>, vector<1x16xf32>
    %14 = vector.broadcast %13 : vector<1x16xf32> to vector<128x16xf32>
    %15 = arith.addf %12, %14 : vector<128x16xf32>
    %cst_16 = arith.constant 0.000000e+00 : f32
    %16 = vector.broadcast %cst_16 : f32 to vector<128x16xf32>
    %17 = arith.maximumf %15, %16 : vector<128x16xf32>
    %18 = arith.maximumf %8, %17 : vector<128x16xf32>
    %c2 = arith.constant 2 : index
    %c0_17 = arith.constant 0 : index
    %c0_18 = arith.constant 0 : index
    %c0_19 = arith.constant 0 : index
    %19 = vector.load %arg2[%c2, %c0_17, %c0_18, %c0_19] : memref<3x1x128x128xbf16, #tpu.memory_space<vmem>>, vector<1x1x128x128xbf16>
    %20 = vector.shape_cast %19 : vector<1x1x128x128xbf16> to vector<128x128xbf16>
    %c0_20 = arith.constant 0 : index
    %c0_21 = arith.constant 0 : index
    %21 = vector.load %arg4[%c0_20, %c0_21] : memref<128x16xbf16, #tpu.memory_space<vmem>>, vector<128x16xbf16>
    %cst_22 = arith.constant dense<0.000000e+00> : vector<128x16xf32>
    %22 = tpu.matmul %20, %21, %cst_22 {dimension_numbers = #tpu.dot_dimension_numbers<[1], [0], [0], [1], [0, 0, 1, 1], [], []>} : vector<128x128xbf16>, vector<128x16xbf16>, vector<128x16xf32> -> vector<128x16xf32>
    %c0_23 = arith.constant 0 : index
    %c0_24 = arith.constant 0 : index
    %23 = vector.load %arg5[%c0_23, %c0_24] : memref<1x16xf32, #tpu.memory_space<vmem>>, vector<1x16xf32>
    %24 = vector.broadcast %23 : vector<1x16xf32> to vector<128x16xf32>
    %25 = arith.addf %22, %24 : vector<128x16xf32>
    %cst_25 = arith.constant 0.000000e+00 : f32
    %26 = vector.broadcast %cst_25 : f32 to vector<128x16xf32>
    %27 = arith.maximumf %25, %26 : vector<128x16xf32>
    %28 = arith.maximumf %18, %27 : vector<128x16xf32>
    %c0_26 = arith.constant 0 : index
    %c0_27 = arith.constant 0 : index
    %c0_28 = arith.constant 0 : index
    %29 = vector.load %arg3[%c0_26, %c0_27, %c0_28] : memref<1x128x16xbf16, #tpu.memory_space<vmem>>, vector<1x128x16xbf16>
    %30 = vector.shape_cast %29 : vector<1x128x16xbf16> to vector<128x16xbf16>
    %31 = arith.extf %30 : vector<128x16xbf16> to vector<128x16xf32>
    %32 = tpu.concatenate %28, %31 in 1 : vector<128x16xf32>, vector<128x16xf32> -> vector<128x32xf32>
    %33 = arith.truncf %32 : vector<128x32xf32> to vector<128x32xbf16>
    %c0_29 = arith.constant 0 : index
    %c0_30 = arith.constant 0 : index
    %c0_31 = arith.constant 0 : index
    %34 = vector.load %arg6[%c0_29, %c0_30, %c0_31] : memref<2x32x32xbf16, #tpu.memory_space<vmem>>, vector<1x32x32xbf16>
    %35 = vector.shape_cast %34 : vector<1x32x32xbf16> to vector<32x32xbf16>
    %cst_32 = arith.constant dense<0.000000e+00> : vector<128x32xf32>
    %36 = tpu.matmul %33, %35, %cst_32 {dimension_numbers = #tpu.dot_dimension_numbers<[1], [0], [0], [1], [0, 0, 1, 1], [], []>} : vector<128x32xbf16>, vector<32x32xbf16>, vector<128x32xf32> -> vector<128x32xf32>
    %c0_33 = arith.constant 0 : index
    %c0_34 = arith.constant 0 : index
    %c0_35 = arith.constant 0 : index
    %37 = vector.load %arg7[%c0_33, %c0_34, %c0_35] : memref<2x1x32xf32, #tpu.memory_space<vmem>>, vector<1x1x32xf32>
    %38 = vector.shape_cast %37 : vector<1x1x32xf32> to vector<1x32xf32>
    %39 = vector.broadcast %38 : vector<1x32xf32> to vector<128x32xf32>
    %40 = arith.addf %36, %39 : vector<128x32xf32>
    %41 = arith.negf %40 : vector<128x32xf32>
    %42 = math.exp %41 : vector<128x32xf32>
    %cst_36 = arith.constant 1.000000e+00 : f32
    %43 = vector.broadcast %cst_36 : f32 to vector<128x32xf32>
    %44 = arith.addf %43, %42 : vector<128x32xf32>
    %45 = arith.divf %43, %44 : vector<128x32xf32>
    %c0_37 = arith.constant 0 : index
    %c0_38 = arith.constant 0 : index
    %c0_39 = arith.constant 0 : index
    %46 = vector.load %arg8[%c0_37, %c0_38, %c0_39] : memref<2x32x32xbf16, #tpu.memory_space<vmem>>, vector<1x32x32xbf16>
    %47 = vector.shape_cast %46 : vector<1x32x32xbf16> to vector<32x32xbf16>
    %cst_40 = arith.constant dense<0.000000e+00> : vector<128x32xf32>
    %48 = tpu.matmul %33, %47, %cst_40 {dimension_numbers = #tpu.dot_dimension_numbers<[1], [0], [0], [1], [0, 0, 1, 1], [], []>} : vector<128x32xbf16>, vector<32x32xbf16>, vector<128x32xf32> -> vector<128x32xf32>
    %c0_41 = arith.constant 0 : index
    %c0_42 = arith.constant 0 : index
    %c0_43 = arith.constant 0 : index
    %49 = vector.load %arg9[%c0_41, %c0_42, %c0_43] : memref<2x1x32xf32, #tpu.memory_space<vmem>>, vector<1x1x32xf32>
    %50 = vector.shape_cast %49 : vector<1x1x32xf32> to vector<1x32xf32>
    %51 = vector.broadcast %50 : vector<1x32xf32> to vector<128x32xf32>
    %52 = arith.addf %48, %51 : vector<128x32xf32>
    %cst_44 = arith.constant 0.000000e+00 : f32
    %53 = vector.broadcast %cst_44 : f32 to vector<128x32xf32>
    %54 = arith.maximumf %52, %53 : vector<128x32xf32>
    %55 = arith.mulf %45, %54 : vector<128x32xf32>
    %cst_45 = arith.constant 1.000000e+00 : f32
    %56 = vector.broadcast %cst_45 : f32 to vector<128x32xf32>
    %57 = arith.subf %56, %45 : vector<128x32xf32>
    %58 = arith.mulf %57, %32 : vector<128x32xf32>
    %59 = arith.addf %55, %58 : vector<128x32xf32>
    %60 = arith.truncf %59 : vector<128x32xf32> to vector<128x32xbf16>
    %c1_46 = arith.constant 1 : index
    %c0_47 = arith.constant 0 : index
    %c0_48 = arith.constant 0 : index
    %61 = vector.load %arg6[%c1_46, %c0_47, %c0_48] : memref<2x32x32xbf16, #tpu.memory_space<vmem>>, vector<1x32x32xbf16>
    %62 = vector.shape_cast %61 : vector<1x32x32xbf16> to vector<32x32xbf16>
    %cst_49 = arith.constant dense<0.000000e+00> : vector<128x32xf32>
    %63 = tpu.matmul %60, %62, %cst_49 {dimension_numbers = #tpu.dot_dimension_numbers<[1], [0], [0], [1], [0, 0, 1, 1], [], []>} : vector<128x32xbf16>, vector<32x32xbf16>, vector<128x32xf32> -> vector<128x32xf32>
    %c1_50 = arith.constant 1 : index
    %c0_51 = arith.constant 0 : index
    %c0_52 = arith.constant 0 : index
    %64 = vector.load %arg7[%c1_50, %c0_51, %c0_52] : memref<2x1x32xf32, #tpu.memory_space<vmem>>, vector<1x1x32xf32>
    %65 = vector.shape_cast %64 : vector<1x1x32xf32> to vector<1x32xf32>
    %66 = vector.broadcast %65 : vector<1x32xf32> to vector<128x32xf32>
    %67 = arith.addf %63, %66 : vector<128x32xf32>
    %68 = arith.negf %67 : vector<128x32xf32>
    %69 = math.exp %68 : vector<128x32xf32>
    %cst_53 = arith.constant 1.000000e+00 : f32
    %70 = vector.broadcast %cst_53 : f32 to vector<128x32xf32>
    %71 = arith.addf %70, %69 : vector<128x32xf32>
    %72 = arith.divf %70, %71 : vector<128x32xf32>
    %c1_54 = arith.constant 1 : index
    %c0_55 = arith.constant 0 : index
    %c0_56 = arith.constant 0 : index
    %73 = vector.load %arg8[%c1_54, %c0_55, %c0_56] : memref<2x32x32xbf16, #tpu.memory_space<vmem>>, vector<1x32x32xbf16>
    %74 = vector.shape_cast %73 : vector<1x32x32xbf16> to vector<32x32xbf16>
    %cst_57 = arith.constant dense<0.000000e+00> : vector<128x32xf32>
    %75 = tpu.matmul %60, %74, %cst_57 {dimension_numbers = #tpu.dot_dimension_numbers<[1], [0], [0], [1], [0, 0, 1, 1], [], []>} : vector<128x32xbf16>, vector<32x32xbf16>, vector<128x32xf32> -> vector<128x32xf32>
    %c1_58 = arith.constant 1 : index
    %c0_59 = arith.constant 0 : index
    %c0_60 = arith.constant 0 : index
    %76 = vector.load %arg9[%c1_58, %c0_59, %c0_60] : memref<2x1x32xf32, #tpu.memory_space<vmem>>, vector<1x1x32xf32>
    %77 = vector.shape_cast %76 : vector<1x1x32xf32> to vector<1x32xf32>
    %78 = vector.broadcast %77 : vector<1x32xf32> to vector<128x32xf32>
    %79 = arith.addf %75, %78 : vector<128x32xf32>
    %cst_61 = arith.constant 0.000000e+00 : f32
    %80 = vector.broadcast %cst_61 : f32 to vector<128x32xf32>
    %81 = arith.maximumf %79, %80 : vector<128x32xf32>
    %82 = arith.mulf %72, %81 : vector<128x32xf32>
    %cst_62 = arith.constant 1.000000e+00 : f32
    %83 = vector.broadcast %cst_62 : f32 to vector<128x32xf32>
    %84 = arith.subf %83, %72 : vector<128x32xf32>
    %85 = arith.mulf %84, %59 : vector<128x32xf32>
    %86 = arith.addf %82, %85 : vector<128x32xf32>
    %87 = arith.truncf %86 : vector<128x32xf32> to vector<128x32xbf16>
    %c0_63 = arith.constant 0 : index
    %c0_64 = arith.constant 0 : index
    %88 = vector.load %arg10[%c0_63, %c0_64] : memref<32x128xbf16, #tpu.memory_space<vmem>>, vector<32x128xbf16>
    %cst_65 = arith.constant dense<0.000000e+00> : vector<128x128xf32>
    %89 = tpu.matmul %87, %88, %cst_65 {dimension_numbers = #tpu.dot_dimension_numbers<[1], [0], [0], [1], [0, 0, 1, 1], [], []>} : vector<128x32xbf16>, vector<32x128xbf16>, vector<128x128xf32> -> vector<128x128xf32>
    %c0_66 = arith.constant 0 : index
    %c0_67 = arith.constant 0 : index
    %90 = vector.load %arg11[%c0_66, %c0_67] : memref<1x128xf32, #tpu.memory_space<vmem>>, vector<1x128xf32>
    %91 = vector.broadcast %90 : vector<1x128xf32> to vector<128x128xf32>
    %92 = arith.addf %89, %91 : vector<128x128xf32>
    %93 = math.tanh %92 : vector<128x128xf32>
    %94 = arith.truncf %93 : vector<128x128xf32> to vector<128x128xbf16>
    %c0_68 = arith.constant 0 : index
    %c0_69 = arith.constant 0 : index
    %c0_70 = arith.constant 0 : index
    %95 = vector.load %arg12[%c0_68, %c0_69, %c0_70] : memref<1x128x128xbf16, #tpu.memory_space<vmem>>, vector<1x128x128xbf16>
    %96 = vector.shape_cast %95 : vector<1x128x128xbf16> to vector<128x128xbf16>
    %97 = vector.shape_cast %94 : vector<128x128xbf16> to vector<1x128x128xbf16>
    tpu.vector_store %arg12[%c0_68, %c0_69, %c0_70], %97 {strides = array<i32>} : memref<1x128x128xbf16, #tpu.memory_space<vmem>>, vector<1x128x128xbf16>,
    return
  }
  func.func @transform_0(%arg0: i32, %arg1: i32) -> (i32, i32, i32, i32) {
    %c0_i32 = arith.constant 0 : i32
    %c0_i32_0 = arith.constant 0 : i32
    %c0_i32_1 = arith.constant 0 : i32
    return %c0_i32, %arg0, %arg1, %c0_i32_0 : i32, i32, i32, i32
  }
  func.func @transform_1(%arg0: i32, %arg1: i32) -> (i32, i32, i32) {
    %c0_i32 = arith.constant 0 : i32
    %c0_i32_0 = arith.constant 0 : i32
    return %arg0, %arg1, %c0_i32 : i32, i32, i32
  }
  func.func @transform_2(%arg0: i32, %arg1: i32) -> (i32, i32) {
    %c0_i32 = arith.constant 0 : i32
    %c0_i32_0 = arith.constant 0 : i32
    %c0_i32_1 = arith.constant 0 : i32
    return %c0_i32, %c0_i32_0 : i32, i32
  }
  func.func @transform_3(%arg0: i32, %arg1: i32) -> (i32, i32) {
    %c0_i32 = arith.constant 0 : i32
    %c0_i32_0 = arith.constant 0 : i32
    %c0_i32_1 = arith.constant 0 : i32
    return %c0_i32, %c0_i32_0 : i32, i32
  }
  func.func @transform_4(%arg0: i32, %arg1: i32) -> (i32, i32, i32) {
    %c0_i32 = arith.constant 0 : i32
    %c0_i32_0 = arith.constant 0 : i32
    %c0_i32_1 = arith.constant 0 : i32
    %c0_i32_2 = arith.constant 0 : i32
    return %c0_i32, %c0_i32_0, %c0_i32_1 : i32, i32, i32
  }
  func.func @transform_5(%arg0: i32, %arg1: i32) -> (i32, i32, i32) {
    %c0_i32 = arith.constant 0 : i32
    %c0_i32_0 = arith.constant 0 : i32
    %c0_i32_1 = arith.constant 0 : i32
    %c0_i32_2 = arith.constant 0 : i32
    return %c0_i32, %c0_i32_0, %c0_i32_1 : i32, i32, i32
  }
  func.func @transform_6(%arg0: i32, %arg1: i32) -> (i32, i32, i32) {
    %c0_i32 = arith.constant 0 : i32
    %c0_i32_0 = arith.constant 0 : i32
    %c0_i32_1 = arith.constant 0 : i32
    %c0_i32_2 = arith.constant 0 : i32
    return %c0_i32, %c0_i32_0, %c0_i32_1 : i32, i32, i32
  }
  func.func @transform_7(%arg0: i32, %arg1: i32) -> (i32, i32, i32) {
    %c0_i32 = arith.constant 0 : i32
    %c0_i32_0 = arith.constant 0 : i32
    %c0_i32_1 = arith.constant 0 : i32
    %c0_i32_2 = arith.constant 0 : i32
    return %c0_i32, %c0_i32_0, %c0_i32_1 : i32, i32, i32
  }
  func.func @transform_8(%arg0: i32, %arg1: i32) -> (i32, i32) {
    %c0_i32 = arith.constant 0 : i32
    %c0_i32_0 = arith.constant 0 : i32
    %c0_i32_1 = arith.constant 0 : i32
    return %c0_i32, %c0_i32_0 : i32, i32
  }
  func.func @transform_9(%arg0: i32, %arg1: i32) -> (i32, i32) {
    %c0_i32 = arith.constant 0 : i32
    %c0_i32_0 = arith.constant 0 : i32
    %c0_i32_1 = arith.constant 0 : i32
    return %c0_i32, %c0_i32_0 : i32, i32
  }
  func.func @transform_10(%arg0: i32, %arg1: i32) -> (i32, i32, i32) {
    %c0_i32 = arith.constant 0 : i32
    %c0_i32_0 = arith.constant 0 : i32
    return %arg0, %arg1, %c0_i32 : i32, i32, i32
  }
}

module attributes {stable_mosaic.version = 11 : i64} {
  func.func @_attend_answer_kernel(%arg0: i32, %arg1: memref<1x128x128xbf16, #tpu.memory_space<vmem>>, %arg2: memref<1x128x128xbf16, #tpu.memory_space<vmem>>, %arg3: memref<1x1x128xf32, #tpu.memory_space<vmem>>, %arg4: memref<1x1x128xf32, #tpu.memory_space<vmem>>, %arg5: memref<2x128xbf16, #tpu.memory_space<vmem>>, %arg6: memref<6x128x128xbf16, #tpu.memory_space<vmem>>, %arg7: memref<3x128xf32, #tpu.memory_space<vmem>>, %arg8: memref<4x128xbf16, #tpu.memory_space<vmem>>, %arg9: memref<1x1x128xf32, #tpu.memory_space<vmem>>, %arg10: memref<1x1x128xf32, #tpu.memory_space<vmem>>) attributes {dimension_semantics = [#tpu.dimension_semantics<parallel>], iteration_bounds = array<i64: 2>, scalar_prefetch = 0 : i64, scratch_operands = 0 : i64, tpu.core_type = #tpu.core_type<tc>, window_params = [{transform_indices = @transform_0, window_bounds = array<i64: 1, 128, 128>}, {transform_indices = @transform_1, window_bounds = array<i64: 1, 128, 128>}, {transform_indices = @transform_2, window_bounds = array<i64: 1, 1, 128>}, {transform_indices = @transform_3, window_bounds = array<i64: 1, 1, 128>}, {pipeline_mode = #tpu.pipeline_mode<synchronous>, transform_indices = @transform_4, window_bounds = array<i64: 2, 128>}, {pipeline_mode = #tpu.pipeline_mode<synchronous>, transform_indices = @transform_5, window_bounds = array<i64: 6, 128, 128>}, {pipeline_mode = #tpu.pipeline_mode<synchronous>, transform_indices = @transform_6, window_bounds = array<i64: 3, 128>}, {pipeline_mode = #tpu.pipeline_mode<synchronous>, transform_indices = @transform_7, window_bounds = array<i64: 4, 128>}, {transform_indices = @transform_8, window_bounds = array<i64: 1, 1, 128>}, {transform_indices = @transform_9, window_bounds = array<i64: 1, 1, 128>}]} {
    %c0 = arith.constant 0 : index
    %c0_0 = arith.constant 0 : index
    %c0_1 = arith.constant 0 : index
    %0 = vector.load %arg1[%c0, %c0_0, %c0_1] : memref<1x128x128xbf16, #tpu.memory_space<vmem>>, vector<1x128x128xbf16>
    %1 = vector.shape_cast %0 : vector<1x128x128xbf16> to vector<128x128xbf16>
    %c0_2 = arith.constant 0 : index
    %c0_3 = arith.constant 0 : index
    %c0_4 = arith.constant 0 : index
    %2 = vector.load %arg2[%c0_2, %c0_3, %c0_4] : memref<1x128x128xbf16, #tpu.memory_space<vmem>>, vector<1x128x128xbf16>
    %3 = vector.shape_cast %2 : vector<1x128x128xbf16> to vector<128x128xbf16>
    %c0_5 = arith.constant 0 : index
    %c0_6 = arith.constant 0 : index
    %c0_7 = arith.constant 0 : index
    %4 = vector.load %arg3[%c0_5, %c0_6, %c0_7] : memref<1x1x128xf32, #tpu.memory_space<vmem>>, vector<1x1x128xf32>
    %5 = vector.shape_cast %4 : vector<1x1x128xf32> to vector<1x128xf32>
    %c0_8 = arith.constant 0 : index
    %c0_9 = arith.constant 0 : index
    %c0_10 = arith.constant 0 : index
    %6 = vector.load %arg4[%c0_8, %c0_9, %c0_10] : memref<1x1x128xf32, #tpu.memory_space<vmem>>, vector<1x1x128xf32>
    %7 = vector.shape_cast %6 : vector<1x1x128xf32> to vector<1x128xf32>
    %c0_11 = arith.constant 0 : index
    %c0_12 = arith.constant 0 : index
    %8 = vector.load %arg5[%c0_11, %c0_12] : memref<2x128xbf16, #tpu.memory_space<vmem>>, vector<2x128xbf16>
    %c0_13 = arith.constant 0 : index
    %c0_14 = arith.constant 0 : index
    %9 = vector.load %arg7[%c0_13, %c0_14] : memref<3x128xf32, #tpu.memory_space<vmem>>, vector<3x128xf32>
    %c0_15 = arith.constant 0 : index
    %c0_16 = arith.constant 0 : index
    %10 = vector.load %arg8[%c0_15, %c0_16] : memref<4x128xbf16, #tpu.memory_space<vmem>>, vector<4x128xbf16>
    %11 = vector.extract_strided_slice %8 {offsets = [0, 0], sizes = [1, 128], strides = [1, 1]} : vector<2x128xbf16> to vector<1x128xbf16>
    %cst = arith.constant dense<0.000000e+00> : vector<1x128xf32>
    %12 = tpu.matmul %11, %3, %cst {dimension_numbers = #tpu.dot_dimension_numbers<[1], [1], [0], [0], [0, 0, 1, 0], [], []>} : vector<1x128xbf16>, vector<128x128xbf16>, vector<1x128xf32> -> vector<1x128xf32>
    %13 = vector.extract_strided_slice %8 {offsets = [1, 0], sizes = [1, 128], strides = [1, 1]} : vector<2x128xbf16> to vector<1x128xbf16>
    %14 = vector.broadcast %13 : vector<1x128xbf16> to vector<128x128xbf16>
    %15 = arith.mulf %1, %14 : vector<128x128xbf16>
    %cst_17 = arith.constant dense<0.000000e+00> : vector<128x128xf32>
    %16 = tpu.matmul %15, %3, %cst_17 {dimension_numbers = #tpu.dot_dimension_numbers<[1], [1], [0], [0], [0, 0, 1, 0], [], []>} : vector<128x128xbf16>, vector<128x128xbf16>, vector<128x128xf32> -> vector<128x128xf32>
    %17 = vector.broadcast %12 : vector<1x128xf32> to vector<128x128xf32>
    %18 = arith.addf %16, %17 : vector<128x128xf32>
    %cst_18 = arith.constant 0.000000e+00 : f32
    %19 = vector.broadcast %cst_18 : f32 to vector<1x128xf32>
    %20 = arith.cmpf ogt, %5, %19 : vector<1x128xf32>
    %cst_19 = arith.constant -1.000000e+30 : f32
    %21 = vector.shape_cast %20 : vector<1x128xi1> to vector<1x128xi1>
    %22 = vector.broadcast %21 : vector<1x128xi1> to vector<128x128xi1>
    %23 = vector.broadcast %cst_19 : f32 to vector<128x128xf32>
    %24 = arith.select %22, %18, %23 : vector<128x128xi1>, vector<128x128xf32>
    %cst_20 = arith.constant dense<0xFF800000> : vector<128xf32>
    %25 = vector.multi_reduction <maximumf>, %24, %cst_20 [1] : vector<128x128xf32> to vector<128xf32>
    %26 = vector.shape_cast %25 : vector<128xf32> to vector<128x1xf32>
    %27 = vector.broadcast %26 : vector<128x1xf32> to vector<128x128xf32>
    %28 = arith.subf %24, %27 : vector<128x128xf32>
    %29 = math.exp %28 : vector<128x128xf32>
    %cst_21 = arith.constant dense<0.000000e+00> : vector<128xf32>
    %30 = vector.multi_reduction <add>, %29, %cst_21 [1] : vector<128x128xf32> to vector<128xf32>
    %31 = vector.shape_cast %30 : vector<128xf32> to vector<128x1xf32>
    %32 = tpu.reciprocal %31 {approx = true} : vector<128x1xf32> -> vector<128x1xf32>
    %33 = vector.broadcast %32 : vector<128x1xf32> to vector<128x128xf32>
    %34 = arith.mulf %29, %33 : vector<128x128xf32>
    %35 = arith.truncf %34 : vector<128x128xf32> to vector<128x128xbf16>
    %cst_22 = arith.constant dense<0.000000e+00> : vector<128x128xf32>
    %36 = tpu.matmul %35, %3, %cst_22 {dimension_numbers = #tpu.dot_dimension_numbers<[1], [0], [0], [1], [0, 0, 1, 1], [], []>} : vector<128x128xbf16>, vector<128x128xbf16>, vector<128x128xf32> -> vector<128x128xf32>
    %37 = arith.truncf %36 : vector<128x128xf32> to vector<128x128xbf16>
    %c0_23 = arith.constant 0 : index
    %c0_24 = arith.constant 0 : index
    %c0_25 = arith.constant 0 : index
    %38 = vector.load %arg6[%c0_23, %c0_24, %c0_25] : memref<6x128x128xbf16, #tpu.memory_space<vmem>>, vector<1x128x128xbf16>
    %39 = vector.shape_cast %38 : vector<1x128x128xbf16> to vector<128x128xbf16>
    %cst_26 = arith.constant dense<0.000000e+00> : vector<128x128xf32>
    %40 = tpu.matmul %37, %39, %cst_26 {dimension_numbers = #tpu.dot_dimension_numbers<[1], [0], [0], [1], [0, 0, 1, 1], [], []>} : vector<128x128xbf16>, vector<128x128xbf16>, vector<128x128xf32> -> vector<128x128xf32>
    %41 = vector.extract_strided_slice %9 {offsets = [0, 0], sizes = [1, 128], strides = [1, 1]} : vector<3x128xf32> to vector<1x128xf32>
    %42 = vector.broadcast %41 : vector<1x128xf32> to vector<128x128xf32>
    %43 = arith.addf %40, %42 : vector<128x128xf32>
    %44 = math.tanh %43 : vector<128x128xf32>
    %45 = arith.truncf %44 : vector<128x128xf32> to vector<128x128xbf16>
    %c1 = arith.constant 1 : index
    %c0_27 = arith.constant 0 : index
    %c0_28 = arith.constant 0 : index
    %46 = vector.load %arg6[%c1, %c0_27, %c0_28] : memref<6x128x128xbf16, #tpu.memory_space<vmem>>, vector<1x128x128xbf16>
    %47 = vector.shape_cast %46 : vector<1x128x128xbf16> to vector<128x128xbf16>
    %cst_29 = arith.constant dense<0.000000e+00> : vector<128x128xf32>
    %48 = tpu.matmul %45, %47, %cst_29 {dimension_numbers = #tpu.dot_dimension_numbers<[1], [0], [0], [1], [0, 0, 1, 1], [], []>} : vector<128x128xbf16>, vector<128x128xbf16>, vector<128x128xf32> -> vector<128x128xf32>
    %49 = vector.extract_strided_slice %9 {offsets = [1, 0], sizes = [1, 128], strides = [1, 1]} : vector<3x128xf32> to vector<1x128xf32>
    %50 = vector.broadcast %49 : vector<1x128xf32> to vector<128x128xf32>
    %51 = arith.addf %48, %50 : vector<128x128xf32>
    %52 = math.tanh %51 : vector<128x128xf32>
    %53 = arith.truncf %52 : vector<128x128xf32> to vector<128x128xbf16>
    %54 = vector.extract_strided_slice %10 {offsets = [0, 0], sizes = [1, 128], strides = [1, 1]} : vector<4x128xbf16> to vector<1x128xbf16>
    %cst_30 = arith.constant dense<0.000000e+00> : vector<1x128xf32>
    %55 = tpu.matmul %54, %53, %cst_30 {dimension_numbers = #tpu.dot_dimension_numbers<[1], [1], [0], [0], [0, 0, 1, 0], [], []>} : vector<1x128xbf16>, vector<128x128xbf16>, vector<1x128xf32> -> vector<1x128xf32>
    %56 = vector.extract_strided_slice %10 {offsets = [1, 0], sizes = [1, 128], strides = [1, 1]} : vector<4x128xbf16> to vector<1x128xbf16>
    %cst_31 = arith.constant dense<0.000000e+00> : vector<1x128xf32>
    %57 = tpu.matmul %56, %37, %cst_31 {dimension_numbers = #tpu.dot_dimension_numbers<[1], [1], [0], [0], [0, 0, 1, 0], [], []>} : vector<1x128xbf16>, vector<128x128xbf16>, vector<1x128xf32> -> vector<1x128xf32>
    %58 = arith.addf %55, %57 : vector<1x128xf32>
    %cst_32 = arith.constant 0.000000e+00 : f32
    %59 = vector.broadcast %cst_32 : f32 to vector<1x128xf32>
    %60 = arith.cmpf ogt, %7, %59 : vector<1x128xf32>
    %cst_33 = arith.constant -1.000000e+30 : f32
    %61 = vector.broadcast %cst_33 : f32 to vector<1x128xf32>
    %62 = arith.select %60, %58, %61 : vector<1x128xi1>, vector<1x128xf32>
    %cst_34 = arith.constant dense<0xFF800000> : vector<1xf32>
    %63 = vector.multi_reduction <maximumf>, %62, %cst_34 [1] : vector<1x128xf32> to vector<1xf32>
    %64 = vector.shape_cast %63 : vector<1xf32> to vector<1x1xf32>
    %65 = vector.broadcast %64 : vector<1x1xf32> to vector<1x128xf32>
    %66 = arith.subf %62, %65 : vector<1x128xf32>
    %67 = math.exp %66 : vector<1x128xf32>
    %cst_35 = arith.constant dense<0.000000e+00> : vector<1xf32>
    %68 = vector.multi_reduction <add>, %67, %cst_35 [1] : vector<1x128xf32> to vector<1xf32>
    %69 = vector.shape_cast %68 : vector<1xf32> to vector<1x1xf32>
    %70 = vector.broadcast %69 : vector<1x1xf32> to vector<1x128xf32>
    %71 = arith.divf %67, %70 : vector<1x128xf32>
    %c0_36 = arith.constant 0 : index
    %c0_37 = arith.constant 0 : index
    %c0_38 = arith.constant 0 : index
    %72 = vector.load %arg9[%c0_36, %c0_37, %c0_38] : memref<1x1x128xf32, #tpu.memory_space<vmem>>, vector<1x1x128xf32>
    %73 = vector.shape_cast %72 : vector<1x1x128xf32> to vector<1x128xf32>
    %74 = vector.shape_cast %71 : vector<1x128xf32> to vector<1x1x128xf32>
    tpu.vector_store %arg9[%c0_36, %c0_37, %c0_38], %74 {strides = array<i32>} : memref<1x1x128xf32, #tpu.memory_space<vmem>>, vector<1x1x128xf32>,
    %75 = arith.truncf %71 : vector<1x128xf32> to vector<1x128xbf16>
    %cst_39 = arith.constant dense<0.000000e+00> : vector<1x128xf32>
    %76 = tpu.matmul %75, %53, %cst_39 {dimension_numbers = #tpu.dot_dimension_numbers<[1], [0], [0], [1], [0, 0, 1, 1], [], []>} : vector<1x128xbf16>, vector<128x128xbf16>, vector<1x128xf32> -> vector<1x128xf32>
    %77 = arith.truncf %76 : vector<1x128xf32> to vector<1x128xbf16>
    %c2 = arith.constant 2 : index
    %c0_40 = arith.constant 0 : index
    %c0_41 = arith.constant 0 : index
    %78 = vector.load %arg6[%c2, %c0_40, %c0_41] : memref<6x128x128xbf16, #tpu.memory_space<vmem>>, vector<1x128x128xbf16>
    %79 = vector.shape_cast %78 : vector<1x128x128xbf16> to vector<128x128xbf16>
    %cst_42 = arith.constant dense<0.000000e+00> : vector<128x128xf32>
    %80 = tpu.matmul %37, %79, %cst_42 {dimension_numbers = #tpu.dot_dimension_numbers<[1], [0], [0], [1], [0, 0, 1, 1], [], []>} : vector<128x128xbf16>, vector<128x128xbf16>, vector<128x128xf32> -> vector<128x128xf32>
    %c3 = arith.constant 3 : index
    %c0_43 = arith.constant 0 : index
    %c0_44 = arith.constant 0 : index
    %81 = vector.load %arg6[%c3, %c0_43, %c0_44] : memref<6x128x128xbf16, #tpu.memory_space<vmem>>, vector<1x128x128xbf16>
    %82 = vector.shape_cast %81 : vector<1x128x128xbf16> to vector<128x128xbf16>
    %cst_45 = arith.constant dense<0.000000e+00> : vector<128x128xf32>
    %83 = tpu.matmul %53, %82, %cst_45 {dimension_numbers = #tpu.dot_dimension_numbers<[1], [0], [0], [1], [0, 0, 1, 1], [], []>} : vector<128x128xbf16>, vector<128x128xbf16>, vector<128x128xf32> -> vector<128x128xf32>
    %84 = arith.addf %80, %83 : vector<128x128xf32>
    %c4 = arith.constant 4 : index
    %c0_46 = arith.constant 0 : index
    %c0_47 = arith.constant 0 : index
    %85 = vector.load %arg6[%c4, %c0_46, %c0_47] : memref<6x128x128xbf16, #tpu.memory_space<vmem>>, vector<1x128x128xbf16>
    %86 = vector.shape_cast %85 : vector<1x128x128xbf16> to vector<128x128xbf16>
    %cst_48 = arith.constant dense<0.000000e+00> : vector<1x128xf32>
    %87 = tpu.matmul %77, %86, %cst_48 {dimension_numbers = #tpu.dot_dimension_numbers<[1], [0], [0], [1], [0, 0, 1, 1], [], []>} : vector<1x128xbf16>, vector<128x128xbf16>, vector<1x128xf32> -> vector<1x128xf32>
    %88 = vector.broadcast %87 : vector<1x128xf32> to vector<128x128xf32>
    %89 = arith.addf %84, %88 : vector<128x128xf32>
    %90 = vector.broadcast %77 : vector<1x128xbf16> to vector<128x128xbf16>
    %91 = arith.mulf %53, %90 : vector<128x128xbf16>
    %c5 = arith.constant 5 : index
    %c0_49 = arith.constant 0 : index
    %c0_50 = arith.constant 0 : index
    %92 = vector.load %arg6[%c5, %c0_49, %c0_50] : memref<6x128x128xbf16, #tpu.memory_space<vmem>>, vector<1x128x128xbf16>
    %93 = vector.shape_cast %92 : vector<1x128x128xbf16> to vector<128x128xbf16>
    %cst_51 = arith.constant dense<0.000000e+00> : vector<128x128xf32>
    %94 = tpu.matmul %91, %93, %cst_51 {dimension_numbers = #tpu.dot_dimension_numbers<[1], [0], [0], [1], [0, 0, 1, 1], [], []>} : vector<128x128xbf16>, vector<128x128xbf16>, vector<128x128xf32> -> vector<128x128xf32>
    %95 = arith.addf %89, %94 : vector<128x128xf32>
    %96 = vector.extract_strided_slice %9 {offsets = [2, 0], sizes = [1, 128], strides = [1, 1]} : vector<3x128xf32> to vector<1x128xf32>
    %97 = vector.broadcast %96 : vector<1x128xf32> to vector<128x128xf32>
    %98 = arith.addf %95, %97 : vector<128x128xf32>
    %99 = math.tanh %98 : vector<128x128xf32>
    %100 = arith.truncf %99 : vector<128x128xf32> to vector<128x128xbf16>
    %101 = vector.extract_strided_slice %10 {offsets = [2, 0], sizes = [1, 128], strides = [1, 1]} : vector<4x128xbf16> to vector<1x128xbf16>
    %cst_52 = arith.constant dense<0.000000e+00> : vector<1x128xf32>
    %102 = tpu.matmul %101, %100, %cst_52 {dimension_numbers = #tpu.dot_dimension_numbers<[1], [1], [0], [0], [0, 0, 1, 0], [], []>} : vector<1x128xbf16>, vector<128x128xbf16>, vector<1x128xf32> -> vector<1x128xf32>
    %103 = vector.extract_strided_slice %10 {offsets = [3, 0], sizes = [1, 128], strides = [1, 1]} : vector<4x128xbf16> to vector<1x128xbf16>
    %cst_53 = arith.constant dense<0.000000e+00> : vector<1x128xf32>
    %104 = tpu.matmul %103, %37, %cst_53 {dimension_numbers = #tpu.dot_dimension_numbers<[1], [1], [0], [0], [0, 0, 1, 0], [], []>} : vector<1x128xbf16>, vector<128x128xbf16>, vector<1x128xf32> -> vector<1x128xf32>
    %105 = arith.addf %102, %104 : vector<1x128xf32>
    %cst_54 = arith.constant 0.000000e+00 : f32
    %106 = vector.broadcast %cst_54 : f32 to vector<1x128xf32>
    %107 = arith.cmpf ogt, %7, %106 : vector<1x128xf32>
    %cst_55 = arith.constant -1.000000e+30 : f32
    %108 = vector.broadcast %cst_55 : f32 to vector<1x128xf32>
    %109 = arith.select %107, %105, %108 : vector<1x128xi1>, vector<1x128xf32>
    %cst_56 = arith.constant dense<0xFF800000> : vector<1xf32>
    %110 = vector.multi_reduction <maximumf>, %109, %cst_56 [1] : vector<1x128xf32> to vector<1xf32>
    %111 = vector.shape_cast %110 : vector<1xf32> to vector<1x1xf32>
    %112 = vector.broadcast %111 : vector<1x1xf32> to vector<1x128xf32>
    %113 = arith.subf %109, %112 : vector<1x128xf32>
    %114 = math.exp %113 : vector<1x128xf32>
    %cst_57 = arith.constant dense<0.000000e+00> : vector<1xf32>
    %115 = vector.multi_reduction <add>, %114, %cst_57 [1] : vector<1x128xf32> to vector<1xf32>
    %116 = vector.shape_cast %115 : vector<1xf32> to vector<1x1xf32>
    %117 = vector.broadcast %116 : vector<1x1xf32> to vector<1x128xf32>
    %118 = arith.divf %114, %117 : vector<1x128xf32>
    %c0_58 = arith.constant 0 : index
    %c0_59 = arith.constant 0 : index
    %c0_60 = arith.constant 0 : index
    %119 = vector.load %arg10[%c0_58, %c0_59, %c0_60] : memref<1x1x128xf32, #tpu.memory_space<vmem>>, vector<1x1x128xf32>
    %120 = vector.shape_cast %119 : vector<1x1x128xf32> to vector<1x128xf32>
    %121 = vector.shape_cast %118 : vector<1x128xf32> to vector<1x1x128xf32>
    tpu.vector_store %arg10[%c0_58, %c0_59, %c0_60], %121 {strides = array<i32>} : memref<1x1x128xf32, #tpu.memory_space<vmem>>, vector<1x1x128xf32>,
    return
  }
  func.func @transform_0(%arg0: i32) -> (i32, i32, i32) {
    %c0_i32 = arith.constant 0 : i32
    %c0_i32_0 = arith.constant 0 : i32
    %c0_i32_1 = arith.constant 0 : i32
    return %arg0, %c0_i32, %c0_i32_0 : i32, i32, i32
  }
  func.func @transform_1(%arg0: i32) -> (i32, i32, i32) {
    %c0_i32 = arith.constant 0 : i32
    %c0_i32_0 = arith.constant 0 : i32
    %c0_i32_1 = arith.constant 0 : i32
    return %arg0, %c0_i32, %c0_i32_0 : i32, i32, i32
  }
  func.func @transform_2(%arg0: i32) -> (i32, i32, i32) {
    %c0_i32 = arith.constant 0 : i32
    %c0_i32_0 = arith.constant 0 : i32
    %c0_i32_1 = arith.constant 0 : i32
    return %arg0, %c0_i32, %c0_i32_0 : i32, i32, i32
  }
  func.func @transform_3(%arg0: i32) -> (i32, i32, i32) {
    %c0_i32 = arith.constant 0 : i32
    %c0_i32_0 = arith.constant 0 : i32
    %c0_i32_1 = arith.constant 0 : i32
    return %arg0, %c0_i32, %c0_i32_0 : i32, i32, i32
  }
  func.func @transform_4(%arg0: i32) -> (i32, i32) {
    %c0_i32 = arith.constant 0 : i32
    %c0_i32_0 = arith.constant 0 : i32
    %c0_i32_1 = arith.constant 0 : i32
    return %c0_i32, %c0_i32_0 : i32, i32
  }
  func.func @transform_5(%arg0: i32) -> (i32, i32, i32) {
    %c0_i32 = arith.constant 0 : i32
    %c0_i32_0 = arith.constant 0 : i32
    %c0_i32_1 = arith.constant 0 : i32
    %c0_i32_2 = arith.constant 0 : i32
    return %c0_i32, %c0_i32_0, %c0_i32_1 : i32, i32, i32
  }
  func.func @transform_6(%arg0: i32) -> (i32, i32) {
    %c0_i32 = arith.constant 0 : i32
    %c0_i32_0 = arith.constant 0 : i32
    %c0_i32_1 = arith.constant 0 : i32
    return %c0_i32, %c0_i32_0 : i32, i32
  }
  func.func @transform_7(%arg0: i32) -> (i32, i32) {
    %c0_i32 = arith.constant 0 : i32
    %c0_i32_0 = arith.constant 0 : i32
    %c0_i32_1 = arith.constant 0 : i32
    return %c0_i32, %c0_i32_0 : i32, i32
  }
  func.func @transform_8(%arg0: i32) -> (i32, i32, i32) {
    %c0_i32 = arith.constant 0 : i32
    %c0_i32_0 = arith.constant 0 : i32
    %c0_i32_1 = arith.constant 0 : i32
    return %arg0, %c0_i32, %c0_i32_0 : i32, i32, i32
  }
  func.func @transform_9(%arg0: i32) -> (i32, i32, i32) {
    %c0_i32 = arith.constant 0 : i32
    %c0_i32_0 = arith.constant 0 : i32
    %c0_i32_1 = arith.constant 0 : i32
    return %arg0, %c0_i32, %c0_i32_0 : i32, i32, i32
  }
}

</mosaic_0001>

<llo_original>
// kernel: squeeze.2
$region0: #{squeeze.2}
  %s0 = inlined_call_operand.vmem [shape: f32[2,16], index: 0, kind: input, shape index: {}]
  %s1 = inlined_call_operand.hbm [shape: f32[2,2,8], index: 1, kind: output, shape index: {}]
  $region1: #{squeeze.2} parent=0
    #allocation0 [shape = 'u8[2048]{0}', space=vmem, size = 0x800, scoped, tag = 'operand span for operand 1']
    #allocation1 [shape = 's32[1]{0}', space=sflag, size = 0x4, scoped, tag = 'scoped memory for squeeze.2']
    #allocation2 [shape = 'u8[8192]{0}', space=vmem, size = 0x2000, scoped, tag = 'scoped mem for output reshape']
    #allocation3 [shape = 'u8[4096]{0}', space=vmem, size = 0x1000, scoped, tag = 'scoped mem for input reshape']
    %2 = vsyncpa [#allocation1], 0
    %s4 = ssub.s32 4, 1
    %v5 = vld [vmem:[%s0] sm:%s4]
    %6 = vst [vmem:[#allocation3] sm:%s4] %v5
    %v7 = vld [vmem:[#allocation3] sm:$0x3]
    %vm8 = vcmask 64512
    %9 = vst.msk [vmem:[#allocation2] ss:$8 sm:$0x3] %vm8, %v7
    %v10 = vld [vmem:[#allocation3] sm:$0x3]
    %11 = vrot.lane.b32.xlu0 %v10, 120
    %v12 = vpop.permute.xlu0 %11
    %vm13 = vcmask 64512
    %s14 = scalar_lea.vmem [#allocation2], 1
    %15 = vst.msk [vmem:[%s14] ss:$8 sm:$0x3] %vm13, %v12
    %s17 = ssub.s32 4, 1
    %v18 = vld [vmem:[#allocation2] sm:%s17]
    %s20 = ssub.s32 4, 1
    %21 = vst [vmem:[#allocation0] sm:%s20] %v18
    %s22 = scalar_lea.vmem [#allocation2], 8
    %v23 = vld [vmem:[%s22] sm:%s17]
    %s25 = ssub.s32 4, 1
    %s26 = scalar_lea.vmem [#allocation0], 2
    %27 = vst [vmem:[%s26] sm:%s25] %v23
    %29 = vsyncadd [#allocation1], 0
    %s31 = sshll.u32 [#allocation0], 4
    %s32 = int_to_ptr.vmem [resolvable:$true] %s31
    %s33 = sshll.u32 %s1, 4
    %s34 = int_to_ptr.hbm [resolvable:$true] %s33
    %36 = dma.vmem_to_hbm [thread:$0]  %s32, 64, %s34, [#allocation1]
    %38 = dma.done [#allocation1], 64
    %39 = vsyncpa [#allocation1], 1

// kernel: bidaf_forward.3
$region0: #{bidaf_forward.3}
  #allocation0 [shape = 'u32[]', space=smem, size = 0x4, offset = 0x4, fixed_abs, tag = 'smem constant byte address 0x4 - core index']
  #allocation1 [shape = 'u32[72,128]{1,0:T(1,128)}', space=vmem, size = 0x9000, scoped, tag = 'internal scratch']
  %s0 = inlined_call_operand.vmem [shape: bf16[3,2,128,128], index: 0, kind: input, shape index: {}]
  %s1 = inlined_call_operand.vmem [shape: bf16[2,128,16], index: 1, kind: input, shape index: {}]
  %s2 = inlined_call_operand.vmem [shape: bf16[128,16], index: 2, kind: input, shape index: {}]
  %s3 = inlined_call_operand.vmem [shape: f32[1,16], index: 3, kind: input, shape index: {}]
  %s4 = inlined_call_operand.vmem [shape: bf16[2,32,32], index: 4, kind: input, shape index: {}]
  %s5 = inlined_call_operand.vmem [shape: f32[2,1,32], index: 5, kind: input, shape index: {}]
  %s6 = inlined_call_operand.vmem [shape: bf16[2,32,32], index: 6, kind: input, shape index: {}]
  %s7 = inlined_call_operand.vmem [shape: f32[2,1,32], index: 7, kind: input, shape index: {}]
  %s8 = inlined_call_operand.vmem [shape: bf16[32,128], index: 8, kind: input, shape index: {}]
  %s9 = inlined_call_operand.vmem [shape: f32[1,128], index: 9, kind: input, shape index: {}]
  %s10 = inlined_call_operand.vmem [shape: bf16[2,128,128], index: 10, kind: output, shape index: {}]
  %s11 = sld [smem:[#allocation0]]
  $region114: #{bidaf_forward.3} parent=0
    _
  %s13 = ssub.s32 1, %s11
  %s14 = scalar_select 0, %s13, %s11
  $region1: #{bidaf_forward.3} parent=0
    #allocation2 [shape = 'u8[196608]{0}', space=vmem, size = 0x30000, scoped, tag = 'input window, operand 0']
    loop: start=0, step=1, limit=4
    $region2: #{bidaf_forward.3} parent=1 // loop_pre_header
      _
    $region3: #{bidaf_forward.3} parent=1 // loop_header
      %s16 = sphi 0, %s20
      %p17 = scmp.ge.s32.totalorder %s16, 4
      %s23 = sphi 0, %s35
      %s24 = sphi 0, %s31
      %s25 = sphi 0, %s23
      %s26 = sphi 0, %s24
      %s27 = sphi 0, %s25
      %s28 = sphi 0, %s26
      %s40 = sphi 0, %s42
      %s43 = sphi 0, %s40
      %s44 = sphi 0, %s43
      %s60 = sphi 0, %s44
      %s68 = sphi 0, %s70
      %s71 = sphi 0, %s68
      %s72 = sphi 0, %s71
      %s88 = sphi 0, %s72
      %s92 = sphi 0, %s92
      %s94 = sphi 0, %s92
      %s95 = sphi 0, %s94
      %s109 = sphi 0, %s95
      %s113 = sphi 0, %s113
      %s115 = sphi 0, %s113
      %s116 = sphi 0, %s115
      %s130 = sphi 0, %s116
      %s134 = sphi 0, %s134
      %s136 = sphi 0, %s134
      %s137 = sphi 0, %s136
      %s151 = sphi 0, %s137
      %s155 = sphi 0, %s155
      %s157 = sphi 0, %s155
      %s158 = sphi 0, %s157
      %s172 = sphi 0, %s158
      %s176 = sphi 0, %s176
      %s178 = sphi 0, %s176
      %s179 = sphi 0, %s178
      %s193 = sphi 0, %s179
      %s197 = sphi 0, %s197
      %s199 = sphi 0, %s197
      %s200 = sphi 0, %s199
      %s214 = sphi 0, %s200
      %s218 = sphi 0, %s218
      %s220 = sphi 0, %s218
      %s221 = sphi 0, %s220
      %s235 = sphi 0, %s221
      %s239 = sphi 0, %s239
      %s241 = sphi 0, %s239
      %s242 = sphi 0, %s241
      %s256 = sphi 0, %s242
      %s264 = sphi 0, %s266
      %s267 = sphi 0, %s264
      %s268 = sphi 0, %s267
      %s284 = sphi 0, %s268
    $region4: #{bidaf_forward.3} parent=1 // loop_header_branch
      %19 = sbr.rel (%p17) target = $region8
    $region5: #{bidaf_forward.3} parent=1 // loop_body
      %s21 = ssub.s32 %s16, 1
      %s22 = ssub.s32 %s16, 2
      %s29 = sadd.s32 1, %s24
      %p30 = scmp.ge.s32.totalorder %s29, 1
      %s31 = scalar_select %p30, 0, %s29
      %s32 = sadd.s32 1, %s23
      %s33 = scalar_select %p30, %s32, %s23
      %p34 = scmp.ge.s32.totalorder %s33, 2
      %s35 = scalar_select %p34, 0, %s33
      %s36 = ssub.s32 %s23, %s35
      %s37 = ssub.s32 %s24, %s31
      %s38 = sor.u32 %s36, %s37
      %p39 = scmp.eq.s32.totalorder %s38, 0
      %s41 = sadd.s32 %s40, 1
      %s42 = scalar_select %p39, %s40, %s41
      %p45 = pneg %p39
      %p46 = scmp.eq.s32.totalorder %s16, 1
      %p47 = por %p45, %p46
      %p48 = scmp.ne.s32.totalorder %s40, %s43
      %p49 = scmp.eq.s32.totalorder %s16, 0
      %p50 = por %p48, %p49
      %p51 = scmp.ne.s32.totalorder %s40, %s43
      %p52 = scmp.eq.s32.totalorder %s21, 1
      %p53 = por %p51, %p52
      %p54 = scmp.ne.s32.totalorder %s43, %s44
      %p55 = scmp.eq.s32.totalorder %s21, 0
      %p56 = por %p54, %p55
      %p57 = scmp.ne.s32.totalorder %s43, %s44
      %p58 = scmp.eq.s32.totalorder %s22, 1
      %p59 = por %p57, %p58
      %p61 = scmp.ne.s32.totalorder %s44, %s60
      %p62 = scmp.eq.s32.totalorder %s22, 0
      %p63 = por %p61, %p62
      %s64 = ssub.s32 %s23, %s35
      %s65 = ssub.s32 %s24, %s31
      %s66 = sor.u32 %s64, %s65
      %p67 = scmp.eq.s32.totalorder %s66, 0
      %s69 = sadd.s32 %s68, 1
      %s70 = scalar_select %p67, %s68, %s69
      %p73 = pneg %p67
      %p74 = scmp.eq.s32.totalorder %s16, 1
      %p75 = por %p73, %p74
      %p76 = scmp.ne.s32.totalorder %s68, %s71
      %p77 = scmp.eq.s32.totalorder %s16, 0
      %p78 = por %p76, %p77
      %p79 = scmp.ne.s32.totalorder %s68, %s71
      %p80 = scmp.eq.s32.totalorder %s21, 1
      %p81 = por %p79, %p80
      %p82 = scmp.ne.s32.totalorder %s71, %s72
      %p83 = scmp.eq.s32.totalorder %s21, 0
      %p84 = por %p82, %p83
      %p85 = scmp.ne.s32.totalorder %s71, %s72
      %p86 = scmp.eq.s32.totalorder %s22, 1
      %p87 = por %p85, %p86
      %p89 = scmp.ne.s32.totalorder %s72, %s88
      %p90 = scmp.eq.s32.totalorder %s22, 0
      %p91 = por %p89, %p90
      %s93 = sadd.s32 %s92, 1
      %p96 = scmp.eq.s32.totalorder %s16, 1
      %p97 = scmp.ne.s32.totalorder %s92, %s94
      %p98 = scmp.eq.s32.totalorder %s16, 0
      %p99 = por %p97, %p98
      %p100 = scmp.ne.s32.totalorder %s92, %s94
      %p101 = scmp.eq.s32.totalorder %s21, 1
      %p102 = por %p100, %p101
      %p103 = scmp.ne.s32.totalorder %s94, %s95
      %p104 = scmp.eq.s32.totalorder %s21, 0
      %p105 = por %p103, %p104
      %p106 = scmp.ne.s32.totalorder %s94, %s95
      %p107 = scmp.eq.s32.totalorder %s22, 1
      %p108 = por %p106, %p107
      %p110 = scmp.ne.s32.totalorder %s95, %s109
      %p111 = scmp.eq.s32.totalorder %s22, 0
      %p112 = por %p110, %p111
      %s114 = sadd.s32 %s113, 1
      %p117 = scmp.eq.s32.totalorder %s16, 1
      %p118 = scmp.ne.s32.totalorder %s113, %s115
      %p119 = scmp.eq.s32.totalorder %s16, 0
      %p120 = por %p118, %p119
      %p121 = scmp.ne.s32.totalorder %s113, %s115
      %p122 = scmp.eq.s32.totalorder %s21, 1
      %p123 = por %p121, %p122
      %p124 = scmp.ne.s32.totalorder %s115, %s116
      %p125 = scmp.eq.s32.totalorder %s21, 0
      %p126 = por %p124, %p125
      %p127 = scmp.ne.s32.totalorder %s115, %s116
      %p128 = scmp.eq.s32.totalorder %s22, 1
      %p129 = por %p127, %p128
      %p131 = scmp.ne.s32.totalorder %s116, %s130
      %p132 = scmp.eq.s32.totalorder %s22, 0
      %p133 = por %p131, %p132
      %s135 = sadd.s32 %s134, 1
      %p138 = scmp.eq.s32.totalorder %s16, 1
      %p139 = scmp.ne.s32.totalorder %s134, %s136
      %p140 = scmp.eq.s32.totalorder %s16, 0
      %p141 = por %p139, %p140
      %p142 = scmp.ne.s32.totalorder %s134, %s136
      %p143 = scmp.eq.s32.totalorder %s21, 1
      %p144 = por %p142, %p143
      %p145 = scmp.ne.s32.totalorder %s136, %s137
      %p146 = scmp.eq.s32.totalorder %s21, 0
      %p147 = por %p145, %p146
      %p148 = scmp.ne.s32.totalorder %s136, %s137
      %p149 = scmp.eq.s32.totalorder %s22, 1
      %p150 = por %p148, %p149
      %p152 = scmp.ne.s32.totalorder %s137, %s151
      %p153 = scmp.eq.s32.totalorder %s22, 0
      %p154 = por %p152, %p153
      %s156 = sadd.s32 %s155, 1
      %p159 = scmp.eq.s32.totalorder %s16, 1
      %p160 = scmp.ne.s32.totalorder %s155, %s157
      %p161 = scmp.eq.s32.totalorder %s16, 0
      %p162 = por %p160, %p161
      %p163 = scmp.ne.s32.totalorder %s155, %s157
      %p164 = scmp.eq.s32.totalorder %s21, 1
      %p165 = por %p163, %p164
      %p166 = scmp.ne.s32.totalorder %s157, %s158
      %p167 = scmp.eq.s32.totalorder %s21, 0
      %p168 = por %p166, %p167
      %p169 = scmp.ne.s32.totalorder %s157, %s158
      %p170 = scmp.eq.s32.totalorder %s22, 1
      %p171 = por %p169, %p170
      %p173 = scmp.ne.s32.totalorder %s158, %s172
      %p174 = scmp.eq.s32.totalorder %s22, 0
      %p175 = por %p173, %p174
      %s177 = sadd.s32 %s176, 1
      %p180 = scmp.eq.s32.totalorder %s16, 1
      %p181 = scmp.ne.s32.totalorder %s176, %s178
      %p182 = scmp.eq.s32.totalorder %s16, 0
      %p183 = por %p181, %p182
      %p184 = scmp.ne.s32.totalorder %s176, %s178
      %p185 = scmp.eq.s32.totalorder %s21, 1
      %p186 = por %p184, %p185
      %p187 = scmp.ne.s32.totalorder %s178, %s179
      %p188 = scmp.eq.s32.totalorder %s21, 0
      %p189 = por %p187, %p188
      %p190 = scmp.ne.s32.totalorder %s178, %s179
      %p191 = scmp.eq.s32.totalorder %s22, 1
      %p192 = por %p190, %p191
      %p194 = scmp.ne.s32.totalorder %s179, %s193
      %p195 = scmp.eq.s32.totalorder %s22, 0
      %p196 = por %p194, %p195
      %s198 = sadd.s32 %s197, 1
      %p201 = scmp.eq.s32.totalorder %s16, 1
      %p202 = scmp.ne.s32.totalorder %s197, %s199
      %p203 = scmp.eq.s32.totalorder %s16, 0
      %p204 = por %p202, %p203
      %p205 = scmp.ne.s32.totalorder %s197, %s199
      %p206 = scmp.eq.s32.totalorder %s21, 1
      %p207 = por %p205, %p206
      %p208 = scmp.ne.s32.totalorder %s199, %s200
      %p209 = scmp.eq.s32.totalorder %s21, 0
      %p210 = por %p208, %p209
      %p211 = scmp.ne.s32.totalorder %s199, %s200
      %p212 = scmp.eq.s32.totalorder %s22, 1
      %p213 = por %p211, %p212
      %p215 = scmp.ne.s32.totalorder %s200, %s214
      %p216 = scmp.eq.s32.totalorder %s22, 0
      %p217 = por %p215, %p216
      %s219 = sadd.s32 %s218, 1
      %p222 = scmp.eq.s32.totalorder %s16, 1
      %p223 = scmp.ne.s32.totalorder %s218, %s220
      %p224 = scmp.eq.s32.totalorder %s16, 0
      %p225 = por %p223, %p224
      %p226 = scmp.ne.s32.totalorder %s218, %s220
      %p227 = scmp.eq.s32.totalorder %s21, 1
      %p228 = por %p226, %p227
      %p229 = scmp.ne.s32.totalorder %s220, %s221
      %p230 = scmp.eq.s32.totalorder %s21, 0
      %p231 = por %p229, %p230
      %p232 = scmp.ne.s32.totalorder %s220, %s221
      %p233 = scmp.eq.s32.totalorder %s22, 1
      %p234 = por %p232, %p233
      %p236 = scmp.ne.s32.totalorder %s221, %s235
      %p237 = scmp.eq.s32.totalorder %s22, 0
      %p238 = por %p236, %p237
      %s240 = sadd.s32 %s239, 1
      %p243 = scmp.eq.s32.totalorder %s16, 1
      %p244 = scmp.ne.s32.totalorder %s239, %s241
      %p245 = scmp.eq.s32.totalorder %s16, 0
      %p246 = por %p244, %p245
      %p247 = scmp.ne.s32.totalorder %s239, %s241
      %p248 = scmp.eq.s32.totalorder %s21, 1
      %p249 = por %p247, %p248
      %p250 = scmp.ne.s32.totalorder %s241, %s242
      %p251 = scmp.eq.s32.totalorder %s21, 0
      %p252 = por %p250, %p251
      %p253 = scmp.ne.s32.totalorder %s241, %s242
      %p254 = scmp.eq.s32.totalorder %s22, 1
      %p255 = por %p253, %p254
      %p257 = scmp.ne.s32.totalorder %s242, %s256
      %p258 = scmp.eq.s32.totalorder %s22, 0
      %p259 = por %p257, %p258
      %s260 = ssub.s32 %s23, %s35
      %s261 = ssub.s32 %s24, %s31
      %s262 = sor.u32 %s260, %s261
      %p263 = scmp.eq.s32.totalorder %s262, 0
      %s265 = sadd.s32 %s264, 1
      %s266 = scalar_select %p263, %s264, %s265
      %p269 = pneg %p263
      %p270 = scmp.eq.s32.totalorder %s16, 1
      %p271 = por %p269, %p270
      %p272 = scmp.ne.s32.totalorder %s264, %s267
      %p273 = scmp.eq.s32.totalorder %s16, 0
      %p274 = por %p272, %p273
      %p275 = scmp.ne.s32.totalorder %s264, %s267
      %p276 = scmp.eq.s32.totalorder %s21, 1
      %p277 = por %p275, %p276
      %p278 = scmp.ne.s32.totalorder %s267, %s268
      %p279 = scmp.eq.s32.totalorder %s21, 0
      %p280 = por %p278, %p279
      %p281 = scmp.ne.s32.totalorder %s267, %s268
      %p282 = scmp.eq.s32.totalorder %s22, 1
      %p283 = por %p281, %p282
      %p285 = scmp.ne.s32.totalorder %s268, %s284
      %p286 = scmp.eq.s32.totalorder %s22, 0
      %p287 = por %p285, %p286
      %p288 = scmp.le.s32.totalorder 1, %s16
      %p289 = scmp.lt.s32.totalorder %s16, 3
      %p290 = pnand %p288, %p289
      %p291 = pneg %p290
      // Predicated region
      $region9: #{bidaf_forward.3} parent=5 // pred_check
        _
      $region10: #{bidaf_forward.3} parent=5 // pred_check_branch
        %293 = sbr.rel (%p290) target = $region12
      $region11: #{bidaf_forward.3} parent=5 // pred_region
        %s294 = ssub.s32 %s16, 1
        // Predicated region
        $region13: #{bidaf_forward.3} parent=11 // pred_check
          %p295 = pneg %p105
        $region14: #{bidaf_forward.3} parent=11 // pred_check_branch
          %297 = sbr.rel (%p295) target = $region16
        $region15: #{bidaf_forward.3} parent=11 // pred_region
          _
        $region16: #{bidaf_forward.3} parent=11 // pred_fallthru
          _
        // Predicated region
        $region17: #{bidaf_forward.3} parent=11 // pred_check
          %p298 = pneg %p126
        $region18: #{bidaf_forward.3} parent=11 // pred_check_branch
          %300 = sbr.rel (%p298) target = $region20
        $region19: #{bidaf_forward.3} parent=11 // pred_region
          _
        $region20: #{bidaf_forward.3} parent=11 // pred_fallthru
          _
        // Predicated region
        $region21: #{bidaf_forward.3} parent=11 // pred_check
          %p301 = pneg %p147
        $region22: #{bidaf_forward.3} parent=11 // pred_check_branch
          %303 = sbr.rel (%p301) target = $region24
        $region23: #{bidaf_forward.3} parent=11 // pred_region
          _
        $region24: #{bidaf_forward.3} parent=11 // pred_fallthru
          _
        // Predicated region
        $region25: #{bidaf_forward.3} parent=11 // pred_check
          %p304 = pneg %p168
        $region26: #{bidaf_forward.3} parent=11 // pred_check_branch
          %306 = sbr.rel (%p304) target = $region28
        $region27: #{bidaf_forward.3} parent=11 // pred_region
          _
        $region28: #{bidaf_forward.3} parent=11 // pred_fallthru
          _
        // Predicated region
        $region29: #{bidaf_forward.3} parent=11 // pred_check
          %p307 = pneg %p189
        $region30: #{bidaf_forward.3} parent=11 // pred_check_branch
          %309 = sbr.rel (%p307) target = $region32
        $region31: #{bidaf_forward.3} parent=11 // pred_region
          _
        $region32: #{bidaf_forward.3} parent=11 // pred_fallthru
          _
        // Predicated region
        $region33: #{bidaf_forward.3} parent=11 // pred_check
          %p310 = pneg %p210
        $region34: #{bidaf_forward.3} parent=11 // pred_check_branch
          %312 = sbr.rel (%p310) target = $region36
        $region35: #{bidaf_forward.3} parent=11 // pred_region
          _
        $region36: #{bidaf_forward.3} parent=11 // pred_fallthru
          _
        // Predicated region
        $region37: #{bidaf_forward.3} parent=11 // pred_check
          %p313 = pneg %p231
        $region38: #{bidaf_forward.3} parent=11 // pred_check_branch
          %315 = sbr.rel (%p313) target = $region40
        $region39: #{bidaf_forward.3} parent=11 // pred_region
          _
        $region40: #{bidaf_forward.3} parent=11 // pred_fallthru
          _
        // Predicated region
        $region41: #{bidaf_forward.3} parent=11 // pred_check
          %p316 = pneg %p252
        $region42: #{bidaf_forward.3} parent=11 // pred_check_branch
          %318 = sbr.rel (%p316) target = $region44
        $region43: #{bidaf_forward.3} parent=11 // pred_region
          _
        $region44: #{bidaf_forward.3} parent=11 // pred_fallthru
          _
      $region12: #{bidaf_forward.3} parent=5 // pred_fallthru
        _
      %p319 = scmp.lt.s32.totalorder %s16, 2
      // Predicated region
      $region45: #{bidaf_forward.3} parent=5 // pred_check
        %p320 = pneg %p319
      $region46: #{bidaf_forward.3} parent=5 // pred_check_branch
        %322 = sbr.rel (%p320) target = $region48
      $region47: #{bidaf_forward.3} parent=5 // pred_region
        // Predicated region
        $region49: #{bidaf_forward.3} parent=47 // pred_check
          %p323 = pneg %p50
        $region50: #{bidaf_forward.3} parent=47 // pred_check_branch
          %325 = sbr.rel (%p323) target = $region52
        $region51: #{bidaf_forward.3} parent=47 // pred_region
          %s326 = sand.u32 %s40, 1
          %s327 = sand.u32 %s40, 1
          %s328 = smul.addr %s327, 192
          %s329 = scalar_lea.vmem [#allocation2], %s328
          %s330 = smul.u32 16, %s24
          %s331 = smul.addr %s23, 16
          %s332 = sadd.s32 %s330, %s331
          %s333 = smul.addr %s332, 4
          %s334 = scalar_lea.vmem %s0, %s333
          // Predicated region
          $region53: #{bidaf_forward.3} parent=51 // pred_check
            _
          $region54: #{bidaf_forward.3} parent=51 // pred_check_branch
            %336 = sbr.rel (0) target = $region56
          $region55: #{bidaf_forward.3} parent=51 // pred_region
            // Predicated region
            $region57: #{bidaf_forward.3} parent=55 // pred_check
              _
            $region58: #{bidaf_forward.3} parent=55 // pred_check_branch
              %338 = sbr.rel target = $region60
            $region59: #{bidaf_forward.3} parent=55 // pred_region
              // Predicated region
              $region72: #{bidaf_forward.3} parent=59 // pred_check
                _
              $region73: #{bidaf_forward.3} parent=59 // pred_check_branch
                %448 = sbr.rel (0) target = $region75
              $region74: #{bidaf_forward.3} parent=59 // pred_region
                loop: start=0, step=1, limit=1
                $region76: #{bidaf_forward.3} parent=74 // loop_pre_header
                  _
                $region77: #{bidaf_forward.3} parent=74 // loop_header
                  %s450 = sphi 0, %s454
                  %p451 = scmp.ge.s32.totalorder %s450, 1
                  %s455 = sphi %s334, %s334
                  %s456 = sphi %s329, %s329
                $region78: #{bidaf_forward.3} parent=74 // loop_header_branch
                  %453 = sbr.rel (%p451) target = $region82
                $region79: #{bidaf_forward.3} parent=74 // loop_body
                  _
                $region80: #{bidaf_forward.3} parent=74 // loop_footer
                  %s454 = sadd.s32 1, %s450
                $region81: #{bidaf_forward.3} parent=74 // loop_footer_branch
                  %449 = sbr.rel target = $region77
                $region82: #{bidaf_forward.3} parent=74 // loop_exit
                  _
                %s458 = ssub.s32 16, 1
                loop: start=0, step=1, limit=1
                $region83: #{bidaf_forward.3} parent=74 // loop_pre_header
                  _
                $region84: #{bidaf_forward.3} parent=74 // loop_header
                  %s460 = sphi 0, %s464
                  %p461 = scmp.ge.s32.totalorder %s460, 1
                  %s465 = sphi %s334, %s334
                  %s466 = sphi %s329, %s329
                $region85: #{bidaf_forward.3} parent=74 // loop_header_branch
                  %463 = sbr.rel (%p461) target = $region89
                $region86: #{bidaf_forward.3} parent=74 // loop_body
                  %v467 = vld [vmem:[%s465] sm:%s458]
                  %468 = vst [vmem:[%s466] sm:%s458] %v467
                  %v469 = vld [vmem:[%s465 + $0x4] sm:%s458]
                  %470 = vst [vmem:[%s466 + $0x4] sm:%s458] %v469
                  %v471 = vld [vmem:[%s465 + $0x8] sm:%s458]
                  %472 = vst [vmem:[%s466 + $0x8] sm:%s458] %v471
                  %v473 = vld [vmem:[%s465 + $0xc] sm:%s458]
                  %474 = vst [vmem:[%s466 + $0xc] sm:%s458] %v473
                  %v475 = vld [vmem:[%s465 + $0x10] sm:%s458]
                  %476 = vst [vmem:[%s466 + $0x10] sm:%s458] %v475
                  %v477 = vld [vmem:[%s465 + $0x14] sm:%s458]
                  %478 = vst [vmem:[%s466 + $0x14] sm:%s458] %v477
                  %v479 = vld [vmem:[%s465 + $0x18] sm:%s458]
                  %480 = vst [vmem:[%s466 + $0x18] sm:%s458] %v479
                  %v481 = vld [vmem:[%s465 + $0x1c] sm:%s458]
                  %482 = vst [vmem:[%s466 + $0x1c] sm:%s458] %v481
                  %v483 = vld [vmem:[%s465 + $0x20] sm:%s458]
                  %484 = vst [vmem:[%s466 + $0x20] sm:%s458] %v483
                  %v485 = vld [vmem:[%s465 + $0x24] sm:%s458]
                  %486 = vst [vmem:[%s466 + $0x24] sm:%s458] %v485
                  %v487 = vld [vmem:[%s465 + $0x28] sm:%s458]
                  %488 = vst [vmem:[%s466 + $0x28] sm:%s458] %v487
                  %v489 = vld [vmem:[%s465 + $0x2c] sm:%s458]
                  %490 = vst [vmem:[%s466 + $0x2c] sm:%s458] %v489
                  %v491 = vld [vmem:[%s465 + $0x30] sm:%s458]
                  %492 = vst [vmem:[%s466 + $0x30] sm:%s458] %v491
                  %v493 = vld [vmem:[%s465 + $0x34] sm:%s458]
                  %494 = vst [vmem:[%s466 + $0x34] sm:%s458] %v493
                  %v495 = vld [vmem:[%s465 + $0x38] sm:%s458]
                  %496 = vst [vmem:[%s466 + $0x38] sm:%s458] %v495
                  %v497 = vld [vmem:[%s465 + $0x3c] sm:%s458]
                  %498 = vst [vmem:[%s466 + $0x3c] sm:%s458] %v497
                  %v499 = vld [vmem:[%s465 + $0x80] sm:%s458]
                  %500 = vst [vmem:[%s466 + $0x40] sm:%s458] %v499
                  %v501 = vld [vmem:[%s465 + $0x84] sm:%s458]
                  %502 = vst [vmem:[%s466 + $0x44] sm:%s458] %v501
                  %v503 = vld [vmem:[%s465 + $0x88] sm:%s458]
                  %504 = vst [vmem:[%s466 + $0x48] sm:%s458] %v503
                  %v505 = vld [vmem:[%s465 + $0x8c] sm:%s458]
                  %506 = vst [vmem:[%s466 + $0x4c] sm:%s458] %v505
                  %v507 = vld [vmem:[%s465 + $0x90] sm:%s458]
                  %508 = vst [vmem:[%s466 + $0x50] sm:%s458] %v507
                  %v509 = vld [vmem:[%s465 + $0x94] sm:%s458]
                  %510 = vst [vmem:[%s466 + $0x54] sm:%s458] %v509
                  %v511 = vld [vmem:[%s465 + $0x98] sm:%s458]
                  %512 = vst [vmem:[%s466 + $0x58] sm:%s458] %v511
                  %v513 = vld [vmem:[%s465 + $0x9c] sm:%s458]
                  %514 = vst [vmem:[%s466 + $0x5c] sm:%s458] %v513
                  %v515 = vld [vmem:[%s465 + $0xa0] sm:%s458]
                  %516 = vst [vmem:[%s466 + $0x60] sm:%s458] %v515
                  %v517 = vld [vmem:[%s465 + $0xa4] sm:%s458]
                  %518 = vst [vmem:[%s466 + $0x64] sm:%s458] %v517
                  %v519 = vld [vmem:[%s465 + $0xa8] sm:%s458]
                  %520 = vst [vmem:[%s466 + $0x68] sm:%s458] %v519
                  %v521 = vld [vmem:[%s465 + $0xac] sm:%s458]
                  %522 = vst [vmem:[%s466 + $0x6c] sm:%s458] %v521
                  %v523 = vld [vmem:[%s465 + $0xb0] sm:%s458]
                  %524 = vst [vmem:[%s466 + $0x70] sm:%s458] %v523
                  %v525 = vld [vmem:[%s465 + $0xb4] sm:%s458]
                  %526 = vst [vmem:[%s466 + $0x74] sm:%s458] %v525
                  %v527 = vld [vmem:[%s465 + $0xb8] sm:%s458]
                  %528 = vst [vmem:[%s466 + $0x78] sm:%s458] %v527
                  %v529 = vld [vmem:[%s465 + $0xbc] sm:%s458]
                  %530 = vst [vmem:[%s466 + $0x7c] sm:%s458] %v529
                  %v531 = vld [vmem:[%s465 + $0x100] sm:%s458]
                  %532 = vst [vmem:[%s466 + $0x80] sm:%s458] %v531
                  %v533 = vld [vmem:[%s465 + $0x104] sm:%s458]
                  %534 = vst [vmem:[%s466 + $0x84] sm:%s458] %v533
                  %v535 = vld [vmem:[%s465 + $0x108] sm:%s458]
                  %536 = vst [vmem:[%s466 + $0x88] sm:%s458] %v535
                  %v537 = vld [vmem:[%s465 + $0x10c] sm:%s458]
                  %538 = vst [vmem:[%s466 + $0x8c] sm:%s458] %v537
                  %v539 = vld [vmem:[%s465 + $0x110] sm:%s458]
                  %540 = vst [vmem:[%s466 + $0x90] sm:%s458] %v539
                  %v541 = vld [vmem:[%s465 + $0x114] sm:%s458]
                  %542 = vst [vmem:[%s466 + $0x94] sm:%s458] %v541
                  %v543 = vld [vmem:[%s465 + $0x118] sm:%s458]
                  %544 = vst [vmem:[%s466 + $0x98] sm:%s458] %v543
                  %v545 = vld [vmem:[%s465 + $0x11c] sm:%s458]
                  %546 = vst [vmem:[%s466 + $0x9c] sm:%s458] %v545
                  %v547 = vld [vmem:[%s465 + $0x120] sm:%s458]
                  %548 = vst [vmem:[%s466 + $0xa0] sm:%s458] %v547
                  %v549 = vld [vmem:[%s465 + $0x124] sm:%s458]
                  %550 = vst [vmem:[%s466 + $0xa4] sm:%s458] %v549
                  %v551 = vld [vmem:[%s465 + $0x128] sm:%s458]
                  %552 = vst [vmem:[%s466 + $0xa8] sm:%s458] %v551
                  %v553 = vld [vmem:[%s465 + $0x12c] sm:%s458]
                  %554 = vst [vmem:[%s466 + $0xac] sm:%s458] %v553
                  %v555 = vld [vmem:[%s465 + $0x130] sm:%s458]
                  %556 = vst [vmem:[%s466 + $0xb0] sm:%s458] %v555
                  %v557 = vld [vmem:[%s465 + $0x134] sm:%s458]
                  %558 = vst [vmem:[%s466 + $0xb4] sm:%s458] %v557
                  %v559 = vld [vmem:[%s465 + $0x138] sm:%s458]
                  %560 = vst [vmem:[%s466 + $0xb8] sm:%s458] %v559
                  %v561 = vld [vmem:[%s465 + $0x13c] sm:%s458]
                  %562 = vst [vmem:[%s466 + $0xbc] sm:%s458] %v561
                $region87: #{bidaf_forward.3} parent=74 // loop_footer
                  %s464 = sadd.s32 1, %s460
                $region88: #{bidaf_forward.3} parent=74 // loop_footer_branch
                  %459 = sbr.rel target = $region84
                $region89: #{bidaf_forward.3} parent=74 // loop_exit
                  _
              $region75: #{bidaf_forward.3} parent=59 // pred_fallthru
                _
            $region60: #{bidaf_forward.3} parent=55 // pred_fallthru
              _
            // Predicated region
            $region61: #{bidaf_forward.3} parent=55 // pred_check
              _
            $region62: #{bidaf_forward.3} parent=55 // pred_check_branch
              %340 = sbr.rel (0) target = $region64
            $region63: #{bidaf_forward.3} parent=55 // pred_region
              %s342 = ssub.s32 16, 1
              loop: start=0, step=1, limit=1
              $region65: #{bidaf_forward.3} parent=63 // loop_pre_header
                _
              $region66: #{bidaf_forward.3} parent=63 // loop_header
                %s344 = sphi 0, %s348
                %p345 = scmp.ge.s32.totalorder %s344, 1
                %s349 = sphi %s334, %s334
                %s350 = sphi %s329, %s329
              $region67: #{bidaf_forward.3} parent=63 // loop_header_branch
                %347 = sbr.rel (%p345) target = $region71
              $region68: #{bidaf_forward.3} parent=63 // loop_body
                %v351 = vld [vmem:[%s349] sm:%s342]
                %352 = vst [vmem:[%s350] sm:%s342] %v351
                %v353 = vld [vmem:[%s349 + $0x4] sm:%s342]
                %354 = vst [vmem:[%s350 + $0x4] sm:%s342] %v353
                %v355 = vld [vmem:[%s349 + $0x8] sm:%s342]
                %356 = vst [vmem:[%s350 + $0x8] sm:%s342] %v355
                %v357 = vld [vmem:[%s349 + $0xc] sm:%s342]
                %358 = vst [vmem:[%s350 + $0xc] sm:%s342] %v357
                %v359 = vld [vmem:[%s349 + $0x10] sm:%s342]
                %360 = vst [vmem:[%s350 + $0x10] sm:%s342] %v359
                %v361 = vld [vmem:[%s349 + $0x14] sm:%s342]
                %362 = vst [vmem:[%s350 + $0x14] sm:%s342] %v361
                %v363 = vld [vmem:[%s349 + $0x18] sm:%s342]
                %364 = vst [vmem:[%s350 + $0x18] sm:%s342] %v363
                %v365 = vld [vmem:[%s349 + $0x1c] sm:%s342]
                %366 = vst [vmem:[%s350 + $0x1c] sm:%s342] %v365
                %v367 = vld [vmem:[%s349 + $0x20] sm:%s342]
                %368 = vst [vmem:[%s350 + $0x20] sm:%s342] %v367
                %v369 = vld [vmem:[%s349 + $0x24] sm:%s342]
                %370 = vst [vmem:[%s350 + $0x24] sm:%s342] %v369
                %v371 = vld [vmem:[%s349 + $0x28] sm:%s342]
                %372 = vst [vmem:[%s350 + $0x28] sm:%s342] %v371
                %v373 = vld [vmem:[%s349 + $0x2c] sm:%s342]
                %374 = vst [vmem:[%s350 + $0x2c] sm:%s342] %v373
                %v375 = vld [vmem:[%s349 + $0x30] sm:%s342]
                %376 = vst [vmem:[%s350 + $0x30] sm:%s342] %v375
                %v377 = vld [vmem:[%s349 + $0x34] sm:%s342]
                %378 = vst [vmem:[%s350 + $0x34] sm:%s342] %v377
                %v379 = vld [vmem:[%s349 + $0x38] sm:%s342]
                %380 = vst [vmem:[%s350 + $0x38] sm:%s342] %v379
                %v381 = vld [vmem:[%s349 + $0x3c] sm:%s342]
                %382 = vst [vmem:[%s350 + $0x3c] sm:%s342] %v381
                %v383 = vld [vmem:[%s349 + $0x80] sm:%s342]
                %384 = vst [vmem:[%s350 + $0x40] sm:%s342] %v383
                %v385 = vld [vmem:[%s349 + $0x84] sm:%s342]
                %386 = vst [vmem:[%s350 + $0x44] sm:%s342] %v385
                %v387 = vld [vmem:[%s349 + $0x88] sm:%s342]
                %388 = vst [vmem:[%s350 + $0x48] sm:%s342] %v387
                %v389 = vld [vmem:[%s349 + $0x8c] sm:%s342]
                %390 = vst [vmem:[%s350 + $0x4c] sm:%s342] %v389
                %v391 = vld [vmem:[%s349 + $0x90] sm:%s342]
                %392 = vst [vmem:[%s350 + $0x50] sm:%s342] %v391
                %v393 = vld [vmem:[%s349 + $0x94] sm:%s342]
                %394 = vst [vmem:[%s350 + $0x54] sm:%s342] %v393
                %v395 = vld [vmem:[%s349 + $0x98] sm:%s342]
                %396 = vst [vmem:[%s350 + $0x58] sm:%s342] %v395
                %v397 = vld [vmem:[%s349 + $0x9c] sm:%s342]
                %398 = vst [vmem:[%s350 + $0x5c] sm:%s342] %v397
                %v399 = vld [vmem:[%s349 + $0xa0] sm:%s342]
                %400 = vst [vmem:[%s350 + $0x60] sm:%s342] %v399
                %v401 = vld [vmem:[%s349 + $0xa4] sm:%s342]
                %402 = vst [vmem:[%s350 + $0x64] sm:%s342] %v401
                %v403 = vld [vmem:[%s349 + $0xa8] sm:%s342]
                %404 = vst [vmem:[%s350 + $0x68] sm:%s342] %v403
                %v405 = vld [vmem:[%s349 + $0xac] sm:%s342]
                %406 = vst [vmem:[%s350 + $0x6c] sm:%s342] %v405
                %v407 = vld [vmem:[%s349 + $0xb0] sm:%s342]
                %408 = vst [vmem:[%s350 + $0x70] sm:%s342] %v407
                %v409 = vld [vmem:[%s349 + $0xb4] sm:%s342]
                %410 = vst [vmem:[%s350 + $0x74] sm:%s342] %v409
                %v411 = vld [vmem:[%s349 + $0xb8] sm:%s342]
                %412 = vst [vmem:[%s350 + $0x78] sm:%s342] %v411
                %v413 = vld [vmem:[%s349 + $0xbc] sm:%s342]
                %414 = vst [vmem:[%s350 + $0x7c] sm:%s342] %v413
                %v415 = vld [vmem:[%s349 + $0x100] sm:%s342]
                %416 = vst [vmem:[%s350 + $0x80] sm:%s342] %v415
                %v417 = vld [vmem:[%s349 + $0x104] sm:%s342]
                %418 = vst [vmem:[%s350 + $0x84] sm:%s342] %v417
                %v419 = vld [vmem:[%s349 + $0x108] sm:%s342]
                %420 = vst [vmem:[%s350 + $0x88] sm:%s342] %v419
                %v421 = vld [vmem:[%s349 + $0x10c] sm:%s342]
                %422 = vst [vmem:[%s350 + $0x8c] sm:%s342] %v421
                %v423 = vld [vmem:[%s349 + $0x110] sm:%s342]
                %424 = vst [vmem:[%s350 + $0x90] sm:%s342] %v423
                %v425 = vld [vmem:[%s349 + $0x114] sm:%s342]
                %426 = vst [vmem:[%s350 + $0x94] sm:%s342] %v425
                %v427 = vld [vmem:[%s349 + $0x118] sm:%s342]
                %428 = vst [vmem:[%s350 + $0x98] sm:%s342] %v427
                %v429 = vld [vmem:[%s349 + $0x11c] sm:%s342]
                %430 = vst [vmem:[%s350 + $0x9c] sm:%s342] %v429
                %v431 = vld [vmem:[%s349 + $0x120] sm:%s342]
                %432 = vst [vmem:[%s350 + $0xa0] sm:%s342] %v431
                %v433 = vld [vmem:[%s349 + $0x124] sm:%s342]
                %434 = vst [vmem:[%s350 + $0xa4] sm:%s342] %v433
                %v435 = vld [vmem:[%s349 + $0x128] sm:%s342]
                %436 = vst [vmem:[%s350 + $0xa8] sm:%s342] %v435
                %v437 = vld [vmem:[%s349 + $0x12c] sm:%s342]
                %438 = vst [vmem:[%s350 + $0xac] sm:%s342] %v437
                %v439 = vld [vmem:[%s349 + $0x130] sm:%s342]
                %440 = vst [vmem:[%s350 + $0xb0] sm:%s342] %v439
                %v441 = vld [vmem:[%s349 + $0x134] sm:%s342]
                %442 = vst [vmem:[%s350 + $0xb4] sm:%s342] %v441
                %v443 = vld [vmem:[%s349 + $0x138] sm:%s342]
                %444 = vst [vmem:[%s350 + $0xb8] sm:%s342] %v443
                %v445 = vld [vmem:[%s349 + $0x13c] sm:%s342]
                %446 = vst [vmem:[%s350 + $0xbc] sm:%s342] %v445
              $region69: #{bidaf_forward.3} parent=63 // loop_footer
                %s348 = sadd.s32 1, %s344
              $region70: #{bidaf_forward.3} parent=63 // loop_footer_branch
                %343 = sbr.rel target = $region66
              $region71: #{bidaf_forward.3} parent=63 // loop_exit
                _
            $region64: #{bidaf_forward.3} parent=55 // pred_fallthru
              _
          $region56: #{bidaf_forward.3} parent=51 // pred_fallthru
            _
          %563 = vnop
        $region52: #{bidaf_forward.3} parent=47 // pred_fallthru
          _
        // Predicated region
        $region90: #{bidaf_forward.3} parent=47 // pred_check
          %p564 = pneg %p78
        $region91: #{bidaf_forward.3} parent=47 // pred_check_branch
          %566 = sbr.rel (%p564) target = $region93
        $region92: #{bidaf_forward.3} parent=47 // pred_region
          %s567 = smul.u32 16, %s24
          %p568 = scmp.lt.s32.totalorder %s23, 1
          %s569 = scalar_select %p568, %s23, 1
          %p570 = scmp.lt.s32.totalorder %s567, 15
          %s571 = scalar_select %p570, %s567, 15
          %s572 = smul.addr %s569, 16
          %s573 = sadd.s32 %s571, %s572
          %s574 = smul.addr %s573, 4
          %s575 = scalar_lea.vmem %s1, %s574
          %s576 = smul.u32 16, %s24
        $region93: #{bidaf_forward.3} parent=47 // pred_fallthru
          _
      $region48: #{bidaf_forward.3} parent=5 // pred_fallthru
        _
      %p577 = scmp.le.s32.totalorder 1, %s16
      %p578 = scmp.lt.s32.totalorder %s16, 3
      %p579 = pnand %p577, %p578
      %p580 = pneg %p579
      // Predicated region
      $region94: #{bidaf_forward.3} parent=5 // pred_check
        _
      $region95: #{bidaf_forward.3} parent=5 // pred_check_branch
        %582 = sbr.rel (%p579) target = $region97
      $region96: #{bidaf_forward.3} parent=5 // pred_region
        %s583 = ssub.s32 %s16, 1
        %s584 = sand.u32 %s43, 1
        %s585 = sand.u32 %s43, 1
        %s586 = smul.addr %s585, 192
        %s587 = scalar_lea.vmem [#allocation2], %s586
        // Predicated region
        $region98: #{bidaf_forward.3} parent=96 // pred_check
          %p588 = pneg %p56
        $region99: #{bidaf_forward.3} parent=96 // pred_check_branch
          %590 = sbr.rel (%p588) target = $region101
        $region100: #{bidaf_forward.3} parent=96 // pred_region
          _
        $region101: #{bidaf_forward.3} parent=96 // pred_fallthru
          _
        %s591 = sand.u32 %s43, 1
        %s592 = sand.u32 %s43, 1
        %s593 = smul.addr %s592, 192
        %s594 = scalar_lea.vmem [#allocation2], %s593
        %p595 = pneg %p56
        %p596 = pneg %p53
        %s597 = smul.u32 16, %s26
        %p598 = scmp.lt.s32.totalorder %s25, 1
        %s599 = scalar_select %p598, %s25, 1
        %p600 = scmp.lt.s32.totalorder %s597, 15
        %s601 = scalar_select %p600, %s597, 15
        %s602 = smul.addr %s599, 16
        %s603 = sadd.s32 %s601, %s602
        %s604 = smul.addr %s603, 4
        %s605 = scalar_lea.vmem %s1, %s604
        %p606 = pneg %p84
        %p607 = pneg %p81
        %p608 = pneg %p105
        %p609 = pneg %p102
        %p610 = pneg %p126
        %p611 = pneg %p123
        %p612 = pneg %p147
        %p613 = pneg %p144
        %p614 = pneg %p168
        %p615 = pneg %p165
        %p616 = pneg %p189
        %p617 = pneg %p186
        %p618 = pneg %p210
        %p619 = pneg %p207
        %p620 = pneg %p231
        %p621 = pneg %p228
        %p622 = pneg %p252
        %p623 = pneg %p249
        %p624 = pneg %p280
        %p625 = pneg %p277
        %s626 = smul.u32 16, %s26
        %p627 = scmp.lt.s32.totalorder %s25, 1
        %s628 = scalar_select %p627, %s25, 1
        %p629 = scmp.lt.s32.totalorder %s626, 15
        %s630 = scalar_select %p629, %s626, 15
        %s631 = smul.addr %s628, 16
        %s632 = sadd.s32 %s630, %s631
        %s633 = smul.addr %s632, 4
        %s634 = scalar_lea.vmem %s10, %s633
        %s635 = smul.u32 16, %s26
        %s636 = smul.u32 16, %s26
        %p637 = scmp.lt.s32.totalorder %s25, 1
        %s638 = scalar_select %p637, %s25, 1
        %p639 = scmp.lt.s32.totalorder %s636, 15
        %s640 = scalar_select %p639, %s636, 15
        %s641 = smul.addr %s638, 16
        %s642 = sadd.s32 %s640, %s641
        %s643 = smul.addr %s642, 4
        %s644 = scalar_lea.vmem %s1, %s643
        %s645 = smul.u32 16, %s26
        %s646 = smul.u32 16, %s26
        %p647 = scmp.lt.s32.totalorder %s25, 1
        %s648 = scalar_select %p647, %s25, 1
        %p649 = scmp.lt.s32.totalorder %s646, 15
        %s650 = scalar_select %p649, %s646, 15
        %s651 = smul.addr %s648, 16
        %s652 = sadd.s32 %s650, %s651
        %s653 = smul.addr %s652, 4
        %s654 = scalar_lea.vmem %s10, %s653
        %s655 = smul.u32 16, %s26
        %v657 = vld [vmem:[%s587] sm:$0xf]
        %v658 = vld [vmem:[%s587 + $0x4] sm:$0xf]
        %v659 = vld [vmem:[%s587 + $0x8] sm:$0xf]
        %v660 = vld [vmem:[%s587 + $0xc] sm:$0xf]
        %v661 = vld [vmem:[%s587 + $0x10] sm:$0xf]
        %v662 = vld [vmem:[%s587 + $0x14] sm:$0xf]
        %v663 = vld [vmem:[%s587 + $0x18] sm:$0xf]
        %v664 = vld [vmem:[%s587 + $0x1c] sm:$0xf]
        %v665 = vld [vmem:[%s587 + $0x20] sm:$0xf]
        %v666 = vld [vmem:[%s587 + $0x24] sm:$0xf]
        %v667 = vld [vmem:[%s587 + $0x28] sm:$0xf]
        %v668 = vld [vmem:[%s587 + $0x2c] sm:$0xf]
        %v669 = vld [vmem:[%s587 + $0x30] sm:$0xf]
        %v670 = vld [vmem:[%s587 + $0x34] sm:$0xf]
        %v671 = vld [vmem:[%s587 + $0x38] sm:$0xf]
        %v672 = vld [vmem:[%s587 + $0x3c] sm:$0xf]
        %v673 = vld [vmem:[%s2] sm:$0xf]
        %v674 = vld [vmem:[%s2 + $0x4] sm:$0xf]
        %v675 = vld [vmem:[%s2 + $0x8] sm:$0xf]
        %v676 = vld [vmem:[%s2 + $0xc] sm:$0xf]
        %v677 = vld [vmem:[%s2 + $0x10] sm:$0xf]
        %v678 = vld [vmem:[%s2 + $0x14] sm:$0xf]
        %v679 = vld [vmem:[%s2 + $0x18] sm:$0xf]
        %v680 = vld [vmem:[%s2 + $0x1c] sm:$0xf]
        %v681 = vld [vmem:[%s2 + $0x20] sm:$0xf]
        %v682 = vld [vmem:[%s2 + $0x24] sm:$0xf]
        %v683 = vld [vmem:[%s2 + $0x28] sm:$0xf]
        %v684 = vld [vmem:[%s2 + $0x2c] sm:$0xf]
        %v685 = vld [vmem:[%s2 + $0x30] sm:$0xf]
        %v686 = vld [vmem:[%s2 + $0x34] sm:$0xf]
        %v687 = vld [vmem:[%s2 + $0x38] sm:$0xf]
        %v688 = vld [vmem:[%s2 + $0x3c] sm:$0xf]
        %v689 = vld [vmem:[%s3] sm:$0x1]
        %v691 = vperm.slane %v689, 0
        %v709 = vunpack.c.l.b16 %v657
        %v710 = vunpack.c.l.b16 %v658
        %v711 = vunpack.c.l.b16 %v659
        %v712 = vunpack.c.l.b16 %v660
        %v713 = vunpack.c.l.b16 %v661
        %v714 = vunpack.c.l.b16 %v662
        %v715 = vunpack.c.l.b16 %v663
        %v716 = vunpack.c.l.b16 %v664
        %v717 = vunpack.c.l.b16 %v665
        %v718 = vunpack.c.l.b16 %v666
        %v719 = vunpack.c.l.b16 %v667
        %v720 = vunpack.c.l.b16 %v668
        %v721 = vunpack.c.l.b16 %v669
        %v722 = vunpack.c.l.b16 %v670
        %v723 = vunpack.c.l.b16 %v671
        %v724 = vunpack.c.l.b16 %v672
        %v725 = vpack.c.b16 %v710, %v709
        %v726 = vpack.c.b16 %v712, %v711
        %v727 = vpack.c.b16 %v714, %v713
        %v728 = vpack.c.b16 %v716, %v715
        %v729 = vpack.c.b16 %v718, %v717
        %v730 = vpack.c.b16 %v720, %v719
        %v731 = vpack.c.b16 %v722, %v721
        %v732 = vpack.c.b16 %v724, %v723
        %v757 = vunpack.c.l.b16 %v673
        %v758 = vunpack.c.l.b16 %v674
        %v759 = vunpack.c.l.b16 %v675
        %v760 = vunpack.c.l.b16 %v676
        %v761 = vunpack.c.l.b16 %v677
        %v762 = vunpack.c.l.b16 %v678
        %v763 = vunpack.c.l.b16 %v679
        %v764 = vunpack.c.l.b16 %v680
        %v765 = vunpack.c.l.b16 %v681
        %v766 = vunpack.c.l.b16 %v682
        %v767 = vunpack.c.l.b16 %v683
        %v768 = vunpack.c.l.b16 %v684
        %v769 = vunpack.c.l.b16 %v685
        %v770 = vunpack.c.l.b16 %v686
        %v771 = vunpack.c.l.b16 %v687
        %v772 = vunpack.c.l.b16 %v688
        %v773 = vpack.c.b16 %v758, %v757
        %v774 = vpack.c.b16 %v760, %v759
        %v775 = vpack.c.b16 %v762, %v761
        %v776 = vpack.c.b16 %v764, %v763
        %v777 = vpack.c.b16 %v766, %v765
        %v778 = vpack.c.b16 %v768, %v767
        %v779 = vpack.c.b16 %v770, %v769
        %v780 = vpack.c.b16 %v772, %v771
        %789 = vmatpush.bf16.msra.mxu0 %v780
        %790 = vmatpush.bf16.msra.mxu0 %v779
        %791 = vmatpush.bf16.msra.mxu0 %v778
        %792 = vmatpush.bf16.msra.mxu0 %v777
        %793 = vmatpush.bf16.msra.mxu0 %v776
        %794 = vmatpush.bf16.msra.mxu0 %v775
        %795 = vmatpush.bf16.msra.mxu0 %v774
        %796 = vmatpush.bf16.msra.mxu0 %v773
        %797 = vmatmul.bf16.gmra.mxu0 %v725
        %v798 = vpop.f32.mrf.mxu0
        %v799 = vadd.f32 %v691, %v798
        %v800 = vpop.f32.mrf.mxu0
        %v801 = vadd.f32 %v691, %v800
        %802 = vmatmul.bf16.gmra.mxu0 %v726
        %v803 = vpop.f32.mrf.mxu0
        %v804 = vadd.f32 %v691, %v803
        %v805 = vpop.f32.mrf.mxu0
        %v806 = vadd.f32 %v691, %v805
        %807 = vmatmul.bf16.gmra.mxu0 %v727
        %v808 = vpop.f32.mrf.mxu0
        %v809 = vadd.f32 %v691, %v808
        %v810 = vpop.f32.mrf.mxu0
        %v811 = vadd.f32 %v691, %v810
        %812 = vmatmul.bf16.gmra.mxu0 %v728
        %v813 = vpop.f32.mrf.mxu0
        %v814 = vadd.f32 %v691, %v813
        %v815 = vpop.f32.mrf.mxu0
        %v816 = vadd.f32 %v691, %v815
        %817 = vmatmul.bf16.gmra.mxu0 %v729
        %v818 = vpop.f32.mrf.mxu0
        %v819 = vadd.f32 %v691, %v818
        %v820 = vpop.f32.mrf.mxu0
        %v821 = vadd.f32 %v691, %v820
        %822 = vmatmul.bf16.gmra.mxu0 %v730
        %v823 = vpop.f32.mrf.mxu0
        %v824 = vadd.f32 %v691, %v823
        %v825 = vpop.f32.mrf.mxu0
        %v826 = vadd.f32 %v691, %v825
        %827 = vmatmul.bf16.gmra.mxu0 %v731
        %v828 = vpop.f32.mrf.mxu0
        %v829 = vadd.f32 %v691, %v828
        %v830 = vpop.f32.mrf.mxu0
        %v831 = vadd.f32 %v691, %v830
        %832 = vmatmul.bf16.gmra.mxu0 %v732
        %v833 = vpop.f32.mrf.mxu0
        %v834 = vadd.f32 %v691, %v833
        %v835 = vpop.f32.mrf.mxu0
        %v836 = vadd.f32 %v691, %v835
        %837 = vdwg.mxu0
        %v838 = vmax.f32 %v799, 0.0
        %v839 = vmax.f32 %v801, 0.0
        %v840 = vmax.f32 %v804, 0.0
        %v841 = vmax.f32 %v806, 0.0
        %v842 = vmax.f32 %v809, 0.0
        %v843 = vmax.f32 %v811, 0.0
        %v844 = vmax.f32 %v814, 0.0
        %v845 = vmax.f32 %v816, 0.0
        %v846 = vmax.f32 %v819, 0.0
        %v847 = vmax.f32 %v821, 0.0
        %v848 = vmax.f32 %v824, 0.0
        %v849 = vmax.f32 %v826, 0.0
        %v850 = vmax.f32 %v829, 0.0
        %v851 = vmax.f32 %v831, 0.0
        %v852 = vmax.f32 %v834, 0.0
        %v853 = vmax.f32 %v836, 0.0
        %s854 = scalar_lea.vmem %s587, 64 [#allocation2]
        %v855 = vld [vmem:[%s854] sm:$0xf]
        %v856 = vld [vmem:[%s854 + $0x4] sm:$0xf]
        %v857 = vld [vmem:[%s854 + $0x8] sm:$0xf]
        %v858 = vld [vmem:[%s854 + $0xc] sm:$0xf]
        %v859 = vld [vmem:[%s854 + $0x10] sm:$0xf]
        %v860 = vld [vmem:[%s854 + $0x14] sm:$0xf]
        %v861 = vld [vmem:[%s854 + $0x18] sm:$0xf]
        %v862 = vld [vmem:[%s854 + $0x1c] sm:$0xf]
        %v863 = vld [vmem:[%s854 + $0x20] sm:$0xf]
        %v864 = vld [vmem:[%s854 + $0x24] sm:$0xf]
        %v865 = vld [vmem:[%s854 + $0x28] sm:$0xf]
        %v866 = vld [vmem:[%s854 + $0x2c] sm:$0xf]
        %v867 = vld [vmem:[%s854 + $0x30] sm:$0xf]
        %v868 = vld [vmem:[%s854 + $0x34] sm:$0xf]
        %v869 = vld [vmem:[%s854 + $0x38] sm:$0xf]
        %v870 = vld [vmem:[%s854 + $0x3c] sm:$0xf]
        %v887 = vunpack.c.l.b16 %v855
        %v888 = vunpack.c.l.b16 %v856
        %v889 = vunpack.c.l.b16 %v857
        %v890 = vunpack.c.l.b16 %v858
        %v891 = vunpack.c.l.b16 %v859
        %v892 = vunpack.c.l.b16 %v860
        %v893 = vunpack.c.l.b16 %v861
        %v894 = vunpack.c.l.b16 %v862
        %v895 = vunpack.c.l.b16 %v863
        %v896 = vunpack.c.l.b16 %v864
        %v897 = vunpack.c.l.b16 %v865
        %v898 = vunpack.c.l.b16 %v866
        %v899 = vunpack.c.l.b16 %v867
        %v900 = vunpack.c.l.b16 %v868
        %v901 = vunpack.c.l.b16 %v869
        %v902 = vunpack.c.l.b16 %v870
        %v903 = vpack.c.b16 %v888, %v887
        %v904 = vpack.c.b16 %v890, %v889
        %v905 = vpack.c.b16 %v892, %v891
        %v906 = vpack.c.b16 %v894, %v893
        %v907 = vpack.c.b16 %v896, %v895
        %v908 = vpack.c.b16 %v898, %v897
        %v909 = vpack.c.b16 %v900, %v899
        %v910 = vpack.c.b16 %v902, %v901
        %919 = vmatpush.bf16.msra.mxu0 %v780
        %920 = vmatpush.bf16.msra.mxu0 %v779
        %921 = vmatpush.bf16.msra.mxu0 %v778
        %922 = vmatpush.bf16.msra.mxu0 %v777
        %923 = vmatpush.bf16.msra.mxu0 %v776
        %924 = vmatpush.bf16.msra.mxu0 %v775
        %925 = vmatpush.bf16.msra.mxu0 %v774
        %926 = vmatpush.bf16.msra.mxu0 %v773
        %927 = vmatmul.bf16.gmra.mxu0 %v903
        %v928 = vpop.f32.mrf.mxu0
        %v929 = vadd.f32 %v691, %v928
        %v930 = vpop.f32.mrf.mxu0
        %v931 = vadd.f32 %v691, %v930
        %932 = vmatmul.bf16.gmra.mxu0 %v904
        %v933 = vpop.f32.mrf.mxu0
        %v934 = vadd.f32 %v691, %v933
        %v935 = vpop.f32.mrf.mxu0
        %v936 = vadd.f32 %v691, %v935
        %937 = vmatmul.bf16.gmra.mxu0 %v905
        %v938 = vpop.f32.mrf.mxu0
        %v939 = vadd.f32 %v691, %v938
        %v940 = vpop.f32.mrf.mxu0
        %v941 = vadd.f32 %v691, %v940
        %942 = vmatmul.bf16.gmra.mxu0 %v906
        %v943 = vpop.f32.mrf.mxu0
        %v944 = vadd.f32 %v691, %v943
        %v945 = vpop.f32.mrf.mxu0
        %v946 = vadd.f32 %v691, %v945
        %947 = vmatmul.bf16.gmra.mxu0 %v907
        %v948 = vpop.f32.mrf.mxu0
        %v949 = vadd.f32 %v691, %v948
        %v950 = vpop.f32.mrf.mxu0
        %v951 = vadd.f32 %v691, %v950
        %952 = vmatmul.bf16.gmra.mxu0 %v908
        %v953 = vpop.f32.mrf.mxu0
        %v954 = vadd.f32 %v691, %v953
        %v955 = vpop.f32.mrf.mxu0
        %v956 = vadd.f32 %v691, %v955
        %957 = vmatmul.bf16.gmra.mxu0 %v909
        %v958 = vpop.f32.mrf.mxu0
        %v959 = vadd.f32 %v691, %v958
        %v960 = vpop.f32.mrf.mxu0
        %v961 = vadd.f32 %v691, %v960
        %962 = vmatmul.bf16.gmra.mxu0 %v910
        %v963 = vpop.f32.mrf.mxu0
        %v964 = vadd.f32 %v691, %v963
        %v965 = vpop.f32.mrf.mxu0
        %v966 = vadd.f32 %v691, %v965
        %967 = vdwg.mxu0
        %v968 = vmax.f32 %v929, 0.0
        %v969 = vmax.f32 %v931, 0.0
        %v970 = vmax.f32 %v934, 0.0
        %v971 = vmax.f32 %v936, 0.0
        %v972 = vmax.f32 %v939, 0.0
        %v973 = vmax.f32 %v941, 0.0
        %v974 = vmax.f32 %v944, 0.0
        %v975 = vmax.f32 %v946, 0.0
        %v976 = vmax.f32 %v949, 0.0
        %v977 = vmax.f32 %v951, 0.0
        %v978 = vmax.f32 %v954, 0.0
        %v979 = vmax.f32 %v956, 0.0
        %v980 = vmax.f32 %v959, 0.0
        %v981 = vmax.f32 %v961, 0.0
        %v982 = vmax.f32 %v964, 0.0
        %v983 = vmax.f32 %v966, 0.0
        %v984 = vmax.f32 %v838, %v968
        %v985 = vmax.f32 %v839, %v969
        %v986 = vmax.f32 %v840, %v970
        %v987 = vmax.f32 %v841, %v971
        %v988 = vmax.f32 %v842, %v972
        %v989 = vmax.f32 %v843, %v973
        %v990 = vmax.f32 %v844, %v974
        %v991 = vmax.f32 %v845, %v975
        %v992 = vmax.f32 %v846, %v976
        %v993 = vmax.f32 %v847, %v977
        %v994 = vmax.f32 %v848, %v978
        %v995 = vmax.f32 %v849, %v979
        %v996 = vmax.f32 %v850, %v980
        %v997 = vmax.f32 %v851, %v981
        %v998 = vmax.f32 %v852, %v982
        %v999 = vmax.f32 %v853, %v983
        %s1000 = scalar_lea.vmem %s587, 128 [#allocation2]
        %v1001 = vld [vmem:[%s1000] sm:$0xf]
        %v1002 = vld [vmem:[%s1000 + $0x4] sm:$0xf]
        %v1003 = vld [vmem:[%s1000 + $0x8] sm:$0xf]
        %v1004 = vld [vmem:[%s1000 + $0xc] sm:$0xf]
        %v1005 = vld [vmem:[%s1000 + $0x10] sm:$0xf]
        %v1006 = vld [vmem:[%s1000 + $0x14] sm:$0xf]
        %v1007 = vld [vmem:[%s1000 + $0x18] sm:$0xf]
        %v1008 = vld [vmem:[%s1000 + $0x1c] sm:$0xf]
        %v1009 = vld [vmem:[%s1000 + $0x20] sm:$0xf]
        %v1010 = vld [vmem:[%s1000 + $0x24] sm:$0xf]
        %v1011 = vld [vmem:[%s1000 + $0x28] sm:$0xf]
        %v1012 = vld [vmem:[%s1000 + $0x2c] sm:$0xf]
        %v1013 = vld [vmem:[%s1000 + $0x30] sm:$0xf]
        %v1014 = vld [vmem:[%s1000 + $0x34] sm:$0xf]
        %v1015 = vld [vmem:[%s1000 + $0x38] sm:$0xf]
        %v1016 = vld [vmem:[%s1000 + $0x3c] sm:$0xf]
        %v1033 = vunpack.c.l.b16 %v1001
        %v1034 = vunpack.c.l.b16 %v1002
        %v1035 = vunpack.c.l.b16 %v1003
        %v1036 = vunpack.c.l.b16 %v1004
        %v1037 = vunpack.c.l.b16 %v1005
        %v1038 = vunpack.c.l.b16 %v1006
        %v1039 = vunpack.c.l.b16 %v1007
        %v1040 = vunpack.c.l.b16 %v1008
        %v1041 = vunpack.c.l.b16 %v1009
        %v1042 = vunpack.c.l.b16 %v1010
        %v1043 = vunpack.c.l.b16 %v1011
        %v1044 = vunpack.c.l.b16 %v1012
        %v1045 = vunpack.c.l.b16 %v1013
        %v1046 = vunpack.c.l.b16 %v1014
        %v1047 = vunpack.c.l.b16 %v1015
        %v1048 = vunpack.c.l.b16 %v1016
        %v1049 = vpack.c.b16 %v1034, %v1033
        %v1050 = vpack.c.b16 %v1036, %v1035
        %v1051 = vpack.c.b16 %v1038, %v1037
        %v1052 = vpack.c.b16 %v1040, %v1039
        %v1053 = vpack.c.b16 %v1042, %v1041
        %v1054 = vpack.c.b16 %v1044, %v1043
        %v1055 = vpack.c.b16 %v1046, %v1045
        %v1056 = vpack.c.b16 %v1048, %v1047
        %1065 = vmatpush.bf16.msra.mxu0 %v780
        %1066 = vmatpush.bf16.msra.mxu0 %v779
        %1067 = vmatpush.bf16.msra.mxu0 %v778
        %1068 = vmatpush.bf16.msra.mxu0 %v777
        %1069 = vmatpush.bf16.msra.mxu0 %v776
        %1070 = vmatpush.bf16.msra.mxu0 %v775
        %1071 = vmatpush.bf16.msra.mxu0 %v774
        %1072 = vmatpush.bf16.msra.mxu0 %v773
        %1073 = vmatmul.bf16.gmra.mxu0 %v1049
        %v1074 = vpop.f32.mrf.mxu0
        %v1075 = vadd.f32 %v691, %v1074
        %v1076 = vpop.f32.mrf.mxu0
        %v1077 = vadd.f32 %v691, %v1076
        %1078 = vmatmul.bf16.gmra.mxu0 %v1050
        %v1079 = vpop.f32.mrf.mxu0
        %v1080 = vadd.f32 %v691, %v1079
        %v1081 = vpop.f32.mrf.mxu0
        %v1082 = vadd.f32 %v691, %v1081
        %1083 = vmatmul.bf16.gmra.mxu0 %v1051
        %v1084 = vpop.f32.mrf.mxu0
        %v1085 = vadd.f32 %v691, %v1084
        %v1086 = vpop.f32.mrf.mxu0
        %v1087 = vadd.f32 %v691, %v1086
        %1088 = vmatmul.bf16.gmra.mxu0 %v1052
        %v1089 = vpop.f32.mrf.mxu0
        %v1090 = vadd.f32 %v691, %v1089
        %v1091 = vpop.f32.mrf.mxu0
        %v1092 = vadd.f32 %v691, %v1091
        %1093 = vmatmul.bf16.gmra.mxu0 %v1053
        %v1094 = vpop.f32.mrf.mxu0
        %v1095 = vadd.f32 %v691, %v1094
        %v1096 = vpop.f32.mrf.mxu0
        %v1097 = vadd.f32 %v691, %v1096
        %1098 = vmatmul.bf16.gmra.mxu0 %v1054
        %v1099 = vpop.f32.mrf.mxu0
        %v1100 = vadd.f32 %v691, %v1099
        %v1101 = vpop.f32.mrf.mxu0
        %v1102 = vadd.f32 %v691, %v1101
        %1103 = vmatmul.bf16.gmra.mxu0 %v1055
        %v1104 = vpop.f32.mrf.mxu0
        %v1105 = vadd.f32 %v691, %v1104
        %v1106 = vpop.f32.mrf.mxu0
        %v1107 = vadd.f32 %v691, %v1106
        %1108 = vmatmul.bf16.gmra.mxu0 %v1056
        %v1109 = vpop.f32.mrf.mxu0
        %v1110 = vadd.f32 %v691, %v1109
        %v1111 = vpop.f32.mrf.mxu0
        %v1112 = vadd.f32 %v691, %v1111
        %1113 = vdwg.mxu0
        %v1114 = vmax.f32 %v1075, 0.0
        %v1115 = vmax.f32 %v1077, 0.0
        %v1116 = vmax.f32 %v1080, 0.0
        %v1117 = vmax.f32 %v1082, 0.0
        %v1118 = vmax.f32 %v1085, 0.0
        %v1119 = vmax.f32 %v1087, 0.0
        %v1120 = vmax.f32 %v1090, 0.0
        %v1121 = vmax.f32 %v1092, 0.0
        %v1122 = vmax.f32 %v1095, 0.0
        %v1123 = vmax.f32 %v1097, 0.0
        %v1124 = vmax.f32 %v1100, 0.0
        %v1125 = vmax.f32 %v1102, 0.0
        %v1126 = vmax.f32 %v1105, 0.0
        %v1127 = vmax.f32 %v1107, 0.0
        %v1128 = vmax.f32 %v1110, 0.0
        %v1129 = vmax.f32 %v1112, 0.0
        %v1130 = vmax.f32 %v984, %v1114
        %v1131 = vmax.f32 %v985, %v1115
        %v1132 = vmax.f32 %v986, %v1116
        %v1133 = vmax.f32 %v987, %v1117
        %v1134 = vmax.f32 %v988, %v1118
        %v1135 = vmax.f32 %v989, %v1119
        %v1136 = vmax.f32 %v990, %v1120
        %v1137 = vmax.f32 %v991, %v1121
        %v1138 = vmax.f32 %v992, %v1122
        %v1139 = vmax.f32 %v993, %v1123
        %v1140 = vmax.f32 %v994, %v1124
        %v1141 = vmax.f32 %v995, %v1125
        %v1142 = vmax.f32 %v996, %v1126
        %v1143 = vmax.f32 %v997, %v1127
        %v1144 = vmax.f32 %v998, %v1128
        %v1145 = vmax.f32 %v999, %v1129
        %v1146 = vld [vmem:[%s644] sm:$0xf]
        %v1147 = vld [vmem:[%s644 + $0x4] sm:$0xf]
        %v1148 = vld [vmem:[%s644 + $0x8] sm:$0xf]
        %v1149 = vld [vmem:[%s644 + $0xc] sm:$0xf]
        %v1150 = vld [vmem:[%s644 + $0x10] sm:$0xf]
        %v1151 = vld [vmem:[%s644 + $0x14] sm:$0xf]
        %v1152 = vld [vmem:[%s644 + $0x18] sm:$0xf]
        %v1153 = vld [vmem:[%s644 + $0x1c] sm:$0xf]
        %v1154 = vld [vmem:[%s644 + $0x20] sm:$0xf]
        %v1155 = vld [vmem:[%s644 + $0x24] sm:$0xf]
        %v1156 = vld [vmem:[%s644 + $0x28] sm:$0xf]
        %v1157 = vld [vmem:[%s644 + $0x2c] sm:$0xf]
        %v1158 = vld [vmem:[%s644 + $0x30] sm:$0xf]
        %v1159 = vld [vmem:[%s644 + $0x34] sm:$0xf]
        %v1160 = vld [vmem:[%s644 + $0x38] sm:$0xf]
        %v1161 = vld [vmem:[%s644 + $0x3c] sm:$0xf]
        %v1162 = vunpack.c.l.bf16 %v1146
        %v1163 = vunpack.c.l.bf16 %v1147
        %v1164 = vunpack.c.l.bf16 %v1148
        %v1165 = vunpack.c.l.bf16 %v1149
        %v1166 = vunpack.c.l.bf16 %v1150
        %v1167 = vunpack.c.l.bf16 %v1151
        %v1168 = vunpack.c.l.bf16 %v1152
        %v1169 = vunpack.c.l.bf16 %v1153
        %v1170 = vunpack.c.l.bf16 %v1154
        %v1171 = vunpack.c.l.bf16 %v1155
        %v1172 = vunpack.c.l.bf16 %v1156
        %v1173 = vunpack.c.l.bf16 %v1157
        %v1174 = vunpack.c.l.bf16 %v1158
        %v1175 = vunpack.c.l.bf16 %v1159
        %v1176 = vunpack.c.l.bf16 %v1160
        %v1177 = vunpack.c.l.bf16 %v1161
        %1194 = vrot.lane.b32.xlu0 %v1162, 16
        %v1195 = vpop.permute.xlu0 %1194
        %1196 = vrot.lane.b32.xlu0 %v1163, 16
        %v1197 = vpop.permute.xlu0 %1196
        %1198 = vrot.lane.b32.xlu0 %v1164, 16
        %v1199 = vpop.permute.xlu0 %1198
        %1200 = vrot.lane.b32.xlu0 %v1165, 16
        %v1201 = vpop.permute.xlu0 %1200
        %1202 = vrot.lane.b32.xlu0 %v1166, 16
        %v1203 = vpop.permute.xlu0 %1202
        %1204 = vrot.lane.b32.xlu0 %v1167, 16
        %v1205 = vpop.permute.xlu0 %1204
        %1206 = vrot.lane.b32.xlu0 %v1168, 16
        %v1207 = vpop.permute.xlu0 %1206
        %1208 = vrot.lane.b32.xlu0 %v1169, 16
        %v1209 = vpop.permute.xlu0 %1208
        %1210 = vrot.lane.b32.xlu0 %v1170, 16
        %v1211 = vpop.permute.xlu0 %1210
        %1212 = vrot.lane.b32.xlu0 %v1171, 16
        %v1213 = vpop.permute.xlu0 %1212
        %1214 = vrot.lane.b32.xlu0 %v1172, 16
        %v1215 = vpop.permute.xlu0 %1214
        %1216 = vrot.lane.b32.xlu0 %v1173, 16
        %v1217 = vpop.permute.xlu0 %1216
        %1218 = vrot.lane.b32.xlu0 %v1174, 16
        %v1219 = vpop.permute.xlu0 %1218
        %1220 = vrot.lane.b32.xlu0 %v1175, 16
        %v1221 = vpop.permute.xlu0 %1220
        %1222 = vrot.lane.b32.xlu0 %v1176, 16
        %v1223 = vpop.permute.xlu0 %1222
        %1224 = vrot.lane.b32.xlu0 %v1177, 16
        %v1225 = vpop.permute.xlu0 %1224
        %vm1242 = vcmask 130048
        %v1243 = vsel %vm1242, %v1130, %v1195
        %v1244 = vsel %vm1242, %v1131, %v1197
        %v1245 = vsel %vm1242, %v1132, %v1199
        %v1246 = vsel %vm1242, %v1133, %v1201
        %v1247 = vsel %vm1242, %v1134, %v1203
        %v1248 = vsel %vm1242, %v1135, %v1205
        %v1249 = vsel %vm1242, %v1136, %v1207
        %v1250 = vsel %vm1242, %v1137, %v1209
        %v1251 = vsel %vm1242, %v1138, %v1211
        %v1252 = vsel %vm1242, %v1139, %v1213
        %v1253 = vsel %vm1242, %v1140, %v1215
        %v1254 = vsel %vm1242, %v1141, %v1217
        %v1255 = vsel %vm1242, %v1142, %v1219
        %v1256 = vsel %vm1242, %v1143, %v1221
        %v1257 = vsel %vm1242, %v1144, %v1223
        %v1258 = vsel %vm1242, %v1145, %v1225
        %v1259 = vpack.c.bf16 %v1244, %v1243
        %v1260 = vpack.c.bf16 %v1246, %v1245
        %v1261 = vpack.c.bf16 %v1248, %v1247
        %v1262 = vpack.c.bf16 %v1250, %v1249
        %v1263 = vpack.c.bf16 %v1252, %v1251
        %v1264 = vpack.c.bf16 %v1254, %v1253
        %v1265 = vpack.c.bf16 %v1256, %v1255
        %v1266 = vpack.c.bf16 %v1258, %v1257
        %v1267 = vld [vmem:[%s4] sm:$0xf]
        %v1268 = vld [vmem:[%s4 + $0x4] sm:$0xf]
        %v1269 = vld [vmem:[%s4 + $0x8] sm:$0xf]
        %v1270 = vld [vmem:[%s4 + $0xc] sm:$0xf]
        %v1271 = vld [vmem:[%s5] sm:$0x1]
        %v1273 = vperm.slane %v1271, 0
        %v1279 = vunpack.c.l.b16 %v1267
        %v1280 = vunpack.c.l.b16 %v1268
        %v1281 = vunpack.c.l.b16 %v1269
        %v1282 = vunpack.c.l.b16 %v1270
        %v1283 = vpack.c.b16 %v1280, %v1279
        %v1284 = vpack.c.b16 %v1282, %v1281
        %vm1287 = vcmask 261120
        %v1289 = vsel %vm1287, %v1259, 0
        %v1292 = vsel %vm1287, %v1260, 0
        %v1295 = vsel %vm1287, %v1261, 0
        %v1298 = vsel %vm1287, %v1262, 0
        %v1301 = vsel %vm1287, %v1263, 0
        %v1304 = vsel %vm1287, %v1264, 0
        %v1307 = vsel %vm1287, %v1265, 0
        %v1310 = vsel %vm1287, %v1266, 0
        %1312 = vmatpush.bf16.msra.mxu0 0
        %1313 = vmatpush.bf16.msra.mxu0 0
        %1314 = vmatpush.bf16.msra.mxu0 0
        %1315 = vmatpush.bf16.msra.mxu0 0
        %1316 = vmatpush.bf16.msra.mxu0 0
        %1317 = vmatpush.bf16.msra.mxu0 0
        %1318 = vmatpush.bf16.msra.mxu0 %v1284
        %1319 = vmatpush.bf16.msra.mxu0 %v1283
        %1320 = vmatmul.bf16.gmra.mxu0 %v1289
        %v1321 = vpop.f32.mrf.mxu0
        %v1322 = vadd.f32 %v1273, %v1321
        %v1323 = vpop.f32.mrf.mxu0
        %v1324 = vadd.f32 %v1273, %v1323
        %1325 = vmatmul.bf16.gmra.mxu0 %v1292
        %v1326 = vpop.f32.mrf.mxu0
        %v1327 = vadd.f32 %v1273, %v1326
        %v1328 = vpop.f32.mrf.mxu0
        %v1329 = vadd.f32 %v1273, %v1328
        %1330 = vmatmul.bf16.gmra.mxu0 %v1295
        %v1331 = vpop.f32.mrf.mxu0
        %v1332 = vadd.f32 %v1273, %v1331
        %v1333 = vpop.f32.mrf.mxu0
        %v1334 = vadd.f32 %v1273, %v1333
        %1335 = vmatmul.bf16.gmra.mxu0 %v1298
        %v1336 = vpop.f32.mrf.mxu0
        %v1337 = vadd.f32 %v1273, %v1336
        %v1338 = vpop.f32.mrf.mxu0
        %v1339 = vadd.f32 %v1273, %v1338
        %1340 = vmatmul.bf16.gmra.mxu0 %v1301
        %v1341 = vpop.f32.mrf.mxu0
        %v1342 = vadd.f32 %v1273, %v1341
        %v1343 = vpop.f32.mrf.mxu0
        %v1344 = vadd.f32 %v1273, %v1343
        %1345 = vmatmul.bf16.gmra.mxu0 %v1304
        %v1346 = vpop.f32.mrf.mxu0
        %v1347 = vadd.f32 %v1273, %v1346
        %v1348 = vpop.f32.mrf.mxu0
        %v1349 = vadd.f32 %v1273, %v1348
        %1350 = vmatmul.bf16.gmra.mxu0 %v1307
        %v1351 = vpop.f32.mrf.mxu0
        %v1352 = vadd.f32 %v1273, %v1351
        %v1353 = vpop.f32.mrf.mxu0
        %v1354 = vadd.f32 %v1273, %v1353
        %1355 = vmatmul.bf16.gmra.mxu0 %v1310
        %v1356 = vpop.f32.mrf.mxu0
        %v1357 = vadd.f32 %v1273, %v1356
        %v1358 = vpop.f32.mrf.mxu0
        %v1359 = vadd.f32 %v1273, %v1358
        %1360 = vdwg.mxu0
        %v1361 = vxor.u32 %v1322, 2147483648
        %v1362 = vxor.u32 %v1324, 2147483648
        %v1363 = vxor.u32 %v1327, 2147483648
        %v1364 = vxor.u32 %v1329, 2147483648
        %v1365 = vxor.u32 %v1332, 2147483648
        %v1366 = vxor.u32 %v1334, 2147483648
        %v1367 = vxor.u32 %v1337, 2147483648
        %v1368 = vxor.u32 %v1339, 2147483648
        %v1369 = vxor.u32 %v1342, 2147483648
        %v1370 = vxor.u32 %v1344, 2147483648
        %v1371 = vxor.u32 %v1347, 2147483648
        %v1372 = vxor.u32 %v1349, 2147483648
        %v1373 = vxor.u32 %v1352, 2147483648
        %v1374 = vxor.u32 %v1354, 2147483648
        %v1375 = vxor.u32 %v1357, 2147483648
        %v1376 = vxor.u32 %v1359, 2147483648
        %v1377 = vmul.f32 %v1361, 1.442695
        %v1378 = vpow.pop %v1377
        %v1379 = vmul.f32 %v1362, 1.442695
        %v1380 = vpow.pop %v1379
        %v1381 = vmul.f32 %v1363, 1.442695
        %v1382 = vpow.pop %v1381
        %v1383 = vmul.f32 %v1364, 1.442695
        %v1384 = vpow.pop %v1383
        %v1385 = vmul.f32 %v1365, 1.442695
        %v1386 = vpow.pop %v1385
        %v1387 = vmul.f32 %v1366, 1.442695
        %v1388 = vpow.pop %v1387
        %v1389 = vmul.f32 %v1367, 1.442695
        %v1390 = vpow.pop %v1389
        %v1391 = vmul.f32 %v1368, 1.442695
        %v1392 = vpow.pop %v1391
        %v1393 = vmul.f32 %v1369, 1.442695
        %v1394 = vpow.pop %v1393
        %v1395 = vmul.f32 %v1370, 1.442695
        %v1396 = vpow.pop %v1395
        %v1397 = vmul.f32 %v1371, 1.442695
        %v1398 = vpow.pop %v1397
        %v1399 = vmul.f32 %v1372, 1.442695
        %v1400 = vpow.pop %v1399
        %v1401 = vmul.f32 %v1373, 1.442695
        %v1402 = vpow.pop %v1401
        %v1403 = vmul.f32 %v1374, 1.442695
        %v1404 = vpow.pop %v1403
        %v1405 = vmul.f32 %v1375, 1.442695
        %v1406 = vpow.pop %v1405
        %v1407 = vmul.f32 %v1376, 1.442695
        %v1408 = vpow.pop %v1407
        %v1409 = vadd.f32 %v1378, 1.0
        %v1410 = vadd.f32 %v1380, 1.0
        %v1411 = vadd.f32 %v1382, 1.0
        %v1412 = vadd.f32 %v1384, 1.0
        %v1413 = vadd.f32 %v1386, 1.0
        %v1414 = vadd.f32 %v1388, 1.0
        %v1415 = vadd.f32 %v1390, 1.0
        %v1416 = vadd.f32 %v1392, 1.0
        %v1417 = vadd.f32 %v1394, 1.0
        %v1418 = vadd.f32 %v1396, 1.0
        %v1419 = vadd.f32 %v1398, 1.0
        %v1420 = vadd.f32 %v1400, 1.0
        %v1421 = vadd.f32 %v1402, 1.0
        %v1422 = vadd.f32 %v1404, 1.0
        %v1423 = vadd.f32 %v1406, 1.0
        %v1424 = vadd.f32 %v1408, 1.0
        %v1425 = vrcp.pop %v1409
        %v1426 = vmul.f32 %v1409, %v1425
        %v1427 = vsub.f32 1.0, %v1426
        %v1428 = vmul.f32 %v1425, %v1427
        %v1429 = vadd.f32 %v1425, %v1428
        %vm1430 = vweird.f32 %v1409
        %vm1431 = vweird.f32 %v1425
        %vm1432 = vmor %vm1430, %vm1431
        %v1433 = vsel %vm1432, %v1425, %v1429
        %v1434 = vand.u32 2147483647, %v1409
        %vm1435 = vcmp.eq.f32.partialorder %v1434, 8.507059e+37
        %v1436 = vand.u32 %v1409, 2147483648
        %v1437 = vor.u32 1.1754944e-38, %v1436
        %v1438 = vsel %vm1435, %v1437, %v1433
        %v1439 = vmul.f32 1.0, %v1438
        %v1440 = vrcp.pop %v1410
        %v1441 = vmul.f32 %v1410, %v1440
        %v1442 = vsub.f32 1.0, %v1441
        %v1443 = vmul.f32 %v1440, %v1442
        %v1444 = vadd.f32 %v1440, %v1443
        %vm1445 = vweird.f32 %v1410
        %vm1446 = vweird.f32 %v1440
        %vm1447 = vmor %vm1445, %vm1446
        %v1448 = vsel %vm1447, %v1440, %v1444
        %v1449 = vand.u32 2147483647, %v1410
        %vm1450 = vcmp.eq.f32.partialorder %v1449, 8.507059e+37
        %v1451 = vand.u32 %v1410, 2147483648
        %v1452 = vor.u32 1.1754944e-38, %v1451
        %v1453 = vsel %vm1450, %v1452, %v1448
        %v1454 = vmul.f32 1.0, %v1453
        %v1455 = vrcp.pop %v1411
        %v1456 = vmul.f32 %v1411, %v1455
        %v1457 = vsub.f32 1.0, %v1456
        %v1458 = vmul.f32 %v1455, %v1457
        %v1459 = vadd.f32 %v1455, %v1458
        %vm1460 = vweird.f32 %v1411
        %vm1461 = vweird.f32 %v1455
        %vm1462 = vmor %vm1460, %vm1461
        %v1463 = vsel %vm1462, %v1455, %v1459
        %v1464 = vand.u32 2147483647, %v1411
        %vm1465 = vcmp.eq.f32.partialorder %v1464, 8.507059e+37
        %v1466 = vand.u32 %v1411, 2147483648
        %v1467 = vor.u32 1.1754944e-38, %v1466
        %v1468 = vsel %vm1465, %v1467, %v1463
        %v1469 = vmul.f32 1.0, %v1468
        %v1470 = vrcp.pop %v1412
        %v1471 = vmul.f32 %v1412, %v1470
        %v1472 = vsub.f32 1.0, %v1471
        %v1473 = vmul.f32 %v1470, %v1472
        %v1474 = vadd.f32 %v1470, %v1473
        %vm1475 = vweird.f32 %v1412
        %vm1476 = vweird.f32 %v1470
        %vm1477 = vmor %vm1475, %vm1476
        %v1478 = vsel %vm1477, %v1470, %v1474
        %v1479 = vand.u32 2147483647, %v1412
        %vm1480 = vcmp.eq.f32.partialorder %v1479, 8.507059e+37
        %v1481 = vand.u32 %v1412, 2147483648
        %v1482 = vor.u32 1.1754944e-38, %v1481
        %v1483 = vsel %vm1480, %v1482, %v1478
        %v1484 = vmul.f32 1.0, %v1483
        %v1485 = vrcp.pop %v1413
        %v1486 = vmul.f32 %v1413, %v1485
        %v1487 = vsub.f32 1.0, %v1486
        %v1488 = vmul.f32 %v1485, %v1487
        %v1489 = vadd.f32 %v1485, %v1488
        %vm1490 = vweird.f32 %v1413
        %vm1491 = vweird.f32 %v1485
        %vm1492 = vmor %vm1490, %vm1491
        %v1493 = vsel %vm1492, %v1485, %v1489
        %v1494 = vand.u32 2147483647, %v1413
        %vm1495 = vcmp.eq.f32.partialorder %v1494, 8.507059e+37
        %v1496 = vand.u32 %v1413, 2147483648
        %v1497 = vor.u32 1.1754944e-38, %v1496
        %v1498 = vsel %vm1495, %v1497, %v1493
        %v1499 = vmul.f32 1.0, %v1498
        %v1500 = vrcp.pop %v1414
        %v1501 = vmul.f32 %v1414, %v1500
        %v1502 = vsub.f32 1.0, %v1501
        %v1503 = vmul.f32 %v1500, %v1502
        %v1504 = vadd.f32 %v1500, %v1503
        %vm1505 = vweird.f32 %v1414
        %vm1506 = vweird.f32 %v1500
        %vm1507 = vmor %vm1505, %vm1506
        %v1508 = vsel %vm1507, %v1500, %v1504
        %v1509 = vand.u32 2147483647, %v1414
        %vm1510 = vcmp.eq.f32.partialorder %v1509, 8.507059e+37
        %v1511 = vand.u32 %v1414, 2147483648
        %v1512 = vor.u32 1.1754944e-38, %v1511
        %v1513 = vsel %vm1510, %v1512, %v1508
        %v1514 = vmul.f32 1.0, %v1513
        %v1515 = vrcp.pop %v1415
        %v1516 = vmul.f32 %v1415, %v1515
        %v1517 = vsub.f32 1.0, %v1516
        %v1518 = vmul.f32 %v1515, %v1517
        %v1519 = vadd.f32 %v1515, %v1518
        %vm1520 = vweird.f32 %v1415
        %vm1521 = vweird.f32 %v1515
        %vm1522 = vmor %vm1520, %vm1521
        %v1523 = vsel %vm1522, %v1515, %v1519
        %v1524 = vand.u32 2147483647, %v1415
        %vm1525 = vcmp.eq.f32.partialorder %v1524, 8.507059e+37
        %v1526 = vand.u32 %v1415, 2147483648
        %v1527 = vor.u32 1.1754944e-38, %v1526
        %v1528 = vsel %vm1525, %v1527, %v1523
        %v1529 = vmul.f32 1.0, %v1528
        %v1530 = vrcp.pop %v1416
        %v1531 = vmul.f32 %v1416, %v1530
        %v1532 = vsub.f32 1.0, %v1531
        %v1533 = vmul.f32 %v1530, %v1532
        %v1534 = vadd.f32 %v1530, %v1533
        %vm1535 = vweird.f32 %v1416
        %vm1536 = vweird.f32 %v1530
        %vm1537 = vmor %vm1535, %vm1536
        %v1538 = vsel %vm1537, %v1530, %v1534
        %v1539 = vand.u32 2147483647, %v1416
        %vm1540 = vcmp.eq.f32.partialorder %v1539, 8.507059e+37
        %v1541 = vand.u32 %v1416, 2147483648
        %v1542 = vor.u32 1.1754944e-38, %v1541
        %v1543 = vsel %vm1540, %v1542, %v1538
        %v1544 = vmul.f32 1.0, %v1543
        %v1545 = vrcp.pop %v1417
        %v1546 = vmul.f32 %v1417, %v1545
        %v1547 = vsub.f32 1.0, %v1546
        %v1548 = vmul.f32 %v1545, %v1547
        %v1549 = vadd.f32 %v1545, %v1548
        %vm1550 = vweird.f32 %v1417
        %vm1551 = vweird.f32 %v1545
        %vm1552 = vmor %vm1550, %vm1551
        %v1553 = vsel %vm1552, %v1545, %v1549
        %v1554 = vand.u32 2147483647, %v1417
        %vm1555 = vcmp.eq.f32.partialorder %v1554, 8.507059e+37
        %v1556 = vand.u32 %v1417, 2147483648
        %v1557 = vor.u32 1.1754944e-38, %v1556
        %v1558 = vsel %vm1555, %v1557, %v1553
        %v1559 = vmul.f32 1.0, %v1558
        %v1560 = vrcp.pop %v1418
        %v1561 = vmul.f32 %v1418, %v1560
        %v1562 = vsub.f32 1.0, %v1561
        %v1563 = vmul.f32 %v1560, %v1562
        %v1564 = vadd.f32 %v1560, %v1563
        %vm1565 = vweird.f32 %v1418
        %vm1566 = vweird.f32 %v1560
        %vm1567 = vmor %vm1565, %vm1566
        %v1568 = vsel %vm1567, %v1560, %v1564
        %v1569 = vand.u32 2147483647, %v1418
        %vm1570 = vcmp.eq.f32.partialorder %v1569, 8.507059e+37
        %v1571 = vand.u32 %v1418, 2147483648
        %v1572 = vor.u32 1.1754944e-38, %v1571
        %v1573 = vsel %vm1570, %v1572, %v1568
        %v1574 = vmul.f32 1.0, %v1573
        %v1575 = vrcp.pop %v1419
        %v1576 = vmul.f32 %v1419, %v1575
        %v1577 = vsub.f32 1.0, %v1576
        %v1578 = vmul.f32 %v1575, %v1577
        %v1579 = vadd.f32 %v1575, %v1578
        %vm1580 = vweird.f32 %v1419
        %vm1581 = vweird.f32 %v1575
        %vm1582 = vmor %vm1580, %vm1581
        %v1583 = vsel %vm1582, %v1575, %v1579
        %v1584 = vand.u32 2147483647, %v1419
        %vm1585 = vcmp.eq.f32.partialorder %v1584, 8.507059e+37
        %v1586 = vand.u32 %v1419, 2147483648
        %v1587 = vor.u32 1.1754944e-38, %v1586
        %v1588 = vsel %vm1585, %v1587, %v1583
        %v1589 = vmul.f32 1.0, %v1588
        %v1590 = vrcp.pop %v1420
        %v1591 = vmul.f32 %v1420, %v1590
        %v1592 = vsub.f32 1.0, %v1591
        %v1593 = vmul.f32 %v1590, %v1592
        %v1594 = vadd.f32 %v1590, %v1593
        %vm1595 = vweird.f32 %v1420
        %vm1596 = vweird.f32 %v1590
        %vm1597 = vmor %vm1595, %vm1596
        %v1598 = vsel %vm1597, %v1590, %v1594
        %v1599 = vand.u32 2147483647, %v1420
        %vm1600 = vcmp.eq.f32.partialorder %v1599, 8.507059e+37
        %v1601 = vand.u32 %v1420, 2147483648
        %v1602 = vor.u32 1.1754944e-38, %v1601
        %v1603 = vsel %vm1600, %v1602, %v1598
        %v1604 = vmul.f32 1.0, %v1603
        %v1605 = vrcp.pop %v1421
        %v1606 = vmul.f32 %v1421, %v1605
        %v1607 = vsub.f32 1.0, %v1606
        %v1608 = vmul.f32 %v1605, %v1607
        %v1609 = vadd.f32 %v1605, %v1608
        %vm1610 = vweird.f32 %v1421
        %vm1611 = vweird.f32 %v1605
        %vm1612 = vmor %vm1610, %vm1611
        %v1613 = vsel %vm1612, %v1605, %v1609
        %v1614 = vand.u32 2147483647, %v1421
        %vm1615 = vcmp.eq.f32.partialorder %v1614, 8.507059e+37
        %v1616 = vand.u32 %v1421, 2147483648
        %v1617 = vor.u32 1.1754944e-38, %v1616
        %v1618 = vsel %vm1615, %v1617, %v1613
        %v1619 = vmul.f32 1.0, %v1618
        %v1620 = vrcp.pop %v1422
        %v1621 = vmul.f32 %v1422, %v1620
        %v1622 = vsub.f32 1.0, %v1621
        %v1623 = vmul.f32 %v1620, %v1622
        %v1624 = vadd.f32 %v1620, %v1623
        %vm1625 = vweird.f32 %v1422
        %vm1626 = vweird.f32 %v1620
        %vm1627 = vmor %vm1625, %vm1626
        %v1628 = vsel %vm1627, %v1620, %v1624
        %v1629 = vand.u32 2147483647, %v1422
        %vm1630 = vcmp.eq.f32.partialorder %v1629, 8.507059e+37
        %v1631 = vand.u32 %v1422, 2147483648
        %v1632 = vor.u32 1.1754944e-38, %v1631
        %v1633 = vsel %vm1630, %v1632, %v1628
        %v1634 = vmul.f32 1.0, %v1633
        %v1635 = vrcp.pop %v1423
        %v1636 = vmul.f32 %v1423, %v1635
        %v1637 = vsub.f32 1.0, %v1636
        %v1638 = vmul.f32 %v1635, %v1637
        %v1639 = vadd.f32 %v1635, %v1638
        %vm1640 = vweird.f32 %v1423
        %vm1641 = vweird.f32 %v1635
        %vm1642 = vmor %vm1640, %vm1641
        %v1643 = vsel %vm1642, %v1635, %v1639
        %v1644 = vand.u32 2147483647, %v1423
        %vm1645 = vcmp.eq.f32.partialorder %v1644, 8.507059e+37
        %v1646 = vand.u32 %v1423, 2147483648
        %v1647 = vor.u32 1.1754944e-38, %v1646
        %v1648 = vsel %vm1645, %v1647, %v1643
        %v1649 = vmul.f32 1.0, %v1648
        %v1650 = vrcp.pop %v1424
        %v1651 = vmul.f32 %v1424, %v1650
        %v1652 = vsub.f32 1.0, %v1651
        %v1653 = vmul.f32 %v1650, %v1652
        %v1654 = vadd.f32 %v1650, %v1653
        %vm1655 = vweird.f32 %v1424
        %vm1656 = vweird.f32 %v1650
        %vm1657 = vmor %vm1655, %vm1656
        %v1658 = vsel %vm1657, %v1650, %v1654
        %v1659 = vand.u32 2147483647, %v1424
        %vm1660 = vcmp.eq.f32.partialorder %v1659, 8.507059e+37
        %v1661 = vand.u32 %v1424, 2147483648
        %v1662 = vor.u32 1.1754944e-38, %v1661
        %v1663 = vsel %vm1660, %v1662, %v1658
        %v1664 = vmul.f32 1.0, %v1663
        %v1665 = vld [vmem:[%s6] sm:$0xf]
        %v1666 = vld [vmem:[%s6 + $0x4] sm:$0xf]
        %v1667 = vld [vmem:[%s6 + $0x8] sm:$0xf]
        %v1668 = vld [vmem:[%s6 + $0xc] sm:$0xf]
        %v1669 = vld [vmem:[%s7] sm:$0x1]
        %v1671 = vperm.slane %v1669, 0
        %v1677 = vunpack.c.l.b16 %v1665
        %v1678 = vunpack.c.l.b16 %v1666
        %v1679 = vunpack.c.l.b16 %v1667
        %v1680 = vunpack.c.l.b16 %v1668
        %v1681 = vpack.c.b16 %v1678, %v1677
        %v1682 = vpack.c.b16 %v1680, %v1679
        %1685 = vmatpush.bf16.msra.mxu0 0
        %1686 = vmatpush.bf16.msra.mxu0 0
        %1687 = vmatpush.bf16.msra.mxu0 0
        %1688 = vmatpush.bf16.msra.mxu0 0
        %1689 = vmatpush.bf16.msra.mxu0 0
        %1690 = vmatpush.bf16.msra.mxu0 0
        %1691 = vmatpush.bf16.msra.mxu0 %v1682
        %1692 = vmatpush.bf16.msra.mxu0 %v1681
        %1693 = vmatmul.bf16.gmra.mxu0 %v1289
        %v1694 = vpop.f32.mrf.mxu0
        %v1695 = vadd.f32 %v1671, %v1694
        %v1696 = vpop.f32.mrf.mxu0
        %v1697 = vadd.f32 %v1671, %v1696
        %1698 = vmatmul.bf16.gmra.mxu0 %v1292
        %v1699 = vpop.f32.mrf.mxu0
        %v1700 = vadd.f32 %v1671, %v1699
        %v1701 = vpop.f32.mrf.mxu0
        %v1702 = vadd.f32 %v1671, %v1701
        %1703 = vmatmul.bf16.gmra.mxu0 %v1295
        %v1704 = vpop.f32.mrf.mxu0
        %v1705 = vadd.f32 %v1671, %v1704
        %v1706 = vpop.f32.mrf.mxu0
        %v1707 = vadd.f32 %v1671, %v1706
        %1708 = vmatmul.bf16.gmra.mxu0 %v1298
        %v1709 = vpop.f32.mrf.mxu0
        %v1710 = vadd.f32 %v1671, %v1709
        %v1711 = vpop.f32.mrf.mxu0
        %v1712 = vadd.f32 %v1671, %v1711
        %1713 = vmatmul.bf16.gmra.mxu0 %v1301
        %v1714 = vpop.f32.mrf.mxu0
        %v1715 = vadd.f32 %v1671, %v1714
        %v1716 = vpop.f32.mrf.mxu0
        %v1717 = vadd.f32 %v1671, %v1716
        %1718 = vmatmul.bf16.gmra.mxu0 %v1304
        %v1719 = vpop.f32.mrf.mxu0
        %v1720 = vadd.f32 %v1671, %v1719
        %v1721 = vpop.f32.mrf.mxu0
        %v1722 = vadd.f32 %v1671, %v1721
        %1723 = vmatmul.bf16.gmra.mxu0 %v1307
        %v1724 = vpop.f32.mrf.mxu0
        %v1725 = vadd.f32 %v1671, %v1724
        %v1726 = vpop.f32.mrf.mxu0
        %v1727 = vadd.f32 %v1671, %v1726
        %1728 = vmatmul.bf16.gmra.mxu0 %v1310
        %v1729 = vpop.f32.mrf.mxu0
        %v1730 = vadd.f32 %v1671, %v1729
        %v1731 = vpop.f32.mrf.mxu0
        %v1732 = vadd.f32 %v1671, %v1731
        %1733 = vdwg.mxu0
        %v1734 = vmax.f32 %v1695, 0.0
        %v1735 = vmax.f32 %v1697, 0.0
        %v1736 = vmax.f32 %v1700, 0.0
        %v1737 = vmax.f32 %v1702, 0.0
        %v1738 = vmax.f32 %v1705, 0.0
        %v1739 = vmax.f32 %v1707, 0.0
        %v1740 = vmax.f32 %v1710, 0.0
        %v1741 = vmax.f32 %v1712, 0.0
        %v1742 = vmax.f32 %v1715, 0.0
        %v1743 = vmax.f32 %v1717, 0.0
        %v1744 = vmax.f32 %v1720, 0.0
        %v1745 = vmax.f32 %v1722, 0.0
        %v1746 = vmax.f32 %v1725, 0.0
        %v1747 = vmax.f32 %v1727, 0.0
        %v1748 = vmax.f32 %v1730, 0.0
        %v1749 = vmax.f32 %v1732, 0.0
        %v1750 = vmul.f32 %v1439, %v1734
        %v1751 = vmul.f32 %v1454, %v1735
        %v1752 = vmul.f32 %v1469, %v1736
        %v1753 = vmul.f32 %v1484, %v1737
        %v1754 = vmul.f32 %v1499, %v1738
        %v1755 = vmul.f32 %v1514, %v1739
        %v1756 = vmul.f32 %v1529, %v1740
        %v1757 = vmul.f32 %v1544, %v1741
        %v1758 = vmul.f32 %v1559, %v1742
        %v1759 = vmul.f32 %v1574, %v1743
        %v1760 = vmul.f32 %v1589, %v1744
        %v1761 = vmul.f32 %v1604, %v1745
        %v1762 = vmul.f32 %v1619, %v1746
        %v1763 = vmul.f32 %v1634, %v1747
        %v1764 = vmul.f32 %v1649, %v1748
        %v1765 = vmul.f32 %v1664, %v1749
        %v1766 = vsub.f32 1.0, %v1439
        %v1767 = vsub.f32 1.0, %v1454
        %v1768 = vsub.f32 1.0, %v1469
        %v1769 = vsub.f32 1.0, %v1484
        %v1770 = vsub.f32 1.0, %v1499
        %v1771 = vsub.f32 1.0, %v1514
        %v1772 = vsub.f32 1.0, %v1529
        %v1773 = vsub.f32 1.0, %v1544
        %v1774 = vsub.f32 1.0, %v1559
        %v1775 = vsub.f32 1.0, %v1574
        %v1776 = vsub.f32 1.0, %v1589
        %v1777 = vsub.f32 1.0, %v1604
        %v1778 = vsub.f32 1.0, %v1619
        %v1779 = vsub.f32 1.0, %v1634
        %v1780 = vsub.f32 1.0, %v1649
        %v1781 = vsub.f32 1.0, %v1664
        %v1782 = vmul.f32 %v1766, %v1243
        %v1783 = vmul.f32 %v1767, %v1244
        %v1784 = vmul.f32 %v1768, %v1245
        %v1785 = vmul.f32 %v1769, %v1246
        %v1786 = vmul.f32 %v1770, %v1247
        %v1787 = vmul.f32 %v1771, %v1248
        %v1788 = vmul.f32 %v1772, %v1249
        %v1789 = vmul.f32 %v1773, %v1250
        %v1790 = vmul.f32 %v1774, %v1251
        %v1791 = vmul.f32 %v1775, %v1252
        %v1792 = vmul.f32 %v1776, %v1253
        %v1793 = vmul.f32 %v1777, %v1254
        %v1794 = vmul.f32 %v1778, %v1255
        %v1795 = vmul.f32 %v1779, %v1256
        %v1796 = vmul.f32 %v1780, %v1257
        %v1797 = vmul.f32 %v1781, %v1258
        %v1798 = vadd.f32 %v1750, %v1782
        %v1799 = vadd.f32 %v1751, %v1783
        %v1800 = vadd.f32 %v1752, %v1784
        %v1801 = vadd.f32 %v1753, %v1785
        %v1802 = vadd.f32 %v1754, %v1786
        %v1803 = vadd.f32 %v1755, %v1787
        %v1804 = vadd.f32 %v1756, %v1788
        %v1805 = vadd.f32 %v1757, %v1789
        %v1806 = vadd.f32 %v1758, %v1790
        %v1807 = vadd.f32 %v1759, %v1791
        %v1808 = vadd.f32 %v1760, %v1792
        %v1809 = vadd.f32 %v1761, %v1793
        %v1810 = vadd.f32 %v1762, %v1794
        %v1811 = vadd.f32 %v1763, %v1795
        %v1812 = vadd.f32 %v1764, %v1796
        %v1813 = vadd.f32 %v1765, %v1797
        %v1814 = vpack.c.bf16 %v1799, %v1798
        %v1815 = vpack.c.bf16 %v1801, %v1800
        %v1816 = vpack.c.bf16 %v1803, %v1802
        %v1817 = vpack.c.bf16 %v1805, %v1804
        %v1818 = vpack.c.bf16 %v1807, %v1806
        %v1819 = vpack.c.bf16 %v1809, %v1808
        %v1820 = vpack.c.bf16 %v1811, %v1810
        %v1821 = vpack.c.bf16 %v1813, %v1812
        %s1822 = scalar_lea.vmem %s4, 16
        %v1823 = vld [vmem:[%s1822] sm:$0xf]
        %v1824 = vld [vmem:[%s1822 + $0x4] sm:$0xf]
        %v1825 = vld [vmem:[%s1822 + $0x8] sm:$0xf]
        %v1826 = vld [vmem:[%s1822 + $0xc] sm:$0xf]
        %s1827 = scalar_lea.vmem %s5, 1
        %v1828 = vld [vmem:[%s1827] sm:$0x1]
        %v1830 = vperm.slane %v1828, 0
        %v1836 = vunpack.c.l.b16 %v1823
        %v1837 = vunpack.c.l.b16 %v1824
        %v1838 = vunpack.c.l.b16 %v1825
        %v1839 = vunpack.c.l.b16 %v1826
        %v1840 = vpack.c.b16 %v1837, %v1836
        %v1841 = vpack.c.b16 %v1839, %v1838
        %v1845 = vsel %vm1287, %v1814, 0
        %v1848 = vsel %vm1287, %v1815, 0
        %v1851 = vsel %vm1287, %v1816, 0
        %v1854 = vsel %vm1287, %v1817, 0
        %v1857 = vsel %vm1287, %v1818, 0
        %v1860 = vsel %vm1287, %v1819, 0
        %v1863 = vsel %vm1287, %v1820, 0
        %v1866 = vsel %vm1287, %v1821, 0
        %1868 = vmatpush.bf16.msra.mxu0 0
        %1869 = vmatpush.bf16.msra.mxu0 0
        %1870 = vmatpush.bf16.msra.mxu0 0
        %1871 = vmatpush.bf16.msra.mxu0 0
        %1872 = vmatpush.bf16.msra.mxu0 0
        %1873 = vmatpush.bf16.msra.mxu0 0
        %1874 = vmatpush.bf16.msra.mxu0 %v1841
        %1875 = vmatpush.bf16.msra.mxu0 %v1840
        %1876 = vmatmul.bf16.gmra.mxu0 %v1845
        %v1877 = vpop.f32.mrf.mxu0
        %v1878 = vadd.f32 %v1830, %v1877
        %v1879 = vpop.f32.mrf.mxu0
        %v1880 = vadd.f32 %v1830, %v1879
        %1881 = vmatmul.bf16.gmra.mxu0 %v1848
        %v1882 = vpop.f32.mrf.mxu0
        %v1883 = vadd.f32 %v1830, %v1882
        %v1884 = vpop.f32.mrf.mxu0
        %v1885 = vadd.f32 %v1830, %v1884
        %1886 = vmatmul.bf16.gmra.mxu0 %v1851
        %v1887 = vpop.f32.mrf.mxu0
        %v1888 = vadd.f32 %v1830, %v1887
        %v1889 = vpop.f32.mrf.mxu0
        %v1890 = vadd.f32 %v1830, %v1889
        %1891 = vmatmul.bf16.gmra.mxu0 %v1854
        %v1892 = vpop.f32.mrf.mxu0
        %v1893 = vadd.f32 %v1830, %v1892
        %v1894 = vpop.f32.mrf.mxu0
        %v1895 = vadd.f32 %v1830, %v1894
        %1896 = vmatmul.bf16.gmra.mxu0 %v1857
        %v1897 = vpop.f32.mrf.mxu0
        %v1898 = vadd.f32 %v1830, %v1897
        %v1899 = vpop.f32.mrf.mxu0
        %v1900 = vadd.f32 %v1830, %v1899
        %1901 = vmatmul.bf16.gmra.mxu0 %v1860
        %v1902 = vpop.f32.mrf.mxu0
        %v1903 = vadd.f32 %v1830, %v1902
        %v1904 = vpop.f32.mrf.mxu0
        %v1905 = vadd.f32 %v1830, %v1904
        %1906 = vmatmul.bf16.gmra.mxu0 %v1863
        %v1907 = vpop.f32.mrf.mxu0
        %v1908 = vadd.f32 %v1830, %v1907
        %v1909 = vpop.f32.mrf.mxu0
        %v1910 = vadd.f32 %v1830, %v1909
        %1911 = vmatmul.bf16.gmra.mxu0 %v1866
        %v1912 = vpop.f32.mrf.mxu0
        %v1913 = vadd.f32 %v1830, %v1912
        %v1914 = vpop.f32.mrf.mxu0
        %v1915 = vadd.f32 %v1830, %v1914
        %1916 = vdwg.mxu0
        %v1917 = vxor.u32 %v1878, 2147483648
        %v1918 = vxor.u32 %v1880, 2147483648
        %v1919 = vxor.u32 %v1883, 2147483648
        %v1920 = vxor.u32 %v1885, 2147483648
        %v1921 = vxor.u32 %v1888, 2147483648
        %v1922 = vxor.u32 %v1890, 2147483648
        %v1923 = vxor.u32 %v1893, 2147483648
        %v1924 = vxor.u32 %v1895, 2147483648
        %v1925 = vxor.u32 %v1898, 2147483648
        %v1926 = vxor.u32 %v1900, 2147483648
        %v1927 = vxor.u32 %v1903, 2147483648
        %v1928 = vxor.u32 %v1905, 2147483648
        %v1929 = vxor.u32 %v1908, 2147483648
        %v1930 = vxor.u32 %v1910, 2147483648
        %v1931 = vxor.u32 %v1913, 2147483648
        %v1932 = vxor.u32 %v1915, 2147483648
        %v1933 = vmul.f32 %v1917, 1.442695
        %v1934 = vpow.pop %v1933
        %v1935 = vmul.f32 %v1918, 1.442695
        %v1936 = vpow.pop %v1935
        %v1937 = vmul.f32 %v1919, 1.442695
        %v1938 = vpow.pop %v1937
        %v1939 = vmul.f32 %v1920, 1.442695
        %v1940 = vpow.pop %v1939
        %v1941 = vmul.f32 %v1921, 1.442695
        %v1942 = vpow.pop %v1941
        %v1943 = vmul.f32 %v1922, 1.442695
        %v1944 = vpow.pop %v1943
        %v1945 = vmul.f32 %v1923, 1.442695
        %v1946 = vpow.pop %v1945
        %v1947 = vmul.f32 %v1924, 1.442695
        %v1948 = vpow.pop %v1947
        %v1949 = vmul.f32 %v1925, 1.442695
        %v1950 = vpow.pop %v1949
        %v1951 = vmul.f32 %v1926, 1.442695
        %v1952 = vpow.pop %v1951
        %v1953 = vmul.f32 %v1927, 1.442695
        %v1954 = vpow.pop %v1953
        %v1955 = vmul.f32 %v1928, 1.442695
        %v1956 = vpow.pop %v1955
        %v1957 = vmul.f32 %v1929, 1.442695
        %v1958 = vpow.pop %v1957
        %v1959 = vmul.f32 %v1930, 1.442695
        %v1960 = vpow.pop %v1959
        %v1961 = vmul.f32 %v1931, 1.442695
        %v1962 = vpow.pop %v1961
        %v1963 = vmul.f32 %v1932, 1.442695
        %v1964 = vpow.pop %v1963
        %v1965 = vadd.f32 %v1934, 1.0
        %v1966 = vadd.f32 %v1936, 1.0
        %v1967 = vadd.f32 %v1938, 1.0
        %v1968 = vadd.f32 %v1940, 1.0
        %v1969 = vadd.f32 %v1942, 1.0
        %v1970 = vadd.f32 %v1944, 1.0
        %v1971 = vadd.f32 %v1946, 1.0
        %v1972 = vadd.f32 %v1948, 1.0
        %v1973 = vadd.f32 %v1950, 1.0
        %v1974 = vadd.f32 %v1952, 1.0
        %v1975 = vadd.f32 %v1954, 1.0
        %v1976 = vadd.f32 %v1956, 1.0
        %v1977 = vadd.f32 %v1958, 1.0
        %v1978 = vadd.f32 %v1960, 1.0
        %v1979 = vadd.f32 %v1962, 1.0
        %v1980 = vadd.f32 %v1964, 1.0
        %v1981 = vrcp.pop %v1965
        %v1982 = vmul.f32 %v1965, %v1981
        %v1983 = vsub.f32 1.0, %v1982
        %v1984 = vmul.f32 %v1981, %v1983
        %v1985 = vadd.f32 %v1981, %v1984
        %vm1986 = vweird.f32 %v1965
        %vm1987 = vweird.f32 %v1981
        %vm1988 = vmor %vm1986, %vm1987
        %v1989 = vsel %vm1988, %v1981, %v1985
        %v1990 = vand.u32 2147483647, %v1965
        %vm1991 = vcmp.eq.f32.partialorder %v1990, 8.507059e+37
        %v1992 = vand.u32 %v1965, 2147483648
        %v1993 = vor.u32 1.1754944e-38, %v1992
        %v1994 = vsel %vm1991, %v1993, %v1989
        %v1995 = vmul.f32 1.0, %v1994
        %v1996 = vrcp.pop %v1966
        %v1997 = vmul.f32 %v1966, %v1996
        %v1998 = vsub.f32 1.0, %v1997
        %v1999 = vmul.f32 %v1996, %v1998
        %v2000 = vadd.f32 %v1996, %v1999
        %vm2001 = vweird.f32 %v1966
        %vm2002 = vweird.f32 %v1996
        %vm2003 = vmor %vm2001, %vm2002
        %v2004 = vsel %vm2003, %v1996, %v2000
        %v2005 = vand.u32 2147483647, %v1966
        %vm2006 = vcmp.eq.f32.partialorder %v2005, 8.507059e+37
        %v2007 = vand.u32 %v1966, 2147483648
        %v2008 = vor.u32 1.1754944e-38, %v2007
        %v2009 = vsel %vm2006, %v2008, %v2004
        %v2010 = vmul.f32 1.0, %v2009
        %v2011 = vrcp.pop %v1967
        %v2012 = vmul.f32 %v1967, %v2011
        %v2013 = vsub.f32 1.0, %v2012
        %v2014 = vmul.f32 %v2011, %v2013
        %v2015 = vadd.f32 %v2011, %v2014
        %vm2016 = vweird.f32 %v1967
        %vm2017 = vweird.f32 %v2011
        %vm2018 = vmor %vm2016, %vm2017
        %v2019 = vsel %vm2018, %v2011, %v2015
        %v2020 = vand.u32 2147483647, %v1967
        %vm2021 = vcmp.eq.f32.partialorder %v2020, 8.507059e+37
        %v2022 = vand.u32 %v1967, 2147483648
        %v2023 = vor.u32 1.1754944e-38, %v2022
        %v2024 = vsel %vm2021, %v2023, %v2019
        %v2025 = vmul.f32 1.0, %v2024
        %v2026 = vrcp.pop %v1968
        %v2027 = vmul.f32 %v1968, %v2026
        %v2028 = vsub.f32 1.0, %v2027
        %v2029 = vmul.f32 %v2026, %v2028
        %v2030 = vadd.f32 %v2026, %v2029
        %vm2031 = vweird.f32 %v1968
        %vm2032 = vweird.f32 %v2026
        %vm2033 = vmor %vm2031, %vm2032
        %v2034 = vsel %vm2033, %v2026, %v2030
        %v2035 = vand.u32 2147483647, %v1968
        %vm2036 = vcmp.eq.f32.partialorder %v2035, 8.507059e+37
        %v2037 = vand.u32 %v1968, 2147483648
        %v2038 = vor.u32 1.1754944e-38, %v2037
        %v2039 = vsel %vm2036, %v2038, %v2034
        %v2040 = vmul.f32 1.0, %v2039
        %v2041 = vrcp.pop %v1969
        %v2042 = vmul.f32 %v1969, %v2041
        %v2043 = vsub.f32 1.0, %v2042
        %v2044 = vmul.f32 %v2041, %v2043
        %v2045 = vadd.f32 %v2041, %v2044
        %vm2046 = vweird.f32 %v1969
        %vm2047 = vweird.f32 %v2041
        %vm2048 = vmor %vm2046, %vm2047
        %v2049 = vsel %vm2048, %v2041, %v2045
        %v2050 = vand.u32 2147483647, %v1969
        %vm2051 = vcmp.eq.f32.partialorder %v2050, 8.507059e+37
        %v2052 = vand.u32 %v1969, 2147483648
        %v2053 = vor.u32 1.1754944e-38, %v2052
        %v2054 = vsel %vm2051, %v2053, %v2049
        %v2055 = vmul.f32 1.0, %v2054
        %v2056 = vrcp.pop %v1970
        %v2057 = vmul.f32 %v1970, %v2056
        %v2058 = vsub.f32 1.0, %v2057
        %v2059 = vmul.f32 %v2056, %v2058
        %v2060 = vadd.f32 %v2056, %v2059
        %vm2061 = vweird.f32 %v1970
        %vm2062 = vweird.f32 %v2056
        %vm2063 = vmor %vm2061, %vm2062
        %v2064 = vsel %vm2063, %v2056, %v2060
        %v2065 = vand.u32 2147483647, %v1970
        %vm2066 = vcmp.eq.f32.partialorder %v2065, 8.507059e+37
        %v2067 = vand.u32 %v1970, 2147483648
        %v2068 = vor.u32 1.1754944e-38, %v2067
        %v2069 = vsel %vm2066, %v2068, %v2064
        %v2070 = vmul.f32 1.0, %v2069
        %v2071 = vrcp.pop %v1971
        %v2072 = vmul.f32 %v1971, %v2071
        %v2073 = vsub.f32 1.0, %v2072
        %v2074 = vmul.f32 %v2071, %v2073
        %v2075 = vadd.f32 %v2071, %v2074
        %vm2076 = vweird.f32 %v1971
        %vm2077 = vweird.f32 %v2071
        %vm2078 = vmor %vm2076, %vm2077
        %v2079 = vsel %vm2078, %v2071, %v2075
        %v2080 = vand.u32 2147483647, %v1971
        %vm2081 = vcmp.eq.f32.partialorder %v2080, 8.507059e+37
        %v2082 = vand.u32 %v1971, 2147483648
        %v2083 = vor.u32 1.1754944e-38, %v2082
        %v2084 = vsel %vm2081, %v2083, %v2079
        %v2085 = vmul.f32 1.0, %v2084
        %v2086 = vrcp.pop %v1972
        %v2087 = vmul.f32 %v1972, %v2086
        %v2088 = vsub.f32 1.0, %v2087
        %v2089 = vmul.f32 %v2086, %v2088
        %v2090 = vadd.f32 %v2086, %v2089
        %vm2091 = vweird.f32 %v1972
        %vm2092 = vweird.f32 %v2086
        %vm2093 = vmor %vm2091, %vm2092
        %v2094 = vsel %vm2093, %v2086, %v2090
        %v2095 = vand.u32 2147483647, %v1972
        %vm2096 = vcmp.eq.f32.partialorder %v2095, 8.507059e+37
        %v2097 = vand.u32 %v1972, 2147483648
        %v2098 = vor.u32 1.1754944e-38, %v2097
        %v2099 = vsel %vm2096, %v2098, %v2094
        %v2100 = vmul.f32 1.0, %v2099
        %v2101 = vrcp.pop %v1973
        %v2102 = vmul.f32 %v1973, %v2101
        %v2103 = vsub.f32 1.0, %v2102
        %v2104 = vmul.f32 %v2101, %v2103
        %v2105 = vadd.f32 %v2101, %v2104
        %vm2106 = vweird.f32 %v1973
        %vm2107 = vweird.f32 %v2101
        %vm2108 = vmor %vm2106, %vm2107
        %v2109 = vsel %vm2108, %v2101, %v2105
        %v2110 = vand.u32 2147483647, %v1973
        %vm2111 = vcmp.eq.f32.partialorder %v2110, 8.507059e+37
        %v2112 = vand.u32 %v1973, 2147483648
        %v2113 = vor.u32 1.1754944e-38, %v2112
        %v2114 = vsel %vm2111, %v2113, %v2109
        %v2115 = vmul.f32 1.0, %v2114
        %v2116 = vrcp.pop %v1974
        %v2117 = vmul.f32 %v1974, %v2116
        %v2118 = vsub.f32 1.0, %v2117
        %v2119 = vmul.f32 %v2116, %v2118
        %v2120 = vadd.f32 %v2116, %v2119
        %vm2121 = vweird.f32 %v1974
        %vm2122 = vweird.f32 %v2116
        %vm2123 = vmor %vm2121, %vm2122
        %v2124 = vsel %vm2123, %v2116, %v2120
        %v2125 = vand.u32 2147483647, %v1974
        %vm2126 = vcmp.eq.f32.partialorder %v2125, 8.507059e+37
        %v2127 = vand.u32 %v1974, 2147483648
        %v2128 = vor.u32 1.1754944e-38, %v2127
        %v2129 = vsel %vm2126, %v2128, %v2124
        %v2130 = vmul.f32 1.0, %v2129
        %v2131 = vrcp.pop %v1975
        %v2132 = vmul.f32 %v1975, %v2131
        %v2133 = vsub.f32 1.0, %v2132
        %v2134 = vmul.f32 %v2131, %v2133
        %v2135 = vadd.f32 %v2131, %v2134
        %vm2136 = vweird.f32 %v1975
        %vm2137 = vweird.f32 %v2131
        %vm2138 = vmor %vm2136, %vm2137
        %v2139 = vsel %vm2138, %v2131, %v2135
        %v2140 = vand.u32 2147483647, %v1975
        %vm2141 = vcmp.eq.f32.partialorder %v2140, 8.507059e+37
        %v2142 = vand.u32 %v1975, 2147483648
        %v2143 = vor.u32 1.1754944e-38, %v2142
        %v2144 = vsel %vm2141, %v2143, %v2139
        %v2145 = vmul.f32 1.0, %v2144
        %v2146 = vrcp.pop %v1976
        %v2147 = vmul.f32 %v1976, %v2146
        %v2148 = vsub.f32 1.0, %v2147
        %v2149 = vmul.f32 %v2146, %v2148
        %v2150 = vadd.f32 %v2146, %v2149
        %vm2151 = vweird.f32 %v1976
        %vm2152 = vweird.f32 %v2146
        %vm2153 = vmor %vm2151, %vm2152
        %v2154 = vsel %vm2153, %v2146, %v2150
        %v2155 = vand.u32 2147483647, %v1976
        %vm2156 = vcmp.eq.f32.partialorder %v2155, 8.507059e+37
        %v2157 = vand.u32 %v1976, 2147483648
        %v2158 = vor.u32 1.1754944e-38, %v2157
        %v2159 = vsel %vm2156, %v2158, %v2154
        %v2160 = vmul.f32 1.0, %v2159
        %v2161 = vrcp.pop %v1977
        %v2162 = vmul.f32 %v1977, %v2161
        %v2163 = vsub.f32 1.0, %v2162
        %v2164 = vmul.f32 %v2161, %v2163
        %v2165 = vadd.f32 %v2161, %v2164
        %vm2166 = vweird.f32 %v1977
        %vm2167 = vweird.f32 %v2161
        %vm2168 = vmor %vm2166, %vm2167
        %v2169 = vsel %vm2168, %v2161, %v2165
        %v2170 = vand.u32 2147483647, %v1977
        %vm2171 = vcmp.eq.f32.partialorder %v2170, 8.507059e+37
        %v2172 = vand.u32 %v1977, 2147483648
        %v2173 = vor.u32 1.1754944e-38, %v2172
        %v2174 = vsel %vm2171, %v2173, %v2169
        %v2175 = vmul.f32 1.0, %v2174
        %v2176 = vrcp.pop %v1978
        %v2177 = vmul.f32 %v1978, %v2176
        %v2178 = vsub.f32 1.0, %v2177
        %v2179 = vmul.f32 %v2176, %v2178
        %v2180 = vadd.f32 %v2176, %v2179
        %vm2181 = vweird.f32 %v1978
        %vm2182 = vweird.f32 %v2176
        %vm2183 = vmor %vm2181, %vm2182
        %v2184 = vsel %vm2183, %v2176, %v2180
        %v2185 = vand.u32 2147483647, %v1978
        %vm2186 = vcmp.eq.f32.partialorder %v2185, 8.507059e+37
        %v2187 = vand.u32 %v1978, 2147483648
        %v2188 = vor.u32 1.1754944e-38, %v2187
        %v2189 = vsel %vm2186, %v2188, %v2184
        %v2190 = vmul.f32 1.0, %v2189
        %v2191 = vrcp.pop %v1979
        %v2192 = vmul.f32 %v1979, %v2191
        %v2193 = vsub.f32 1.0, %v2192
        %v2194 = vmul.f32 %v2191, %v2193
        %v2195 = vadd.f32 %v2191, %v2194
        %vm2196 = vweird.f32 %v1979
        %vm2197 = vweird.f32 %v2191
        %vm2198 = vmor %vm2196, %vm2197
        %v2199 = vsel %vm2198, %v2191, %v2195
        %v2200 = vand.u32 2147483647, %v1979
        %vm2201 = vcmp.eq.f32.partialorder %v2200, 8.507059e+37
        %v2202 = vand.u32 %v1979, 2147483648
        %v2203 = vor.u32 1.1754944e-38, %v2202
        %v2204 = vsel %vm2201, %v2203, %v2199
        %v2205 = vmul.f32 1.0, %v2204
        %v2206 = vrcp.pop %v1980
        %v2207 = vmul.f32 %v1980, %v2206
        %v2208 = vsub.f32 1.0, %v2207
        %v2209 = vmul.f32 %v2206, %v2208
        %v2210 = vadd.f32 %v2206, %v2209
        %vm2211 = vweird.f32 %v1980
        %vm2212 = vweird.f32 %v2206
        %vm2213 = vmor %vm2211, %vm2212
        %v2214 = vsel %vm2213, %v2206, %v2210
        %v2215 = vand.u32 2147483647, %v1980
        %vm2216 = vcmp.eq.f32.partialorder %v2215, 8.507059e+37
        %v2217 = vand.u32 %v1980, 2147483648
        %v2218 = vor.u32 1.1754944e-38, %v2217
        %v2219 = vsel %vm2216, %v2218, %v2214
        %v2220 = vmul.f32 1.0, %v2219
        %s2221 = scalar_lea.vmem %s6, 16
        %v2222 = vld [vmem:[%s2221] sm:$0xf]
        %v2223 = vld [vmem:[%s2221 + $0x4] sm:$0xf]
        %v2224 = vld [vmem:[%s2221 + $0x8] sm:$0xf]
        %v2225 = vld [vmem:[%s2221 + $0xc] sm:$0xf]
        %s2226 = scalar_lea.vmem %s7, 1
        %v2227 = vld [vmem:[%s2226] sm:$0x1]
        %v2229 = vperm.slane %v2227, 0
        %v2235 = vunpack.c.l.b16 %v2222
        %v2236 = vunpack.c.l.b16 %v2223
        %v2237 = vunpack.c.l.b16 %v2224
        %v2238 = vunpack.c.l.b16 %v2225
        %v2239 = vpack.c.b16 %v2236, %v2235
        %v2240 = vpack.c.b16 %v2238, %v2237
        %2243 = vmatpush.bf16.msra.mxu0 0
        %2244 = vmatpush.bf16.msra.mxu0 0
        %2245 = vmatpush.bf16.msra.mxu0 0
        %2246 = vmatpush.bf16.msra.mxu0 0
        %2247 = vmatpush.bf16.msra.mxu0 0
        %2248 = vmatpush.bf16.msra.mxu0 0
        %2249 = vmatpush.bf16.msra.mxu0 %v2240
        %2250 = vmatpush.bf16.msra.mxu0 %v2239
        %2251 = vmatmul.bf16.gmra.mxu0 %v1845
        %v2252 = vpop.f32.mrf.mxu0
        %v2253 = vadd.f32 %v2229, %v2252
        %v2254 = vpop.f32.mrf.mxu0
        %v2255 = vadd.f32 %v2229, %v2254
        %2256 = vmatmul.bf16.gmra.mxu0 %v1848
        %v2257 = vpop.f32.mrf.mxu0
        %v2258 = vadd.f32 %v2229, %v2257
        %v2259 = vpop.f32.mrf.mxu0
        %v2260 = vadd.f32 %v2229, %v2259
        %2261 = vmatmul.bf16.gmra.mxu0 %v1851
        %v2262 = vpop.f32.mrf.mxu0
        %v2263 = vadd.f32 %v2229, %v2262
        %v2264 = vpop.f32.mrf.mxu0
        %v2265 = vadd.f32 %v2229, %v2264
        %2266 = vmatmul.bf16.gmra.mxu0 %v1854
        %v2267 = vpop.f32.mrf.mxu0
        %v2268 = vadd.f32 %v2229, %v2267
        %v2269 = vpop.f32.mrf.mxu0
        %v2270 = vadd.f32 %v2229, %v2269
        %2271 = vmatmul.bf16.gmra.mxu0 %v1857
        %v2272 = vpop.f32.mrf.mxu0
        %v2273 = vadd.f32 %v2229, %v2272
        %v2274 = vpop.f32.mrf.mxu0
        %v2275 = vadd.f32 %v2229, %v2274
        %2276 = vmatmul.bf16.gmra.mxu0 %v1860
        %v2277 = vpop.f32.mrf.mxu0
        %v2278 = vadd.f32 %v2229, %v2277
        %v2279 = vpop.f32.mrf.mxu0
        %v2280 = vadd.f32 %v2229, %v2279
        %2281 = vmatmul.bf16.gmra.mxu0 %v1863
        %v2282 = vpop.f32.mrf.mxu0
        %v2283 = vadd.f32 %v2229, %v2282
        %v2284 = vpop.f32.mrf.mxu0
        %v2285 = vadd.f32 %v2229, %v2284
        %2286 = vmatmul.bf16.gmra.mxu0 %v1866
        %v2287 = vpop.f32.mrf.mxu0
        %v2288 = vadd.f32 %v2229, %v2287
        %v2289 = vpop.f32.mrf.mxu0
        %v2290 = vadd.f32 %v2229, %v2289
        %2291 = vdwg.mxu0
        %v2292 = vmax.f32 %v2253, 0.0
        %v2293 = vmax.f32 %v2255, 0.0
        %v2294 = vmax.f32 %v2258, 0.0
        %v2295 = vmax.f32 %v2260, 0.0
        %v2296 = vmax.f32 %v2263, 0.0
        %v2297 = vmax.f32 %v2265, 0.0
        %v2298 = vmax.f32 %v2268, 0.0
        %v2299 = vmax.f32 %v2270, 0.0
        %v2300 = vmax.f32 %v2273, 0.0
        %v2301 = vmax.f32 %v2275, 0.0
        %v2302 = vmax.f32 %v2278, 0.0
        %v2303 = vmax.f32 %v2280, 0.0
        %v2304 = vmax.f32 %v2283, 0.0
        %v2305 = vmax.f32 %v2285, 0.0
        %v2306 = vmax.f32 %v2288, 0.0
        %v2307 = vmax.f32 %v2290, 0.0
        %v2308 = vmul.f32 %v1995, %v2292
        %v2309 = vmul.f32 %v2010, %v2293
        %v2310 = vmul.f32 %v2025, %v2294
        %v2311 = vmul.f32 %v2040, %v2295
        %v2312 = vmul.f32 %v2055, %v2296
        %v2313 = vmul.f32 %v2070, %v2297
        %v2314 = vmul.f32 %v2085, %v2298
        %v2315 = vmul.f32 %v2100, %v2299
        %v2316 = vmul.f32 %v2115, %v2300
        %v2317 = vmul.f32 %v2130, %v2301
        %v2318 = vmul.f32 %v2145, %v2302
        %v2319 = vmul.f32 %v2160, %v2303
        %v2320 = vmul.f32 %v2175, %v2304
        %v2321 = vmul.f32 %v2190, %v2305
        %v2322 = vmul.f32 %v2205, %v2306
        %v2323 = vmul.f32 %v2220, %v2307
        %v2324 = vsub.f32 1.0, %v1995
        %v2325 = vsub.f32 1.0, %v2010
        %v2326 = vsub.f32 1.0, %v2025
        %v2327 = vsub.f32 1.0, %v2040
        %v2328 = vsub.f32 1.0, %v2055
        %v2329 = vsub.f32 1.0, %v2070
        %v2330 = vsub.f32 1.0, %v2085
        %v2331 = vsub.f32 1.0, %v2100
        %v2332 = vsub.f32 1.0, %v2115
        %v2333 = vsub.f32 1.0, %v2130
        %v2334 = vsub.f32 1.0, %v2145
        %v2335 = vsub.f32 1.0, %v2160
        %v2336 = vsub.f32 1.0, %v2175
        %v2337 = vsub.f32 1.0, %v2190
        %v2338 = vsub.f32 1.0, %v2205
        %v2339 = vsub.f32 1.0, %v2220
        %v2340 = vmul.f32 %v2324, %v1798
        %v2341 = vmul.f32 %v2325, %v1799
        %v2342 = vmul.f32 %v2326, %v1800
        %v2343 = vmul.f32 %v2327, %v1801
        %v2344 = vmul.f32 %v2328, %v1802
        %v2345 = vmul.f32 %v2329, %v1803
        %v2346 = vmul.f32 %v2330, %v1804
        %v2347 = vmul.f32 %v2331, %v1805
        %v2348 = vmul.f32 %v2332, %v1806
        %v2349 = vmul.f32 %v2333, %v1807
        %v2350 = vmul.f32 %v2334, %v1808
        %v2351 = vmul.f32 %v2335, %v1809
        %v2352 = vmul.f32 %v2336, %v1810
        %v2353 = vmul.f32 %v2337, %v1811
        %v2354 = vmul.f32 %v2338, %v1812
        %v2355 = vmul.f32 %v2339, %v1813
        %v2356 = vadd.f32 %v2308, %v2340
        %v2357 = vadd.f32 %v2309, %v2341
        %v2358 = vadd.f32 %v2310, %v2342
        %v2359 = vadd.f32 %v2311, %v2343
        %v2360 = vadd.f32 %v2312, %v2344
        %v2361 = vadd.f32 %v2313, %v2345
        %v2362 = vadd.f32 %v2314, %v2346
        %v2363 = vadd.f32 %v2315, %v2347
        %v2364 = vadd.f32 %v2316, %v2348
        %v2365 = vadd.f32 %v2317, %v2349
        %v2366 = vadd.f32 %v2318, %v2350
        %v2367 = vadd.f32 %v2319, %v2351
        %v2368 = vadd.f32 %v2320, %v2352
        %v2369 = vadd.f32 %v2321, %v2353
        %v2370 = vadd.f32 %v2322, %v2354
        %v2371 = vadd.f32 %v2323, %v2355
        %v2372 = vpack.c.bf16 %v2357, %v2356
        %v2373 = vpack.c.bf16 %v2359, %v2358
        %v2374 = vpack.c.bf16 %v2361, %v2360
        %v2375 = vpack.c.bf16 %v2363, %v2362
        %v2376 = vpack.c.bf16 %v2365, %v2364
        %v2377 = vpack.c.bf16 %v2367, %v2366
        %v2378 = vpack.c.bf16 %v2369, %v2368
        %v2379 = vpack.c.bf16 %v2371, %v2370
        %v2380 = vld [vmem:[%s8] sm:$0xf]
        %v2381 = vld [vmem:[%s8 + $0x4] sm:$0xf]
        %v2382 = vld [vmem:[%s8 + $0x8] sm:$0xf]
        %v2383 = vld [vmem:[%s8 + $0xc] sm:$0xf]
        %v2384 = vld [vmem:[%s9] sm:$0x1]
        %v2386 = vperm.slane %v2384, 0
        %v2392 = vunpack.c.l.b16 %v2380
        %v2393 = vunpack.c.l.b16 %v2381
        %v2394 = vunpack.c.l.b16 %v2382
        %v2395 = vunpack.c.l.b16 %v2383
        %v2396 = vpack.c.b16 %v2393, %v2392
        %v2397 = vpack.c.b16 %v2395, %v2394
        %v2401 = vsel %vm1287, %v2372, 0
        %v2404 = vsel %vm1287, %v2373, 0
        %v2407 = vsel %vm1287, %v2374, 0
        %v2410 = vsel %vm1287, %v2375, 0
        %v2413 = vsel %vm1287, %v2376, 0
        %v2416 = vsel %vm1287, %v2377, 0
        %v2419 = vsel %vm1287, %v2378, 0
        %v2422 = vsel %vm1287, %v2379, 0
        %2424 = vmatpush.bf16.msra.mxu0 0
        %2425 = vmatpush.bf16.msra.mxu0 0
        %2426 = vmatpush.bf16.msra.mxu0 0
        %2427 = vmatpush.bf16.msra.mxu0 0
        %2428 = vmatpush.bf16.msra.mxu0 0
        %2429 = vmatpush.bf16.msra.mxu0 0
        %2430 = vmatpush.bf16.msra.mxu0 %v2397
        %2431 = vmatpush.bf16.msra.mxu0 %v2396
        %2432 = vmatmul.bf16.gmra.mxu0 %v2401
        %v2433 = vpop.f32.mrf.mxu0
        %v2434 = vadd.f32 %v2386, %v2433
        %v2435 = vpop.f32.mrf.mxu0
        %v2436 = vadd.f32 %v2386, %v2435
        %2437 = vmatmul.bf16.gmra.mxu0 %v2404
        %v2438 = vpop.f32.mrf.mxu0
        %v2439 = vadd.f32 %v2386, %v2438
        %v2440 = vpop.f32.mrf.mxu0
        %v2441 = vadd.f32 %v2386, %v2440
        %2442 = vmatmul.bf16.gmra.mxu0 %v2407
        %v2443 = vpop.f32.mrf.mxu0
        %v2444 = vadd.f32 %v2386, %v2443
        %v2445 = vpop.f32.mrf.mxu0
        %v2446 = vadd.f32 %v2386, %v2445
        %2447 = vmatmul.bf16.gmra.mxu0 %v2410
        %v2448 = vpop.f32.mrf.mxu0
        %v2449 = vadd.f32 %v2386, %v2448
        %v2450 = vpop.f32.mrf.mxu0
        %v2451 = vadd.f32 %v2386, %v2450
        %2452 = vmatmul.bf16.gmra.mxu0 %v2413
        %v2453 = vpop.f32.mrf.mxu0
        %v2454 = vadd.f32 %v2386, %v2453
        %v2455 = vpop.f32.mrf.mxu0
        %v2456 = vadd.f32 %v2386, %v2455
        %2457 = vmatmul.bf16.gmra.mxu0 %v2416
        %v2458 = vpop.f32.mrf.mxu0
        %v2459 = vadd.f32 %v2386, %v2458
        %v2460 = vpop.f32.mrf.mxu0
        %v2461 = vadd.f32 %v2386, %v2460
        %2462 = vmatmul.bf16.gmra.mxu0 %v2419
        %v2463 = vpop.f32.mrf.mxu0
        %v2464 = vadd.f32 %v2386, %v2463
        %v2465 = vpop.f32.mrf.mxu0
        %v2466 = vadd.f32 %v2386, %v2465
        %2467 = vmatmul.bf16.gmra.mxu0 %v2422
        %v2468 = vpop.f32.mrf.mxu0
        %v2469 = vadd.f32 %v2386, %v2468
        %v2470 = vpop.f32.mrf.mxu0
        %v2471 = vadd.f32 %v2386, %v2470
        %2472 = vdwg.mxu0
        %v2473 = vtanh.pop %v2434
        %v2474 = vtanh.pop %v2436
        %v2475 = vtanh.pop %v2439
        %v2476 = vtanh.pop %v2441
        %v2477 = vtanh.pop %v2444
        %v2478 = vtanh.pop %v2446
        %v2479 = vtanh.pop %v2449
        %v2480 = vtanh.pop %v2451
        %v2481 = vtanh.pop %v2454
        %v2482 = vtanh.pop %v2456
        %v2483 = vtanh.pop %v2459
        %v2484 = vtanh.pop %v2461
        %v2485 = vtanh.pop %v2464
        %v2486 = vtanh.pop %v2466
        %v2487 = vtanh.pop %v2469
        %v2488 = vtanh.pop %v2471
        %v2489 = vpack.c.bf16 %v2473, %v2473
        %v2490 = vpack.c.bf16 %v2474, %v2474
        %v2491 = vpack.c.bf16 %v2475, %v2475
        %v2492 = vpack.c.bf16 %v2476, %v2476
        %v2493 = vpack.c.bf16 %v2477, %v2477
        %v2494 = vpack.c.bf16 %v2478, %v2478
        %v2495 = vpack.c.bf16 %v2479, %v2479
        %v2496 = vpack.c.bf16 %v2480, %v2480
        %v2497 = vpack.c.bf16 %v2481, %v2481
        %v2498 = vpack.c.bf16 %v2482, %v2482
        %v2499 = vpack.c.bf16 %v2483, %v2483
        %v2500 = vpack.c.bf16 %v2484, %v2484
        %v2501 = vpack.c.bf16 %v2485, %v2485
        %v2502 = vpack.c.bf16 %v2486, %v2486
        %v2503 = vpack.c.bf16 %v2487, %v2487
        %v2504 = vpack.c.bf16 %v2488, %v2488
        %2505 = vst [vmem:[%s654] sm:$0xf] %v2489
        %2506 = vst [vmem:[%s654 + $0x4] sm:$0xf] %v2490
        %2507 = vst [vmem:[%s654 + $0x8] sm:$0xf] %v2491
        %2508 = vst [vmem:[%s654 + $0xc] sm:$0xf] %v2492
        %2509 = vst [vmem:[%s654 + $0x10] sm:$0xf] %v2493
        %2510 = vst [vmem:[%s654 + $0x14] sm:$0xf] %v2494
        %2511 = vst [vmem:[%s654 + $0x18] sm:$0xf] %v2495
        %2512 = vst [vmem:[%s654 + $0x1c] sm:$0xf] %v2496
        %2513 = vst [vmem:[%s654 + $0x20] sm:$0xf] %v2497
        %2514 = vst [vmem:[%s654 + $0x24] sm:$0xf] %v2498
        %2515 = vst [vmem:[%s654 + $0x28] sm:$0xf] %v2499
        %2516 = vst [vmem:[%s654 + $0x2c] sm:$0xf] %v2500
        %2517 = vst [vmem:[%s654 + $0x30] sm:$0xf] %v2501
        %2518 = vst [vmem:[%s654 + $0x34] sm:$0xf] %v2502
        %2519 = vst [vmem:[%s654 + $0x38] sm:$0xf] %v2503
        %2520 = vst [vmem:[%s654 + $0x3c] sm:$0xf] %v2504
        %s2521 = smul.u32 16, %s26
        %p2522 = scmp.lt.s32.totalorder %s25, 1
        %s2523 = scalar_select %p2522, %s25, 1
        %p2524 = scmp.lt.s32.totalorder %s2521, 15
        %s2525 = scalar_select %p2524, %s2521, 15
        %s2526 = smul.addr %s2523, 16
        %s2527 = sadd.s32 %s2525, %s2526
        %s2528 = smul.addr %s2527, 4
        %s2529 = scalar_lea.vmem %s10, %s2528
        // Predicated region
        $region102: #{bidaf_forward.3} parent=96 // pred_check
          %p2530 = pneg %p277
        $region103: #{bidaf_forward.3} parent=96 // pred_check_branch
          %2532 = sbr.rel (%p2530) target = $region105
        $region104: #{bidaf_forward.3} parent=96 // pred_region
          %s2533 = smul.u32 16, %s26
        $region105: #{bidaf_forward.3} parent=96 // pred_fallthru
          _
      $region97: #{bidaf_forward.3} parent=5 // pred_fallthru
        _
      %p2534 = scmp.le.s32.totalorder 2, %s16
      // Predicated region
      $region106: #{bidaf_forward.3} parent=5 // pred_check
        %p2535 = pneg %p2534
      $region107: #{bidaf_forward.3} parent=5 // pred_check_branch
        %2537 = sbr.rel (%p2535) target = $region109
      $region108: #{bidaf_forward.3} parent=5 // pred_region
        %s2538 = ssub.s32 %s16, 2
        // Predicated region
        $region110: #{bidaf_forward.3} parent=108 // pred_check
          %p2539 = pneg %p283
        $region111: #{bidaf_forward.3} parent=108 // pred_check_branch
          %2541 = sbr.rel (%p2539) target = $region113
        $region112: #{bidaf_forward.3} parent=108 // pred_region
          %s2542 = smul.u32 16, %s28
          %p2543 = scmp.lt.s32.totalorder %s27, 1
          %s2544 = scalar_select %p2543, %s27, 1
          %p2545 = scmp.lt.s32.totalorder %s2542, 15
          %s2546 = scalar_select %p2545, %s2542, 15
          %s2547 = smul.addr %s2544, 16
          %s2548 = sadd.s32 %s2546, %s2547
          %s2549 = smul.addr %s2548, 4
          %s2550 = scalar_lea.vmem %s10, %s2549
        $region113: #{bidaf_forward.3} parent=108 // pred_fallthru
          _
      $region109: #{bidaf_forward.3} parent=5 // pred_fallthru
        _
    $region6: #{bidaf_forward.3} parent=1 // loop_footer
      %s20 = sadd.s32 1, %s16
    $region7: #{bidaf_forward.3} parent=1 // loop_footer_branch
      %15 = sbr.rel target = $region3
    $region8: #{bidaf_forward.3} parent=1 // loop_exit
      _

// kernel: bidaf_forward.5
$region0: #{bidaf_forward.5}
  #allocation0 [shape = 'u32[]', space=smem, size = 0x4, offset = 0x4, fixed_abs, tag = 'smem constant byte address 0x4 - core index']
  #allocation1 [shape = 'u32[72,128]{1,0:T(1,128)}', space=vmem, size = 0x9000, scoped, tag = 'internal scratch']
  %s0 = inlined_call_operand.vmem [shape: bf16[2,128,128], index: 0, kind: input, shape index: {}]
  %s1 = inlined_call_operand.vmem [shape: bf16[2,128,128], index: 1, kind: input, shape index: {}]
  %s2 = inlined_call_operand.vmem [shape: f32[2,1,128], index: 2, kind: input, shape index: {}]
  %s3 = inlined_call_operand.vmem [shape: f32[2,1,128], index: 3, kind: input, shape index: {}]
  %s4 = inlined_call_operand.vmem [shape: bf16[2,128], index: 4, kind: input, shape index: {}]
  %s5 = inlined_call_operand.vmem [shape: bf16[6,128,128], index: 5, kind: input, shape index: {}]
  %s6 = inlined_call_operand.vmem [shape: f32[3,128], index: 6, kind: input, shape index: {}]
  %s7 = inlined_call_operand.vmem [shape: bf16[4,128], index: 7, kind: input, shape index: {}]
  %s8 = inlined_call_operand.vmem [shape: f32[2,1,128], index: 8, kind: output, shape index: {0}]
  %s9 = inlined_call_operand.vmem [shape: f32[2,1,128], index: 9, kind: output, shape index: {1}]
  %10 = xla_tuple %s8, %s9
  %s11 = sld [smem:[#allocation0]]
  $region73: #{bidaf_forward.5} parent=0
    _
  %s13 = ssub.s32 1, %s11
  %s14 = scalar_select 0, %s13, %s11
  loop: start=0, step=1, limit=4
  $region2: #{bidaf_forward.5} parent=0 // loop_pre_header
    _
  $region3: #{bidaf_forward.5} parent=0 // loop_header
    %s16 = sphi 0, %s20
    %p17 = scmp.ge.s32.totalorder %s16, 4
    %s26 = sphi 0, %s28
    %s29 = sphi 0, %s26
    %s30 = sphi 0, %s29
    %s46 = sphi 0, %s30
    %s52 = sphi 0, %s54
    %s55 = sphi 0, %s52
    %s56 = sphi 0, %s55
    %s72 = sphi 0, %s56
    %s78 = sphi 0, %s80
    %s81 = sphi 0, %s78
    %s82 = sphi 0, %s81
    %s98 = sphi 0, %s82
    %s104 = sphi 0, %s106
    %s107 = sphi 0, %s104
    %s108 = sphi 0, %s107
    %s124 = sphi 0, %s108
    %s128 = sphi 0, %s128
    %s130 = sphi 0, %s128
    %s131 = sphi 0, %s130
    %s145 = sphi 0, %s131
    %s149 = sphi 0, %s149
    %s151 = sphi 0, %s149
    %s152 = sphi 0, %s151
    %s166 = sphi 0, %s152
    %s170 = sphi 0, %s170
    %s172 = sphi 0, %s170
    %s173 = sphi 0, %s172
    %s187 = sphi 0, %s173
    %s191 = sphi 0, %s191
    %s193 = sphi 0, %s191
    %s194 = sphi 0, %s193
    %s208 = sphi 0, %s194
    %s214 = sphi 0, %s216
    %s217 = sphi 0, %s214
    %s218 = sphi 0, %s217
    %s234 = sphi 0, %s218
    %s240 = sphi 0, %s242
    %s243 = sphi 0, %s240
    %s244 = sphi 0, %s243
    %s260 = sphi 0, %s244
  $region4: #{bidaf_forward.5} parent=0 // loop_header_branch
    %19 = sbr.rel (%p17) target = $region8
  $region5: #{bidaf_forward.5} parent=0 // loop_body
    %s21 = ssub.s32 %s16, 1
    %s22 = ssub.s32 %s16, 2
    %s23 = sadd.s32 %s16, 1
    %s24 = ssub.s32 %s16, %s23
    %p25 = scmp.eq.s32.totalorder %s24, 0
    %s27 = sadd.s32 %s26, 1
    %s28 = scalar_select %p25, %s26, %s27
    %p31 = pneg %p25
    %p32 = scmp.eq.s32.totalorder %s16, 1
    %p33 = por %p31, %p32
    %p34 = scmp.ne.s32.totalorder %s26, %s29
    %p35 = scmp.eq.s32.totalorder %s16, 0
    %p36 = por %p34, %p35
    %p37 = scmp.ne.s32.totalorder %s26, %s29
    %p38 = scmp.eq.s32.totalorder %s21, 1
    %p39 = por %p37, %p38
    %p40 = scmp.ne.s32.totalorder %s29, %s30
    %p41 = scmp.eq.s32.totalorder %s21, 0
    %p42 = por %p40, %p41
    %p43 = scmp.ne.s32.totalorder %s29, %s30
    %p44 = scmp.eq.s32.totalorder %s22, 1
    %p45 = por %p43, %p44
    %p47 = scmp.ne.s32.totalorder %s30, %s46
    %p48 = scmp.eq.s32.totalorder %s22, 0
    %p49 = por %p47, %p48
    %s50 = ssub.s32 %s16, %s23
    %p51 = scmp.eq.s32.totalorder %s50, 0
    %s53 = sadd.s32 %s52, 1
    %s54 = scalar_select %p51, %s52, %s53
    %p57 = pneg %p51
    %p58 = scmp.eq.s32.totalorder %s16, 1
    %p59 = por %p57, %p58
    %p60 = scmp.ne.s32.totalorder %s52, %s55
    %p61 = scmp.eq.s32.totalorder %s16, 0
    %p62 = por %p60, %p61
    %p63 = scmp.ne.s32.totalorder %s52, %s55
    %p64 = scmp.eq.s32.totalorder %s21, 1
    %p65 = por %p63, %p64
    %p66 = scmp.ne.s32.totalorder %s55, %s56
    %p67 = scmp.eq.s32.totalorder %s21, 0
    %p68 = por %p66, %p67
    %p69 = scmp.ne.s32.totalorder %s55, %s56
    %p70 = scmp.eq.s32.totalorder %s22, 1
    %p71 = por %p69, %p70
    %p73 = scmp.ne.s32.totalorder %s56, %s72
    %p74 = scmp.eq.s32.totalorder %s22, 0
    %p75 = por %p73, %p74
    %s76 = ssub.s32 %s16, %s23
    %p77 = scmp.eq.s32.totalorder %s76, 0
    %s79 = sadd.s32 %s78, 1
    %s80 = scalar_select %p77, %s78, %s79
    %p83 = pneg %p77
    %p84 = scmp.eq.s32.totalorder %s16, 1
    %p85 = por %p83, %p84
    %p86 = scmp.ne.s32.totalorder %s78, %s81
    %p87 = scmp.eq.s32.totalorder %s16, 0
    %p88 = por %p86, %p87
    %p89 = scmp.ne.s32.totalorder %s78, %s81
    %p90 = scmp.eq.s32.totalorder %s21, 1
    %p91 = por %p89, %p90
    %p92 = scmp.ne.s32.totalorder %s81, %s82
    %p93 = scmp.eq.s32.totalorder %s21, 0
    %p94 = por %p92, %p93
    %p95 = scmp.ne.s32.totalorder %s81, %s82
    %p96 = scmp.eq.s32.totalorder %s22, 1
    %p97 = por %p95, %p96
    %p99 = scmp.ne.s32.totalorder %s82, %s98
    %p100 = scmp.eq.s32.totalorder %s22, 0
    %p101 = por %p99, %p100
    %s102 = ssub.s32 %s16, %s23
    %p103 = scmp.eq.s32.totalorder %s102, 0
    %s105 = sadd.s32 %s104, 1
    %s106 = scalar_select %p103, %s104, %s105
    %p109 = pneg %p103
    %p110 = scmp.eq.s32.totalorder %s16, 1
    %p111 = por %p109, %p110
    %p112 = scmp.ne.s32.totalorder %s104, %s107
    %p113 = scmp.eq.s32.totalorder %s16, 0
    %p114 = por %p112, %p113
    %p115 = scmp.ne.s32.totalorder %s104, %s107
    %p116 = scmp.eq.s32.totalorder %s21, 1
    %p117 = por %p115, %p116
    %p118 = scmp.ne.s32.totalorder %s107, %s108
    %p119 = scmp.eq.s32.totalorder %s21, 0
    %p120 = por %p118, %p119
    %p121 = scmp.ne.s32.totalorder %s107, %s108
    %p122 = scmp.eq.s32.totalorder %s22, 1
    %p123 = por %p121, %p122
    %p125 = scmp.ne.s32.totalorder %s108, %s124
    %p126 = scmp.eq.s32.totalorder %s22, 0
    %p127 = por %p125, %p126
    %s129 = sadd.s32 %s128, 1
    %p132 = scmp.eq.s32.totalorder %s16, 1
    %p133 = scmp.ne.s32.totalorder %s128, %s130
    %p134 = scmp.eq.s32.totalorder %s16, 0
    %p135 = por %p133, %p134
    %p136 = scmp.ne.s32.totalorder %s128, %s130
    %p137 = scmp.eq.s32.totalorder %s21, 1
    %p138 = por %p136, %p137
    %p139 = scmp.ne.s32.totalorder %s130, %s131
    %p140 = scmp.eq.s32.totalorder %s21, 0
    %p141 = por %p139, %p140
    %p142 = scmp.ne.s32.totalorder %s130, %s131
    %p143 = scmp.eq.s32.totalorder %s22, 1
    %p144 = por %p142, %p143
    %p146 = scmp.ne.s32.totalorder %s131, %s145
    %p147 = scmp.eq.s32.totalorder %s22, 0
    %p148 = por %p146, %p147
    %s150 = sadd.s32 %s149, 1
    %p153 = scmp.eq.s32.totalorder %s16, 1
    %p154 = scmp.ne.s32.totalorder %s149, %s151
    %p155 = scmp.eq.s32.totalorder %s16, 0
    %p156 = por %p154, %p155
    %p157 = scmp.ne.s32.totalorder %s149, %s151
    %p158 = scmp.eq.s32.totalorder %s21, 1
    %p159 = por %p157, %p158
    %p160 = scmp.ne.s32.totalorder %s151, %s152
    %p161 = scmp.eq.s32.totalorder %s21, 0
    %p162 = por %p160, %p161
    %p163 = scmp.ne.s32.totalorder %s151, %s152
    %p164 = scmp.eq.s32.totalorder %s22, 1
    %p165 = por %p163, %p164
    %p167 = scmp.ne.s32.totalorder %s152, %s166
    %p168 = scmp.eq.s32.totalorder %s22, 0
    %p169 = por %p167, %p168
    %s171 = sadd.s32 %s170, 1
    %p174 = scmp.eq.s32.totalorder %s16, 1
    %p175 = scmp.ne.s32.totalorder %s170, %s172
    %p176 = scmp.eq.s32.totalorder %s16, 0
    %p177 = por %p175, %p176
    %p178 = scmp.ne.s32.totalorder %s170, %s172
    %p179 = scmp.eq.s32.totalorder %s21, 1
    %p180 = por %p178, %p179
    %p181 = scmp.ne.s32.totalorder %s172, %s173
    %p182 = scmp.eq.s32.totalorder %s21, 0
    %p183 = por %p181, %p182
    %p184 = scmp.ne.s32.totalorder %s172, %s173
    %p185 = scmp.eq.s32.totalorder %s22, 1
    %p186 = por %p184, %p185
    %p188 = scmp.ne.s32.totalorder %s173, %s187
    %p189 = scmp.eq.s32.totalorder %s22, 0
    %p190 = por %p188, %p189
    %s192 = sadd.s32 %s191, 1
    %p195 = scmp.eq.s32.totalorder %s16, 1
    %p196 = scmp.ne.s32.totalorder %s191, %s193
    %p197 = scmp.eq.s32.totalorder %s16, 0
    %p198 = por %p196, %p197
    %p199 = scmp.ne.s32.totalorder %s191, %s193
    %p200 = scmp.eq.s32.totalorder %s21, 1
    %p201 = por %p199, %p200
    %p202 = scmp.ne.s32.totalorder %s193, %s194
    %p203 = scmp.eq.s32.totalorder %s21, 0
    %p204 = por %p202, %p203
    %p205 = scmp.ne.s32.totalorder %s193, %s194
    %p206 = scmp.eq.s32.totalorder %s22, 1
    %p207 = por %p205, %p206
    %p209 = scmp.ne.s32.totalorder %s194, %s208
    %p210 = scmp.eq.s32.totalorder %s22, 0
    %p211 = por %p209, %p210
    %s212 = ssub.s32 %s16, %s23
    %p213 = scmp.eq.s32.totalorder %s212, 0
    %s215 = sadd.s32 %s214, 1
    %s216 = scalar_select %p213, %s214, %s215
    %p219 = pneg %p213
    %p220 = scmp.eq.s32.totalorder %s16, 1
    %p221 = por %p219, %p220
    %p222 = scmp.ne.s32.totalorder %s214, %s217
    %p223 = scmp.eq.s32.totalorder %s16, 0
    %p224 = por %p222, %p223
    %p225 = scmp.ne.s32.totalorder %s214, %s217
    %p226 = scmp.eq.s32.totalorder %s21, 1
    %p227 = por %p225, %p226
    %p228 = scmp.ne.s32.totalorder %s217, %s218
    %p229 = scmp.eq.s32.totalorder %s21, 0
    %p230 = por %p228, %p229
    %p231 = scmp.ne.s32.totalorder %s217, %s218
    %p232 = scmp.eq.s32.totalorder %s22, 1
    %p233 = por %p231, %p232
    %p235 = scmp.ne.s32.totalorder %s218, %s234
    %p236 = scmp.eq.s32.totalorder %s22, 0
    %p237 = por %p235, %p236
    %s238 = ssub.s32 %s16, %s23
    %p239 = scmp.eq.s32.totalorder %s238, 0
    %s241 = sadd.s32 %s240, 1
    %s242 = scalar_select %p239, %s240, %s241
    %p245 = pneg %p239
    %p246 = scmp.eq.s32.totalorder %s16, 1
    %p247 = por %p245, %p246
    %p248 = scmp.ne.s32.totalorder %s240, %s243
    %p249 = scmp.eq.s32.totalorder %s16, 0
    %p250 = por %p248, %p249
    %p251 = scmp.ne.s32.totalorder %s240, %s243
    %p252 = scmp.eq.s32.totalorder %s21, 1
    %p253 = por %p251, %p252
    %p254 = scmp.ne.s32.totalorder %s243, %s244
    %p255 = scmp.eq.s32.totalorder %s21, 0
    %p256 = por %p254, %p255
    %p257 = scmp.ne.s32.totalorder %s243, %s244
    %p258 = scmp.eq.s32.totalorder %s22, 1
    %p259 = por %p257, %p258
    %p261 = scmp.ne.s32.totalorder %s244, %s260
    %p262 = scmp.eq.s32.totalorder %s22, 0
    %p263 = por %p261, %p262
    %p264 = scmp.le.s32.totalorder 1, %s16
    %p265 = scmp.lt.s32.totalorder %s16, 3
    %p266 = pnand %p264, %p265
    %p267 = pneg %p266
    // Predicated region
    $region9: #{bidaf_forward.5} parent=5 // pred_check
      _
    $region10: #{bidaf_forward.5} parent=5 // pred_check_branch
      %269 = sbr.rel (%p266) target = $region12
    $region11: #{bidaf_forward.5} parent=5 // pred_region
      %s270 = ssub.s32 %s16, 1
      // Predicated region
      $region13: #{bidaf_forward.5} parent=11 // pred_check
        %p271 = pneg %p141
      $region14: #{bidaf_forward.5} parent=11 // pred_check_branch
        %273 = sbr.rel (%p271) target = $region16
      $region15: #{bidaf_forward.5} parent=11 // pred_region
        _
      $region16: #{bidaf_forward.5} parent=11 // pred_fallthru
        _
      // Predicated region
      $region17: #{bidaf_forward.5} parent=11 // pred_check
        %p274 = pneg %p162
      $region18: #{bidaf_forward.5} parent=11 // pred_check_branch
        %276 = sbr.rel (%p274) target = $region20
      $region19: #{bidaf_forward.5} parent=11 // pred_region
        _
      $region20: #{bidaf_forward.5} parent=11 // pred_fallthru
        _
      // Predicated region
      $region21: #{bidaf_forward.5} parent=11 // pred_check
        %p277 = pneg %p183
      $region22: #{bidaf_forward.5} parent=11 // pred_check_branch
        %279 = sbr.rel (%p277) target = $region24
      $region23: #{bidaf_forward.5} parent=11 // pred_region
        _
      $region24: #{bidaf_forward.5} parent=11 // pred_fallthru
        _
      // Predicated region
      $region25: #{bidaf_forward.5} parent=11 // pred_check
        %p280 = pneg %p204
      $region26: #{bidaf_forward.5} parent=11 // pred_check_branch
        %282 = sbr.rel (%p280) target = $region28
      $region27: #{bidaf_forward.5} parent=11 // pred_region
        _
      $region28: #{bidaf_forward.5} parent=11 // pred_fallthru
        _
    $region12: #{bidaf_forward.5} parent=5 // pred_fallthru
      _
    %p283 = scmp.lt.s32.totalorder %s16, 2
    // Predicated region
    $region29: #{bidaf_forward.5} parent=5 // pred_check
      %p284 = pneg %p283
    $region30: #{bidaf_forward.5} parent=5 // pred_check_branch
      %286 = sbr.rel (%p284) target = $region32
    $region31: #{bidaf_forward.5} parent=5 // pred_region
      // Predicated region
      $region33: #{bidaf_forward.5} parent=31 // pred_check
        %p287 = pneg %p36
      $region34: #{bidaf_forward.5} parent=31 // pred_check_branch
        %289 = sbr.rel (%p287) target = $region36
      $region35: #{bidaf_forward.5} parent=31 // pred_region
        %p290 = scmp.lt.s32.totalorder %s16, 1
        %s291 = scalar_select %p290, %s16, 1
        %s292 = smul.addr %s291, 16
        %s293 = smul.addr %s292, 4
        %s294 = scalar_lea.vmem %s0, %s293
      $region36: #{bidaf_forward.5} parent=31 // pred_fallthru
        _
      // Predicated region
      $region37: #{bidaf_forward.5} parent=31 // pred_check
        %p295 = pneg %p62
      $region38: #{bidaf_forward.5} parent=31 // pred_check_branch
        %297 = sbr.rel (%p295) target = $region40
      $region39: #{bidaf_forward.5} parent=31 // pred_region
        %p298 = scmp.lt.s32.totalorder %s16, 1
        %s299 = scalar_select %p298, %s16, 1
        %s300 = smul.addr %s299, 16
        %s301 = smul.addr %s300, 4
        %s302 = scalar_lea.vmem %s1, %s301
      $region40: #{bidaf_forward.5} parent=31 // pred_fallthru
        _
      // Predicated region
      $region41: #{bidaf_forward.5} parent=31 // pred_check
        %p303 = pneg %p88
      $region42: #{bidaf_forward.5} parent=31 // pred_check_branch
        %305 = sbr.rel (%p303) target = $region44
      $region43: #{bidaf_forward.5} parent=31 // pred_region
        %p306 = scmp.lt.s32.totalorder %s16, 1
        %s307 = scalar_select %p306, %s16, 1
        %s308 = scalar_lea.vmem %s2, %s307
      $region44: #{bidaf_forward.5} parent=31 // pred_fallthru
        _
      // Predicated region
      $region45: #{bidaf_forward.5} parent=31 // pred_check
        %p309 = pneg %p114
      $region46: #{bidaf_forward.5} parent=31 // pred_check_branch
        %311 = sbr.rel (%p309) target = $region48
      $region47: #{bidaf_forward.5} parent=31 // pred_region
        %p312 = scmp.lt.s32.totalorder %s16, 1
        %s313 = scalar_select %p312, %s16, 1
        %s314 = scalar_lea.vmem %s3, %s313
      $region48: #{bidaf_forward.5} parent=31 // pred_fallthru
        _
    $region32: #{bidaf_forward.5} parent=5 // pred_fallthru
      _
    %p315 = scmp.le.s32.totalorder 1, %s16
    %p316 = scmp.lt.s32.totalorder %s16, 3
    %p317 = pnand %p315, %p316
    %p318 = pneg %p317
    // Predicated region
    $region49: #{bidaf_forward.5} parent=5 // pred_check
      _
    $region50: #{bidaf_forward.5} parent=5 // pred_check_branch
      %320 = sbr.rel (%p317) target = $region52
    $region51: #{bidaf_forward.5} parent=5 // pred_region
      %s321 = ssub.s32 %s16, 1
      %p322 = scmp.lt.s32.totalorder %s21, 1
      %s323 = scalar_select %p322, %s21, 1
      %s324 = smul.addr %s323, 16
      %s325 = smul.addr %s324, 4
      %s326 = scalar_lea.vmem %s0, %s325
      %p327 = pneg %p42
      %p328 = pneg %p39
      %p329 = scmp.lt.s32.totalorder %s21, 1
      %s330 = scalar_select %p329, %s21, 1
      %s331 = smul.addr %s330, 16
      %s332 = smul.addr %s331, 4
      %s333 = scalar_lea.vmem %s1, %s332
      %p334 = pneg %p68
      %p335 = pneg %p65
      %p336 = scmp.lt.s32.totalorder %s21, 1
      %s337 = scalar_select %p336, %s21, 1
      %s338 = scalar_lea.vmem %s2, %s337
      %p339 = pneg %p94
      %p340 = pneg %p91
      %p341 = scmp.lt.s32.totalorder %s21, 1
      %s342 = scalar_select %p341, %s21, 1
      %s343 = scalar_lea.vmem %s3, %s342
      %p344 = pneg %p120
      %p345 = pneg %p117
      %p346 = pneg %p141
      %p347 = pneg %p138
      %p348 = pneg %p162
      %p349 = pneg %p159
      %p350 = pneg %p183
      %p351 = pneg %p180
      %p352 = pneg %p204
      %p353 = pneg %p201
      %p354 = pneg %p230
      %p355 = pneg %p227
      %p356 = scmp.lt.s32.totalorder %s21, 1
      %s357 = scalar_select %p356, %s21, 1
      %s358 = scalar_lea.vmem %s8, %s357
      %p359 = pneg %p256
      %p360 = pneg %p253
      %p361 = scmp.lt.s32.totalorder %s21, 1
      %s362 = scalar_select %p361, %s21, 1
      %s363 = scalar_lea.vmem %s9, %s362
      %p364 = scmp.lt.s32.totalorder %s21, 1
      %s365 = scalar_select %p364, %s21, 1
      %s366 = smul.addr %s365, 16
      %s367 = smul.addr %s366, 4
      %s368 = scalar_lea.vmem %s0, %s367
      %p369 = scmp.lt.s32.totalorder %s21, 1
      %s370 = scalar_select %p369, %s21, 1
      %s371 = smul.addr %s370, 16
      %s372 = smul.addr %s371, 4
      %s373 = scalar_lea.vmem %s1, %s372
      %p374 = scmp.lt.s32.totalorder %s21, 1
      %s375 = scalar_select %p374, %s21, 1
      %s376 = scalar_lea.vmem %s2, %s375
      %p377 = scmp.lt.s32.totalorder %s21, 1
      %s378 = scalar_select %p377, %s21, 1
      %s379 = scalar_lea.vmem %s3, %s378
      %p380 = scmp.lt.s32.totalorder %s21, 1
      %s381 = scalar_select %p380, %s21, 1
      %s382 = scalar_lea.vmem %s8, %s381
      %p383 = scmp.lt.s32.totalorder %s21, 1
      %s384 = scalar_select %p383, %s21, 1
      %s385 = scalar_lea.vmem %s9, %s384
      %v386 = vld [vmem:[%s368] sm:$0xf]
      %v387 = vld [vmem:[%s368 + $0x4] sm:$0xf]
      %v388 = vld [vmem:[%s368 + $0x8] sm:$0xf]
      %v389 = vld [vmem:[%s368 + $0xc] sm:$0xf]
      %v390 = vld [vmem:[%s368 + $0x10] sm:$0xf]
      %v391 = vld [vmem:[%s368 + $0x14] sm:$0xf]
      %v392 = vld [vmem:[%s368 + $0x18] sm:$0xf]
      %v393 = vld [vmem:[%s368 + $0x1c] sm:$0xf]
      %v394 = vld [vmem:[%s368 + $0x20] sm:$0xf]
      %v395 = vld [vmem:[%s368 + $0x24] sm:$0xf]
      %v396 = vld [vmem:[%s368 + $0x28] sm:$0xf]
      %v397 = vld [vmem:[%s368 + $0x2c] sm:$0xf]
      %v398 = vld [vmem:[%s368 + $0x30] sm:$0xf]
      %v399 = vld [vmem:[%s368 + $0x34] sm:$0xf]
      %v400 = vld [vmem:[%s368 + $0x38] sm:$0xf]
      %v401 = vld [vmem:[%s368 + $0x3c] sm:$0xf]
      %v402 = vld [vmem:[%s373] sm:$0xf]
      %v403 = vld [vmem:[%s373 + $0x4] sm:$0xf]
      %v404 = vld [vmem:[%s373 + $0x8] sm:$0xf]
      %v405 = vld [vmem:[%s373 + $0xc] sm:$0xf]
      %v406 = vld [vmem:[%s373 + $0x10] sm:$0xf]
      %v407 = vld [vmem:[%s373 + $0x14] sm:$0xf]
      %v408 = vld [vmem:[%s373 + $0x18] sm:$0xf]
      %v409 = vld [vmem:[%s373 + $0x1c] sm:$0xf]
      %v410 = vld [vmem:[%s373 + $0x20] sm:$0xf]
      %v411 = vld [vmem:[%s373 + $0x24] sm:$0xf]
      %v412 = vld [vmem:[%s373 + $0x28] sm:$0xf]
      %v413 = vld [vmem:[%s373 + $0x2c] sm:$0xf]
      %v414 = vld [vmem:[%s373 + $0x30] sm:$0xf]
      %v415 = vld [vmem:[%s373 + $0x34] sm:$0xf]
      %v416 = vld [vmem:[%s373 + $0x38] sm:$0xf]
      %v417 = vld [vmem:[%s373 + $0x3c] sm:$0xf]
      %v418 = vld [vmem:[%s376] sm:$0x1]
      %v419 = vld [vmem:[%s379] sm:$0x1]
      %v420 = vld [vmem:[%s4] sm:$0x1]
      %v421 = vld [vmem:[%s6] sm:$0x7]
      %v422 = vld [vmem:[%s7] sm:$0x3]
      %v439 = vunpack.c.l.b16 %v402
      %v440 = vunpack.c.l.b16 %v403
      %v441 = vunpack.c.l.b16 %v404
      %v442 = vunpack.c.l.b16 %v405
      %v443 = vunpack.c.l.b16 %v406
      %v444 = vunpack.c.l.b16 %v407
      %v445 = vunpack.c.l.b16 %v408
      %v446 = vunpack.c.l.b16 %v409
      %v447 = vunpack.c.l.b16 %v410
      %v448 = vunpack.c.l.b16 %v411
      %v449 = vunpack.c.l.b16 %v412
      %v450 = vunpack.c.l.b16 %v413
      %v451 = vunpack.c.l.b16 %v414
      %v452 = vunpack.c.l.b16 %v415
      %v453 = vunpack.c.l.b16 %v416
      %v454 = vunpack.c.l.b16 %v417
      %v455 = vpack.c.b16 %v440, %v439
      %v456 = vpack.c.b16 %v442, %v441
      %v457 = vpack.c.b16 %v444, %v443
      %v458 = vpack.c.b16 %v446, %v445
      %v459 = vpack.c.b16 %v448, %v447
      %v460 = vpack.c.b16 %v450, %v449
      %v461 = vpack.c.b16 %v452, %v451
      %v462 = vpack.c.b16 %v454, %v453
      %471 = vmatpush.bf16.xpose.msra.mxu0 %v462
      %472 = vmatpush.bf16.xpose.msra.mxu0 %v461
      %473 = vmatpush.bf16.xpose.msra.mxu0 %v460
      %474 = vmatpush.bf16.xpose.msra.mxu0 %v459
      %475 = vmatpush.bf16.xpose.msra.mxu0 %v458
      %476 = vmatpush.bf16.xpose.msra.mxu0 %v457
      %477 = vmatpush.bf16.xpose.msra.mxu0 %v456
      %478 = vmatpush.bf16.xpose.msra.mxu0 %v455
      %479 = vmatmul.bf16.gmra.mxu0 %v420
      %v480 = vpop.f32.mrf.mxu0
      %v481 = vadd.f32 0.0, %v480
      %v482 = vpop.f32.mrf.mxu0
      %483 = vdwg.mxu0
      %v485 = vshrl.u32 %v420, 16
      %v486 = vpack.i.b16 %v485, %v485
      %v488 = vperm.slane %v486, 0
      %v489 = vunpack.c.l.bf16 %v386
      %v490 = vunpack.c.l.bf16 %v387
      %v491 = vunpack.c.l.bf16 %v388
      %v492 = vunpack.c.l.bf16 %v389
      %v493 = vunpack.c.l.bf16 %v390
      %v494 = vunpack.c.l.bf16 %v391
      %v495 = vunpack.c.l.bf16 %v392
      %v496 = vunpack.c.l.bf16 %v393
      %v497 = vunpack.c.l.bf16 %v394
      %v498 = vunpack.c.l.bf16 %v395
      %v499 = vunpack.c.l.bf16 %v396
      %v500 = vunpack.c.l.bf16 %v397
      %v501 = vunpack.c.l.bf16 %v398
      %v502 = vunpack.c.l.bf16 %v399
      %v503 = vunpack.c.l.bf16 %v400
      %v504 = vunpack.c.l.bf16 %v401
      %v505 = vunpack.c.l.bf16 %v488
      %v506 = vmul.f32 %v489, %v505
      %v507 = vmul.f32 %v490, %v505
      %v508 = vmul.f32 %v491, %v505
      %v509 = vmul.f32 %v492, %v505
      %v510 = vmul.f32 %v493, %v505
      %v511 = vmul.f32 %v494, %v505
      %v512 = vmul.f32 %v495, %v505
      %v513 = vmul.f32 %v496, %v505
      %v514 = vmul.f32 %v497, %v505
      %v515 = vmul.f32 %v498, %v505
      %v516 = vmul.f32 %v499, %v505
      %v517 = vmul.f32 %v500, %v505
      %v518 = vmul.f32 %v501, %v505
      %v519 = vmul.f32 %v502, %v505
      %v520 = vmul.f32 %v503, %v505
      %v521 = vmul.f32 %v504, %v505
      %v522 = vpack.c.bf16 %v507, %v506
      %v523 = vpack.c.bf16 %v509, %v508
      %v524 = vpack.c.bf16 %v511, %v510
      %v525 = vpack.c.bf16 %v513, %v512
      %v526 = vpack.c.bf16 %v515, %v514
      %v527 = vpack.c.bf16 %v517, %v516
      %v528 = vpack.c.bf16 %v519, %v518
      %v529 = vpack.c.bf16 %v521, %v520
      %v530 = vperm.slane %v481, 0
      %531 = vmatpush.bf16.xpose.msra.mxu0 %v462
      %532 = vmatpush.bf16.xpose.msra.mxu0 %v461
      %533 = vmatpush.bf16.xpose.msra.mxu0 %v460
      %534 = vmatpush.bf16.xpose.msra.mxu0 %v459
      %535 = vmatpush.bf16.xpose.msra.mxu0 %v458
      %536 = vmatpush.bf16.xpose.msra.mxu0 %v457
      %537 = vmatpush.bf16.xpose.msra.mxu0 %v456
      %538 = vmatpush.bf16.xpose.msra.mxu0 %v455
      %539 = vmatmul.bf16.gmra.mxu0 %v522
      %v540 = vpop.f32.mrf.mxu0
      %v541 = vadd.f32 %v530, %v540
      %v542 = vpop.f32.mrf.mxu0
      %v543 = vadd.f32 %v530, %v542
      %544 = vmatmul.bf16.gmra.mxu0 %v523
      %v545 = vpop.f32.mrf.mxu0
      %v546 = vadd.f32 %v530, %v545
      %v547 = vpop.f32.mrf.mxu0
      %v548 = vadd.f32 %v530, %v547
      %549 = vmatmul.bf16.gmra.mxu0 %v524
      %v550 = vpop.f32.mrf.mxu0
      %v551 = vadd.f32 %v530, %v550
      %v552 = vpop.f32.mrf.mxu0
      %v553 = vadd.f32 %v530, %v552
      %554 = vmatmul.bf16.gmra.mxu0 %v525
      %v555 = vpop.f32.mrf.mxu0
      %v556 = vadd.f32 %v530, %v555
      %v557 = vpop.f32.mrf.mxu0
      %v558 = vadd.f32 %v530, %v557
      %559 = vmatmul.bf16.gmra.mxu0 %v526
      %v560 = vpop.f32.mrf.mxu0
      %v561 = vadd.f32 %v530, %v560
      %v562 = vpop.f32.mrf.mxu0
      %v563 = vadd.f32 %v530, %v562
      %564 = vmatmul.bf16.gmra.mxu0 %v527
      %v565 = vpop.f32.mrf.mxu0
      %v566 = vadd.f32 %v530, %v565
      %v567 = vpop.f32.mrf.mxu0
      %v568 = vadd.f32 %v530, %v567
      %569 = vmatmul.bf16.gmra.mxu0 %v528
      %v570 = vpop.f32.mrf.mxu0
      %v571 = vadd.f32 %v530, %v570
      %v572 = vpop.f32.mrf.mxu0
      %v573 = vadd.f32 %v530, %v572
      %574 = vmatmul.bf16.gmra.mxu0 %v529
      %v575 = vpop.f32.mrf.mxu0
      %v576 = vadd.f32 %v530, %v575
      %v577 = vpop.f32.mrf.mxu0
      %v578 = vadd.f32 %v530, %v577
      %579 = vdwg.mxu0
      %vm580 = vcmp.gt.f32.partialorder %v418, 0.0
      %v581 = vsel %vm580, 1, 0
      %v582 = vperm.slane %v581, 0
      %vm583 = vcmp.eq.s32.totalorder %v582, 1
      %v584 = vsel %vm583, %v541, -1e+30
      %v585 = vsel %vm583, %v543, -1e+30
      %v586 = vsel %vm583, %v546, -1e+30
      %v587 = vsel %vm583, %v548, -1e+30
      %v588 = vsel %vm583, %v551, -1e+30
      %v589 = vsel %vm583, %v553, -1e+30
      %v590 = vsel %vm583, %v556, -1e+30
      %v591 = vsel %vm583, %v558, -1e+30
      %v592 = vsel %vm583, %v561, -1e+30
      %v593 = vsel %vm583, %v563, -1e+30
      %v594 = vsel %vm583, %v566, -1e+30
      %v595 = vsel %vm583, %v568, -1e+30
      %v596 = vsel %vm583, %v571, -1e+30
      %v597 = vsel %vm583, %v573, -1e+30
      %v598 = vsel %vm583, %v576, -1e+30
      %v599 = vsel %vm583, %v578, -1e+30
      %600 = vmax.xlane.f32.xlu0 %v584
      %v601 = vpop.xlane.xlu0 %600
      %602 = vmax.xlane.f32.xlu0 %v585
      %v603 = vpop.xlane.xlu0 %602
      %604 = vmax.xlane.f32.xlu0 %v586
      %v605 = vpop.xlane.xlu0 %604
      %606 = vmax.xlane.f32.xlu0 %v587
      %v607 = vpop.xlane.xlu0 %606
      %608 = vmax.xlane.f32.xlu0 %v588
      %v609 = vpop.xlane.xlu0 %608
      %610 = vmax.xlane.f32.xlu0 %v589
      %v611 = vpop.xlane.xlu0 %610
      %612 = vmax.xlane.f32.xlu0 %v590
      %v613 = vpop.xlane.xlu0 %612
      %614 = vmax.xlane.f32.xlu0 %v591
      %v615 = vpop.xlane.xlu0 %614
      %616 = vmax.xlane.f32.xlu0 %v592
      %v617 = vpop.xlane.xlu0 %616
      %618 = vmax.xlane.f32.xlu0 %v593
      %v619 = vpop.xlane.xlu0 %618
      %620 = vmax.xlane.f32.xlu0 %v594
      %v621 = vpop.xlane.xlu0 %620
      %622 = vmax.xlane.f32.xlu0 %v595
      %v623 = vpop.xlane.xlu0 %622
      %624 = vmax.xlane.f32.xlu0 %v596
      %v625 = vpop.xlane.xlu0 %624
      %626 = vmax.xlane.f32.xlu0 %v597
      %v627 = vpop.xlane.xlu0 %626
      %628 = vmax.xlane.f32.xlu0 %v598
      %v629 = vpop.xlane.xlu0 %628
      %630 = vmax.xlane.f32.xlu0 %v599
      %v631 = vpop.xlane.xlu0 %630
      %v632 = vsub.f32 %v584, %v601
      %v633 = vsub.f32 %v585, %v603
      %v634 = vsub.f32 %v586, %v605
      %v635 = vsub.f32 %v587, %v607
      %v636 = vsub.f32 %v588, %v609
      %v637 = vsub.f32 %v589, %v611
      %v638 = vsub.f32 %v590, %v613
      %v639 = vsub.f32 %v591, %v615
      %v640 = vsub.f32 %v592, %v617
      %v641 = vsub.f32 %v593, %v619
      %v642 = vsub.f32 %v594, %v621
      %v643 = vsub.f32 %v595, %v623
      %v644 = vsub.f32 %v596, %v625
      %v645 = vsub.f32 %v597, %v627
      %v646 = vsub.f32 %v598, %v629
      %v647 = vsub.f32 %v599, %v631
      %v648 = vmul.f32 %v632, 1.442695
      %v649 = vpow.pop %v648
      %v650 = vmul.f32 %v633, 1.442695
      %v651 = vpow.pop %v650
      %v652 = vmul.f32 %v634, 1.442695
      %v653 = vpow.pop %v652
      %v654 = vmul.f32 %v635, 1.442695
      %v655 = vpow.pop %v654
      %v656 = vmul.f32 %v636, 1.442695
      %v657 = vpow.pop %v656
      %v658 = vmul.f32 %v637, 1.442695
      %v659 = vpow.pop %v658
      %v660 = vmul.f32 %v638, 1.442695
      %v661 = vpow.pop %v660
      %v662 = vmul.f32 %v639, 1.442695
      %v663 = vpow.pop %v662
      %v664 = vmul.f32 %v640, 1.442695
      %v665 = vpow.pop %v664
      %v666 = vmul.f32 %v641, 1.442695
      %v667 = vpow.pop %v666
      %v668 = vmul.f32 %v642, 1.442695
      %v669 = vpow.pop %v668
      %v670 = vmul.f32 %v643, 1.442695
      %v671 = vpow.pop %v670
      %v672 = vmul.f32 %v644, 1.442695
      %v673 = vpow.pop %v672
      %v674 = vmul.f32 %v645, 1.442695
      %v675 = vpow.pop %v674
      %v676 = vmul.f32 %v646, 1.442695
      %v677 = vpow.pop %v676
      %v678 = vmul.f32 %v647, 1.442695
      %v679 = vpow.pop %v678
      %680 = vadd.xlane.f32.xlu0 %v649
      %v681 = vpop.xlane.xlu0 %680
      %682 = vadd.xlane.f32.xlu0 %v651
      %v683 = vpop.xlane.xlu0 %682
      %684 = vadd.xlane.f32.xlu0 %v653
      %v685 = vpop.xlane.xlu0 %684
      %686 = vadd.xlane.f32.xlu0 %v655
      %v687 = vpop.xlane.xlu0 %686
      %688 = vadd.xlane.f32.xlu0 %v657
      %v689 = vpop.xlane.xlu0 %688
      %690 = vadd.xlane.f32.xlu0 %v659
      %v691 = vpop.xlane.xlu0 %690
      %692 = vadd.xlane.f32.xlu0 %v661
      %v693 = vpop.xlane.xlu0 %692
      %694 = vadd.xlane.f32.xlu0 %v663
      %v695 = vpop.xlane.xlu0 %694
      %696 = vadd.xlane.f32.xlu0 %v665
      %v697 = vpop.xlane.xlu0 %696
      %698 = vadd.xlane.f32.xlu0 %v667
      %v699 = vpop.xlane.xlu0 %698
      %700 = vadd.xlane.f32.xlu0 %v669
      %v701 = vpop.xlane.xlu0 %700
      %702 = vadd.xlane.f32.xlu0 %v671
      %v703 = vpop.xlane.xlu0 %702
      %704 = vadd.xlane.f32.xlu0 %v673
      %v705 = vpop.xlane.xlu0 %704
      %706 = vadd.xlane.f32.xlu0 %v675
      %v707 = vpop.xlane.xlu0 %706
      %708 = vadd.xlane.f32.xlu0 %v677
      %v709 = vpop.xlane.xlu0 %708
      %710 = vadd.xlane.f32.xlu0 %v679
      %v711 = vpop.xlane.xlu0 %710
      %v712 = vrcp.pop %v681
      %v713 = vrcp.pop %v683
      %v714 = vrcp.pop %v685
      %v715 = vrcp.pop %v687
      %v716 = vrcp.pop %v689
      %v717 = vrcp.pop %v691
      %v718 = vrcp.pop %v693
      %v719 = vrcp.pop %v695
      %v720 = vrcp.pop %v697
      %v721 = vrcp.pop %v699
      %v722 = vrcp.pop %v701
      %v723 = vrcp.pop %v703
      %v724 = vrcp.pop %v705
      %v725 = vrcp.pop %v707
      %v726 = vrcp.pop %v709
      %v727 = vrcp.pop %v711
      %v728 = vmul.f32 %v649, %v712
      %v729 = vmul.f32 %v651, %v713
      %v730 = vmul.f32 %v653, %v714
      %v731 = vmul.f32 %v655, %v715
      %v732 = vmul.f32 %v657, %v716
      %v733 = vmul.f32 %v659, %v717
      %v734 = vmul.f32 %v661, %v718
      %v735 = vmul.f32 %v663, %v719
      %v736 = vmul.f32 %v665, %v720
      %v737 = vmul.f32 %v667, %v721
      %v738 = vmul.f32 %v669, %v722
      %v739 = vmul.f32 %v671, %v723
      %v740 = vmul.f32 %v673, %v724
      %v741 = vmul.f32 %v675, %v725
      %v742 = vmul.f32 %v677, %v726
      %v743 = vmul.f32 %v679, %v727
      %v744 = vpack.c.bf16 %v729, %v728
      %v745 = vpack.c.bf16 %v731, %v730
      %v746 = vpack.c.bf16 %v733, %v732
      %v747 = vpack.c.bf16 %v735, %v734
      %v748 = vpack.c.bf16 %v737, %v736
      %v749 = vpack.c.bf16 %v739, %v738
      %v750 = vpack.c.bf16 %v741, %v740
      %v751 = vpack.c.bf16 %v743, %v742
      %752 = vmatpush.bf16.msra.mxu0 %v462
      %753 = vmatpush.bf16.msra.mxu0 %v461
      %754 = vmatpush.bf16.msra.mxu0 %v460
      %755 = vmatpush.bf16.msra.mxu0 %v459
      %756 = vmatpush.bf16.msra.mxu0 %v458
      %757 = vmatpush.bf16.msra.mxu0 %v457
      %758 = vmatpush.bf16.msra.mxu0 %v456
      %759 = vmatpush.bf16.msra.mxu0 %v455
      %760 = vmatmul.bf16.gmra.mxu0 %v744
      %v761 = vpop.f32.mrf.mxu0
      %v762 = vadd.f32 0.0, %v761
      %v763 = vpop.f32.mrf.mxu0
      %v764 = vadd.f32 0.0, %v763
      %765 = vmatmul.bf16.gmra.mxu0 %v745
      %v766 = vpop.f32.mrf.mxu0
      %v767 = vadd.f32 0.0, %v766
      %v768 = vpop.f32.mrf.mxu0
      %v769 = vadd.f32 0.0, %v768
      %770 = vmatmul.bf16.gmra.mxu0 %v746
      %v771 = vpop.f32.mrf.mxu0
      %v772 = vadd.f32 0.0, %v771
      %v773 = vpop.f32.mrf.mxu0
      %v774 = vadd.f32 0.0, %v773
      %775 = vmatmul.bf16.gmra.mxu0 %v747
      %v776 = vpop.f32.mrf.mxu0
      %v777 = vadd.f32 0.0, %v776
      %v778 = vpop.f32.mrf.mxu0
      %v779 = vadd.f32 0.0, %v778
      %780 = vmatmul.bf16.gmra.mxu0 %v748
      %v781 = vpop.f32.mrf.mxu0
      %v782 = vadd.f32 0.0, %v781
      %v783 = vpop.f32.mrf.mxu0
      %v784 = vadd.f32 0.0, %v783
      %785 = vmatmul.bf16.gmra.mxu0 %v749
      %v786 = vpop.f32.mrf.mxu0
      %v787 = vadd.f32 0.0, %v786
      %v788 = vpop.f32.mrf.mxu0
      %v789 = vadd.f32 0.0, %v788
      %790 = vmatmul.bf16.gmra.mxu0 %v750
      %v791 = vpop.f32.mrf.mxu0
      %v792 = vadd.f32 0.0, %v791
      %v793 = vpop.f32.mrf.mxu0
      %v794 = vadd.f32 0.0, %v793
      %795 = vmatmul.bf16.gmra.mxu0 %v751
      %v796 = vpop.f32.mrf.mxu0
      %v797 = vadd.f32 0.0, %v796
      %v798 = vpop.f32.mrf.mxu0
      %v799 = vadd.f32 0.0, %v798
      %800 = vdwg.mxu0
      %v801 = vpack.c.bf16 %v764, %v762
      %v802 = vpack.c.bf16 %v769, %v767
      %v803 = vpack.c.bf16 %v774, %v772
      %v804 = vpack.c.bf16 %v779, %v777
      %v805 = vpack.c.bf16 %v784, %v782
      %v806 = vpack.c.bf16 %v789, %v787
      %v807 = vpack.c.bf16 %v794, %v792
      %v808 = vpack.c.bf16 %v799, %v797
      %v809 = vld [vmem:[%s5] sm:$0xf]
      %v810 = vld [vmem:[%s5 + $0x4] sm:$0xf]
      %v811 = vld [vmem:[%s5 + $0x8] sm:$0xf]
      %v812 = vld [vmem:[%s5 + $0xc] sm:$0xf]
      %v813 = vld [vmem:[%s5 + $0x10] sm:$0xf]
      %v814 = vld [vmem:[%s5 + $0x14] sm:$0xf]
      %v815 = vld [vmem:[%s5 + $0x18] sm:$0xf]
      %v816 = vld [vmem:[%s5 + $0x1c] sm:$0xf]
      %v817 = vld [vmem:[%s5 + $0x20] sm:$0xf]
      %v818 = vld [vmem:[%s5 + $0x24] sm:$0xf]
      %v819 = vld [vmem:[%s5 + $0x28] sm:$0xf]
      %v820 = vld [vmem:[%s5 + $0x2c] sm:$0xf]
      %v821 = vld [vmem:[%s5 + $0x30] sm:$0xf]
      %v822 = vld [vmem:[%s5 + $0x34] sm:$0xf]
      %v823 = vld [vmem:[%s5 + $0x38] sm:$0xf]
      %v824 = vld [vmem:[%s5 + $0x3c] sm:$0xf]
      %v825 = vperm.slane %v421, 0
      %v842 = vunpack.c.l.b16 %v809
      %v843 = vunpack.c.l.b16 %v810
      %v844 = vunpack.c.l.b16 %v811
      %v845 = vunpack.c.l.b16 %v812
      %v846 = vunpack.c.l.b16 %v813
      %v847 = vunpack.c.l.b16 %v814
      %v848 = vunpack.c.l.b16 %v815
      %v849 = vunpack.c.l.b16 %v816
      %v850 = vunpack.c.l.b16 %v817
      %v851 = vunpack.c.l.b16 %v818
      %v852 = vunpack.c.l.b16 %v819
      %v853 = vunpack.c.l.b16 %v820
      %v854 = vunpack.c.l.b16 %v821
      %v855 = vunpack.c.l.b16 %v822
      %v856 = vunpack.c.l.b16 %v823
      %v857 = vunpack.c.l.b16 %v824
      %v858 = vpack.c.b16 %v843, %v842
      %v859 = vpack.c.b16 %v845, %v844
      %v860 = vpack.c.b16 %v847, %v846
      %v861 = vpack.c.b16 %v849, %v848
      %v862 = vpack.c.b16 %v851, %v850
      %v863 = vpack.c.b16 %v853, %v852
      %v864 = vpack.c.b16 %v855, %v854
      %v865 = vpack.c.b16 %v857, %v856
      %874 = vmatpush.bf16.msra.mxu0 %v865
      %875 = vmatpush.bf16.msra.mxu0 %v864
      %876 = vmatpush.bf16.msra.mxu0 %v863
      %877 = vmatpush.bf16.msra.mxu0 %v862
      %878 = vmatpush.bf16.msra.mxu0 %v861
      %879 = vmatpush.bf16.msra.mxu0 %v860
      %880 = vmatpush.bf16.msra.mxu0 %v859
      %881 = vmatpush.bf16.msra.mxu0 %v858
      %882 = vmatmul.bf16.gmra.mxu0 %v801
      %v883 = vpop.f32.mrf.mxu0
      %v884 = vadd.f32 %v825, %v883
      %v885 = vpop.f32.mrf.mxu0
      %v886 = vadd.f32 %v825, %v885
      %887 = vmatmul.bf16.gmra.mxu0 %v802
      %v888 = vpop.f32.mrf.mxu0
      %v889 = vadd.f32 %v825, %v888
      %v890 = vpop.f32.mrf.mxu0
      %v891 = vadd.f32 %v825, %v890
      %892 = vmatmul.bf16.gmra.mxu0 %v803
      %v893 = vpop.f32.mrf.mxu0
      %v894 = vadd.f32 %v825, %v893
      %v895 = vpop.f32.mrf.mxu0
      %v896 = vadd.f32 %v825, %v895
      %897 = vmatmul.bf16.gmra.mxu0 %v804
      %v898 = vpop.f32.mrf.mxu0
      %v899 = vadd.f32 %v825, %v898
      %v900 = vpop.f32.mrf.mxu0
      %v901 = vadd.f32 %v825, %v900
      %902 = vmatmul.bf16.gmra.mxu0 %v805
      %v903 = vpop.f32.mrf.mxu0
      %v904 = vadd.f32 %v825, %v903
      %v905 = vpop.f32.mrf.mxu0
      %v906 = vadd.f32 %v825, %v905
      %907 = vmatmul.bf16.gmra.mxu0 %v806
      %v908 = vpop.f32.mrf.mxu0
      %v909 = vadd.f32 %v825, %v908
      %v910 = vpop.f32.mrf.mxu0
      %v911 = vadd.f32 %v825, %v910
      %912 = vmatmul.bf16.gmra.mxu0 %v807
      %v913 = vpop.f32.mrf.mxu0
      %v914 = vadd.f32 %v825, %v913
      %v915 = vpop.f32.mrf.mxu0
      %v916 = vadd.f32 %v825, %v915
      %917 = vmatmul.bf16.gmra.mxu0 %v808
      %v918 = vpop.f32.mrf.mxu0
      %v919 = vadd.f32 %v825, %v918
      %v920 = vpop.f32.mrf.mxu0
      %v921 = vadd.f32 %v825, %v920
      %922 = vdwg.mxu0
      %v923 = vtanh.pop %v884
      %v924 = vtanh.pop %v886
      %v925 = vtanh.pop %v889
      %v926 = vtanh.pop %v891
      %v927 = vtanh.pop %v894
      %v928 = vtanh.pop %v896
      %v929 = vtanh.pop %v899
      %v930 = vtanh.pop %v901
      %v931 = vtanh.pop %v904
      %v932 = vtanh.pop %v906
      %v933 = vtanh.pop %v909
      %v934 = vtanh.pop %v911
      %v935 = vtanh.pop %v914
      %v936 = vtanh.pop %v916
      %v937 = vtanh.pop %v919
      %v938 = vtanh.pop %v921
      %v939 = vpack.c.bf16 %v924, %v923
      %v940 = vpack.c.bf16 %v926, %v925
      %v941 = vpack.c.bf16 %v928, %v927
      %v942 = vpack.c.bf16 %v930, %v929
      %v943 = vpack.c.bf16 %v932, %v931
      %v944 = vpack.c.bf16 %v934, %v933
      %v945 = vpack.c.bf16 %v936, %v935
      %v946 = vpack.c.bf16 %v938, %v937
      %s947 = scalar_lea.vmem %s5, 64
      %v948 = vld [vmem:[%s947] sm:$0xf]
      %v949 = vld [vmem:[%s947 + $0x4] sm:$0xf]
      %v950 = vld [vmem:[%s947 + $0x8] sm:$0xf]
      %v951 = vld [vmem:[%s947 + $0xc] sm:$0xf]
      %v952 = vld [vmem:[%s947 + $0x10] sm:$0xf]
      %v953 = vld [vmem:[%s947 + $0x14] sm:$0xf]
      %v954 = vld [vmem:[%s947 + $0x18] sm:$0xf]
      %v955 = vld [vmem:[%s947 + $0x1c] sm:$0xf]
      %v956 = vld [vmem:[%s947 + $0x20] sm:$0xf]
      %v957 = vld [vmem:[%s947 + $0x24] sm:$0xf]
      %v958 = vld [vmem:[%s947 + $0x28] sm:$0xf]
      %v959 = vld [vmem:[%s947 + $0x2c] sm:$0xf]
      %v960 = vld [vmem:[%s947 + $0x30] sm:$0xf]
      %v961 = vld [vmem:[%s947 + $0x34] sm:$0xf]
      %v962 = vld [vmem:[%s947 + $0x38] sm:$0xf]
      %v963 = vld [vmem:[%s947 + $0x3c] sm:$0xf]
      %v964 = vperm.slane %v421, 1
      %v981 = vunpack.c.l.b16 %v948
      %v982 = vunpack.c.l.b16 %v949
      %v983 = vunpack.c.l.b16 %v950
      %v984 = vunpack.c.l.b16 %v951
      %v985 = vunpack.c.l.b16 %v952
      %v986 = vunpack.c.l.b16 %v953
      %v987 = vunpack.c.l.b16 %v954
      %v988 = vunpack.c.l.b16 %v955
      %v989 = vunpack.c.l.b16 %v956
      %v990 = vunpack.c.l.b16 %v957
      %v991 = vunpack.c.l.b16 %v958
      %v992 = vunpack.c.l.b16 %v959
      %v993 = vunpack.c.l.b16 %v960
      %v994 = vunpack.c.l.b16 %v961
      %v995 = vunpack.c.l.b16 %v962
      %v996 = vunpack.c.l.b16 %v963
      %v997 = vpack.c.b16 %v982, %v981
      %v998 = vpack.c.b16 %v984, %v983
      %v999 = vpack.c.b16 %v986, %v985
      %v1000 = vpack.c.b16 %v988, %v987
      %v1001 = vpack.c.b16 %v990, %v989
      %v1002 = vpack.c.b16 %v992, %v991
      %v1003 = vpack.c.b16 %v994, %v993
      %v1004 = vpack.c.b16 %v996, %v995
      %1013 = vmatpush.bf16.msra.mxu0 %v1004
      %1014 = vmatpush.bf16.msra.mxu0 %v1003
      %1015 = vmatpush.bf16.msra.mxu0 %v1002
      %1016 = vmatpush.bf16.msra.mxu0 %v1001
      %1017 = vmatpush.bf16.msra.mxu0 %v1000
      %1018 = vmatpush.bf16.msra.mxu0 %v999
      %1019 = vmatpush.bf16.msra.mxu0 %v998
      %1020 = vmatpush.bf16.msra.mxu0 %v997
      %1021 = vmatmul.bf16.gmra.mxu0 %v939
      %v1022 = vpop.f32.mrf.mxu0
      %v1023 = vadd.f32 %v964, %v1022
      %v1024 = vpop.f32.mrf.mxu0
      %v1025 = vadd.f32 %v964, %v1024
      %1026 = vmatmul.bf16.gmra.mxu0 %v940
      %v1027 = vpop.f32.mrf.mxu0
      %v1028 = vadd.f32 %v964, %v1027
      %v1029 = vpop.f32.mrf.mxu0
      %v1030 = vadd.f32 %v964, %v1029
      %1031 = vmatmul.bf16.gmra.mxu0 %v941
      %v1032 = vpop.f32.mrf.mxu0
      %v1033 = vadd.f32 %v964, %v1032
      %v1034 = vpop.f32.mrf.mxu0
      %v1035 = vadd.f32 %v964, %v1034
      %1036 = vmatmul.bf16.gmra.mxu0 %v942
      %v1037 = vpop.f32.mrf.mxu0
      %v1038 = vadd.f32 %v964, %v1037
      %v1039 = vpop.f32.mrf.mxu0
      %v1040 = vadd.f32 %v964, %v1039
      %1041 = vmatmul.bf16.gmra.mxu0 %v943
      %v1042 = vpop.f32.mrf.mxu0
      %v1043 = vadd.f32 %v964, %v1042
      %v1044 = vpop.f32.mrf.mxu0
      %v1045 = vadd.f32 %v964, %v1044
      %1046 = vmatmul.bf16.gmra.mxu0 %v944
      %v1047 = vpop.f32.mrf.mxu0
      %v1048 = vadd.f32 %v964, %v1047
      %v1049 = vpop.f32.mrf.mxu0
      %v1050 = vadd.f32 %v964, %v1049
      %1051 = vmatmul.bf16.gmra.mxu0 %v945
      %v1052 = vpop.f32.mrf.mxu0
      %v1053 = vadd.f32 %v964, %v1052
      %v1054 = vpop.f32.mrf.mxu0
      %v1055 = vadd.f32 %v964, %v1054
      %1056 = vmatmul.bf16.gmra.mxu0 %v946
      %v1057 = vpop.f32.mrf.mxu0
      %v1058 = vadd.f32 %v964, %v1057
      %v1059 = vpop.f32.mrf.mxu0
      %v1060 = vadd.f32 %v964, %v1059
      %1061 = vdwg.mxu0
      %v1062 = vtanh.pop %v1023
      %v1063 = vtanh.pop %v1025
      %v1064 = vtanh.pop %v1028
      %v1065 = vtanh.pop %v1030
      %v1066 = vtanh.pop %v1033
      %v1067 = vtanh.pop %v1035
      %v1068 = vtanh.pop %v1038
      %v1069 = vtanh.pop %v1040
      %v1070 = vtanh.pop %v1043
      %v1071 = vtanh.pop %v1045
      %v1072 = vtanh.pop %v1048
      %v1073 = vtanh.pop %v1050
      %v1074 = vtanh.pop %v1053
      %v1075 = vtanh.pop %v1055
      %v1076 = vtanh.pop %v1058
      %v1077 = vtanh.pop %v1060
      %v1078 = vpack.c.bf16 %v1062, %v1062
      %v1079 = vpack.c.bf16 %v1063, %v1063
      %v1080 = vpack.c.bf16 %v1064, %v1064
      %v1081 = vpack.c.bf16 %v1065, %v1065
      %v1082 = vpack.c.bf16 %v1066, %v1066
      %v1083 = vpack.c.bf16 %v1067, %v1067
      %v1084 = vpack.c.bf16 %v1068, %v1068
      %v1085 = vpack.c.bf16 %v1069, %v1069
      %v1086 = vpack.c.bf16 %v1070, %v1070
      %v1087 = vpack.c.bf16 %v1071, %v1071
      %v1088 = vpack.c.bf16 %v1072, %v1072
      %v1089 = vpack.c.bf16 %v1073, %v1073
      %v1090 = vpack.c.bf16 %v1074, %v1074
      %v1091 = vpack.c.bf16 %v1075, %v1075
      %v1092 = vpack.c.bf16 %v1076, %v1076
      %v1093 = vpack.c.bf16 %v1077, %v1077
      %1095 = vst [vmem:[#allocation1] ss:$4 sm:$0xff] %v422
      %v1096 = vld.sshfl [vmem:[#allocation1] sm:$0xff pattern:$0x73625140]
      %v1097 = vshrl.u32 %v1096, 16
      %1100 = vmatpush.bf16.xpose.msra.mxu0 %v808
      %1101 = vmatpush.bf16.xpose.msra.mxu0 %v807
      %1102 = vmatpush.bf16.xpose.msra.mxu0 %v806
      %1103 = vmatpush.bf16.xpose.msra.mxu0 %v805
      %1104 = vmatpush.bf16.xpose.msra.mxu0 %v804
      %1105 = vmatpush.bf16.xpose.msra.mxu0 %v803
      %1106 = vmatpush.bf16.xpose.msra.mxu0 %v802
      %1107 = vmatpush.bf16.xpose.msra.mxu0 %v801
      %1108 = vmatmul.bf16.gmra.mxu0 %v1097
      %v1109 = vpop.f32.mrf.mxu0
      %v1110 = vadd.f32 0.0, %v1109
      %v1111 = vpop.f32.mrf.mxu0
      %1112 = vdwg.mxu0
      %v1129 = vunpack.c.l.b16 %v1078
      %v1130 = vunpack.c.l.b16 %v1079
      %v1131 = vunpack.c.l.b16 %v1080
      %v1132 = vunpack.c.l.b16 %v1081
      %v1133 = vunpack.c.l.b16 %v1082
      %v1134 = vunpack.c.l.b16 %v1083
      %v1135 = vunpack.c.l.b16 %v1084
      %v1136 = vunpack.c.l.b16 %v1085
      %v1137 = vunpack.c.l.b16 %v1086
      %v1138 = vunpack.c.l.b16 %v1087
      %v1139 = vunpack.c.l.b16 %v1088
      %v1140 = vunpack.c.l.b16 %v1089
      %v1141 = vunpack.c.l.b16 %v1090
      %v1142 = vunpack.c.l.b16 %v1091
      %v1143 = vunpack.c.l.b16 %v1092
      %v1144 = vunpack.c.l.b16 %v1093
      %v1145 = vpack.c.b16 %v1130, %v1129
      %v1146 = vpack.c.b16 %v1132, %v1131
      %v1147 = vpack.c.b16 %v1134, %v1133
      %v1148 = vpack.c.b16 %v1136, %v1135
      %v1149 = vpack.c.b16 %v1138, %v1137
      %v1150 = vpack.c.b16 %v1140, %v1139
      %v1151 = vpack.c.b16 %v1142, %v1141
      %v1152 = vpack.c.b16 %v1144, %v1143
      %1161 = vmatpush.bf16.xpose.msra.mxu0 %v1152
      %1162 = vmatpush.bf16.xpose.msra.mxu0 %v1151
      %1163 = vmatpush.bf16.xpose.msra.mxu0 %v1150
      %1164 = vmatpush.bf16.xpose.msra.mxu0 %v1149
      %1165 = vmatpush.bf16.xpose.msra.mxu0 %v1148
      %1166 = vmatpush.bf16.xpose.msra.mxu0 %v1147
      %1167 = vmatpush.bf16.xpose.msra.mxu0 %v1146
      %1168 = vmatpush.bf16.xpose.msra.mxu0 %v1145
      %1169 = vmatmul.bf16.gmra.mxu0 %v422
      %v1170 = vpop.f32.mrf.mxu0
      %v1171 = vadd.f32 %v1110, %v1170
      %v1172 = vpop.f32.mrf.mxu0
      %1173 = vdwg.mxu0
      %vm1174 = vcmp.gt.f32.partialorder %v419, 0.0
      %v1175 = vsel %vm1174, %v1171, -1e+30
      %vm1176 = vcmask 1040384
      %v1177 = vsel %vm1176, %v1175, -inf
      %1178 = vmax.xlane.f32.xlu0 %v1177
      %v1179 = vpop.xlane.xlu0 %1178
      %v1180 = vsub.f32 %v1175, %v1179
      %v1181 = vmul.f32 %v1180, 1.442695
      %v1182 = vpow.pop %v1181
      %v1183 = vsel %vm1176, %v1182, 0.0
      %1184 = vadd.xlane.f32.xlu0 %v1183
      %v1185 = vpop.xlane.xlu0 %1184
      %v1186 = vrcp.pop %v1185
      %v1187 = vmul.f32 %v1185, %v1186
      %v1188 = vsub.f32 1.0, %v1187
      %v1189 = vmul.f32 %v1186, %v1188
      %v1190 = vadd.f32 %v1186, %v1189
      %vm1191 = vweird.f32 %v1185
      %vm1192 = vweird.f32 %v1186
      %vm1193 = vmor %vm1191, %vm1192
      %v1194 = vsel %vm1193, %v1186, %v1190
      %v1195 = vand.u32 2147483647, %v1185
      %vm1196 = vcmp.eq.f32.partialorder %v1195, 8.507059e+37
      %v1197 = vand.u32 %v1185, 2147483648
      %v1198 = vor.u32 1.1754944e-38, %v1197
      %v1199 = vsel %vm1196, %v1198, %v1194
      %v1200 = vmul.f32 %v1182, %v1199
      %1201 = vst [vmem:[%s382] sm:$0x1] %v1200
      %v1202 = vpack.c.bf16 %v1200, %v1200
      %1203 = vmatpush.bf16.msra.mxu0 %v1152
      %1204 = vmatpush.bf16.msra.mxu0 %v1151
      %1205 = vmatpush.bf16.msra.mxu0 %v1150
      %1206 = vmatpush.bf16.msra.mxu0 %v1149
      %1207 = vmatpush.bf16.msra.mxu0 %v1148
      %1208 = vmatpush.bf16.msra.mxu0 %v1147
      %1209 = vmatpush.bf16.msra.mxu0 %v1146
      %1210 = vmatpush.bf16.msra.mxu0 %v1145
      %1211 = vmatmul.bf16.gmra.mxu0 %v1202
      %v1212 = vpop.f32.mrf.mxu0
      %v1213 = vadd.f32 0.0, %v1212
      %v1214 = vpop.f32.mrf.mxu0
      %1215 = vdwg.mxu0
      %v1216 = vpack.c.bf16 %v1213, %v1213
      %s1217 = scalar_lea.vmem %s5, 128
      %v1218 = vld [vmem:[%s1217] sm:$0xf]
      %v1219 = vld [vmem:[%s1217 + $0x4] sm:$0xf]
      %v1220 = vld [vmem:[%s1217 + $0x8] sm:$0xf]
      %v1221 = vld [vmem:[%s1217 + $0xc] sm:$0xf]
      %v1222 = vld [vmem:[%s1217 + $0x10] sm:$0xf]
      %v1223 = vld [vmem:[%s1217 + $0x14] sm:$0xf]
      %v1224 = vld [vmem:[%s1217 + $0x18] sm:$0xf]
      %v1225 = vld [vmem:[%s1217 + $0x1c] sm:$0xf]
      %v1226 = vld [vmem:[%s1217 + $0x20] sm:$0xf]
      %v1227 = vld [vmem:[%s1217 + $0x24] sm:$0xf]
      %v1228 = vld [vmem:[%s1217 + $0x28] sm:$0xf]
      %v1229 = vld [vmem:[%s1217 + $0x2c] sm:$0xf]
      %v1230 = vld [vmem:[%s1217 + $0x30] sm:$0xf]
      %v1231 = vld [vmem:[%s1217 + $0x34] sm:$0xf]
      %v1232 = vld [vmem:[%s1217 + $0x38] sm:$0xf]
      %v1233 = vld [vmem:[%s1217 + $0x3c] sm:$0xf]
      %s1234 = scalar_lea.vmem %s5, 192
      %v1235 = vld [vmem:[%s1234] sm:$0xf]
      %v1236 = vld [vmem:[%s1234 + $0x4] sm:$0xf]
      %v1237 = vld [vmem:[%s1234 + $0x8] sm:$0xf]
      %v1238 = vld [vmem:[%s1234 + $0xc] sm:$0xf]
      %v1239 = vld [vmem:[%s1234 + $0x10] sm:$0xf]
      %v1240 = vld [vmem:[%s1234 + $0x14] sm:$0xf]
      %v1241 = vld [vmem:[%s1234 + $0x18] sm:$0xf]
      %v1242 = vld [vmem:[%s1234 + $0x1c] sm:$0xf]
      %v1243 = vld [vmem:[%s1234 + $0x20] sm:$0xf]
      %v1244 = vld [vmem:[%s1234 + $0x24] sm:$0xf]
      %v1245 = vld [vmem:[%s1234 + $0x28] sm:$0xf]
      %v1246 = vld [vmem:[%s1234 + $0x2c] sm:$0xf]
      %v1247 = vld [vmem:[%s1234 + $0x30] sm:$0xf]
      %v1248 = vld [vmem:[%s1234 + $0x34] sm:$0xf]
      %v1249 = vld [vmem:[%s1234 + $0x38] sm:$0xf]
      %v1250 = vld [vmem:[%s1234 + $0x3c] sm:$0xf]
      %v1267 = vunpack.c.l.b16 %v1235
      %v1268 = vunpack.c.l.b16 %v1236
      %v1269 = vunpack.c.l.b16 %v1237
      %v1270 = vunpack.c.l.b16 %v1238
      %v1271 = vunpack.c.l.b16 %v1239
      %v1272 = vunpack.c.l.b16 %v1240
      %v1273 = vunpack.c.l.b16 %v1241
      %v1274 = vunpack.c.l.b16 %v1242
      %v1275 = vunpack.c.l.b16 %v1243
      %v1276 = vunpack.c.l.b16 %v1244
      %v1277 = vunpack.c.l.b16 %v1245
      %v1278 = vunpack.c.l.b16 %v1246
      %v1279 = vunpack.c.l.b16 %v1247
      %v1280 = vunpack.c.l.b16 %v1248
      %v1281 = vunpack.c.l.b16 %v1249
      %v1282 = vunpack.c.l.b16 %v1250
      %v1283 = vpack.c.b16 %v1268, %v1267
      %v1284 = vpack.c.b16 %v1270, %v1269
      %v1285 = vpack.c.b16 %v1272, %v1271
      %v1286 = vpack.c.b16 %v1274, %v1273
      %v1287 = vpack.c.b16 %v1276, %v1275
      %v1288 = vpack.c.b16 %v1278, %v1277
      %v1289 = vpack.c.b16 %v1280, %v1279
      %v1290 = vpack.c.b16 %v1282, %v1281
      %1299 = vmatpush.bf16.msra.mxu0 %v1290
      %1300 = vmatpush.bf16.msra.mxu0 %v1289
      %1301 = vmatpush.bf16.msra.mxu0 %v1288
      %1302 = vmatpush.bf16.msra.mxu0 %v1287
      %1303 = vmatpush.bf16.msra.mxu0 %v1286
      %1304 = vmatpush.bf16.msra.mxu0 %v1285
      %1305 = vmatpush.bf16.msra.mxu0 %v1284
      %1306 = vmatpush.bf16.msra.mxu0 %v1283
      %1307 = vmatmul.bf16.gmra.mxu0 %v1145
      %v1308 = vpop.f32.mrf.mxu0
      %v1309 = vadd.f32 0.0, %v1308
      %v1310 = vpop.f32.mrf.mxu0
      %v1311 = vadd.f32 0.0, %v1310
      %1312 = vmatmul.bf16.gmra.mxu0 %v1146
      %v1313 = vpop.f32.mrf.mxu0
      %v1314 = vadd.f32 0.0, %v1313
      %v1315 = vpop.f32.mrf.mxu0
      %v1316 = vadd.f32 0.0, %v1315
      %1317 = vmatmul.bf16.gmra.mxu0 %v1147
      %v1318 = vpop.f32.mrf.mxu0
      %v1319 = vadd.f32 0.0, %v1318
      %v1320 = vpop.f32.mrf.mxu0
      %v1321 = vadd.f32 0.0, %v1320
      %1322 = vmatmul.bf16.gmra.mxu0 %v1148
      %v1323 = vpop.f32.mrf.mxu0
      %v1324 = vadd.f32 0.0, %v1323
      %v1325 = vpop.f32.mrf.mxu0
      %v1326 = vadd.f32 0.0, %v1325
      %1327 = vmatmul.bf16.gmra.mxu0 %v1149
      %v1328 = vpop.f32.mrf.mxu0
      %v1329 = vadd.f32 0.0, %v1328
      %v1330 = vpop.f32.mrf.mxu0
      %v1331 = vadd.f32 0.0, %v1330
      %1332 = vmatmul.bf16.gmra.mxu0 %v1150
      %v1333 = vpop.f32.mrf.mxu0
      %v1334 = vadd.f32 0.0, %v1333
      %v1335 = vpop.f32.mrf.mxu0
      %v1336 = vadd.f32 0.0, %v1335
      %1337 = vmatmul.bf16.gmra.mxu0 %v1151
      %v1338 = vpop.f32.mrf.mxu0
      %v1339 = vadd.f32 0.0, %v1338
      %v1340 = vpop.f32.mrf.mxu0
      %v1341 = vadd.f32 0.0, %v1340
      %1342 = vmatmul.bf16.gmra.mxu0 %v1152
      %v1343 = vpop.f32.mrf.mxu0
      %v1344 = vadd.f32 0.0, %v1343
      %v1345 = vpop.f32.mrf.mxu0
      %v1346 = vadd.f32 0.0, %v1345
      %1347 = vdwg.mxu0
      %v1364 = vunpack.c.l.b16 %v1218
      %v1365 = vunpack.c.l.b16 %v1219
      %v1366 = vunpack.c.l.b16 %v1220
      %v1367 = vunpack.c.l.b16 %v1221
      %v1368 = vunpack.c.l.b16 %v1222
      %v1369 = vunpack.c.l.b16 %v1223
      %v1370 = vunpack.c.l.b16 %v1224
      %v1371 = vunpack.c.l.b16 %v1225
      %v1372 = vunpack.c.l.b16 %v1226
      %v1373 = vunpack.c.l.b16 %v1227
      %v1374 = vunpack.c.l.b16 %v1228
      %v1375 = vunpack.c.l.b16 %v1229
      %v1376 = vunpack.c.l.b16 %v1230
      %v1377 = vunpack.c.l.b16 %v1231
      %v1378 = vunpack.c.l.b16 %v1232
      %v1379 = vunpack.c.l.b16 %v1233
      %v1380 = vpack.c.b16 %v1365, %v1364
      %v1381 = vpack.c.b16 %v1367, %v1366
      %v1382 = vpack.c.b16 %v1369, %v1368
      %v1383 = vpack.c.b16 %v1371, %v1370
      %v1384 = vpack.c.b16 %v1373, %v1372
      %v1385 = vpack.c.b16 %v1375, %v1374
      %v1386 = vpack.c.b16 %v1377, %v1376
      %v1387 = vpack.c.b16 %v1379, %v1378
      %1396 = vmatpush.bf16.msra.mxu0 %v1387
      %1397 = vmatpush.bf16.msra.mxu0 %v1386
      %1398 = vmatpush.bf16.msra.mxu0 %v1385
      %1399 = vmatpush.bf16.msra.mxu0 %v1384
      %1400 = vmatpush.bf16.msra.mxu0 %v1383
      %1401 = vmatpush.bf16.msra.mxu0 %v1382
      %1402 = vmatpush.bf16.msra.mxu0 %v1381
      %1403 = vmatpush.bf16.msra.mxu0 %v1380
      %1404 = vmatmul.bf16.gmra.mxu0 %v801
      %v1405 = vpop.f32.mrf.mxu0
      %v1406 = vadd.f32 %v1309, %v1405
      %v1407 = vpop.f32.mrf.mxu0
      %v1408 = vadd.f32 %v1311, %v1407
      %1409 = vmatmul.bf16.gmra.mxu0 %v802
      %v1410 = vpop.f32.mrf.mxu0
      %v1411 = vadd.f32 %v1314, %v1410
      %v1412 = vpop.f32.mrf.mxu0
      %v1413 = vadd.f32 %v1316, %v1412
      %1414 = vmatmul.bf16.gmra.mxu0 %v803
      %v1415 = vpop.f32.mrf.mxu0
      %v1416 = vadd.f32 %v1319, %v1415
      %v1417 = vpop.f32.mrf.mxu0
      %v1418 = vadd.f32 %v1321, %v1417
      %1419 = vmatmul.bf16.gmra.mxu0 %v804
      %v1420 = vpop.f32.mrf.mxu0
      %v1421 = vadd.f32 %v1324, %v1420
      %v1422 = vpop.f32.mrf.mxu0
      %v1423 = vadd.f32 %v1326, %v1422
      %1424 = vmatmul.bf16.gmra.mxu0 %v805
      %v1425 = vpop.f32.mrf.mxu0
      %v1426 = vadd.f32 %v1329, %v1425
      %v1427 = vpop.f32.mrf.mxu0
      %v1428 = vadd.f32 %v1331, %v1427
      %1429 = vmatmul.bf16.gmra.mxu0 %v806
      %v1430 = vpop.f32.mrf.mxu0
      %v1431 = vadd.f32 %v1334, %v1430
      %v1432 = vpop.f32.mrf.mxu0
      %v1433 = vadd.f32 %v1336, %v1432
      %1434 = vmatmul.bf16.gmra.mxu0 %v807
      %v1435 = vpop.f32.mrf.mxu0
      %v1436 = vadd.f32 %v1339, %v1435
      %v1437 = vpop.f32.mrf.mxu0
      %v1438 = vadd.f32 %v1341, %v1437
      %1439 = vmatmul.bf16.gmra.mxu0 %v808
      %v1440 = vpop.f32.mrf.mxu0
      %v1441 = vadd.f32 %v1344, %v1440
      %v1442 = vpop.f32.mrf.mxu0
      %v1443 = vadd.f32 %v1346, %v1442
      %1444 = vdwg.mxu0
      %s1445 = scalar_lea.vmem %s5, 256
      %v1446 = vld [vmem:[%s1445] sm:$0xf]
      %v1447 = vld [vmem:[%s1445 + $0x4] sm:$0xf]
      %v1448 = vld [vmem:[%s1445 + $0x8] sm:$0xf]
      %v1449 = vld [vmem:[%s1445 + $0xc] sm:$0xf]
      %v1450 = vld [vmem:[%s1445 + $0x10] sm:$0xf]
      %v1451 = vld [vmem:[%s1445 + $0x14] sm:$0xf]
      %v1452 = vld [vmem:[%s1445 + $0x18] sm:$0xf]
      %v1453 = vld [vmem:[%s1445 + $0x1c] sm:$0xf]
      %v1454 = vld [vmem:[%s1445 + $0x20] sm:$0xf]
      %v1455 = vld [vmem:[%s1445 + $0x24] sm:$0xf]
      %v1456 = vld [vmem:[%s1445 + $0x28] sm:$0xf]
      %v1457 = vld [vmem:[%s1445 + $0x2c] sm:$0xf]
      %v1458 = vld [vmem:[%s1445 + $0x30] sm:$0xf]
      %v1459 = vld [vmem:[%s1445 + $0x34] sm:$0xf]
      %v1460 = vld [vmem:[%s1445 + $0x38] sm:$0xf]
      %v1461 = vld [vmem:[%s1445 + $0x3c] sm:$0xf]
      %v1478 = vunpack.c.l.b16 %v1446
      %v1479 = vunpack.c.l.b16 %v1447
      %v1480 = vunpack.c.l.b16 %v1448
      %v1481 = vunpack.c.l.b16 %v1449
      %v1482 = vunpack.c.l.b16 %v1450
      %v1483 = vunpack.c.l.b16 %v1451
      %v1484 = vunpack.c.l.b16 %v1452
      %v1485 = vunpack.c.l.b16 %v1453
      %v1486 = vunpack.c.l.b16 %v1454
      %v1487 = vunpack.c.l.b16 %v1455
      %v1488 = vunpack.c.l.b16 %v1456
      %v1489 = vunpack.c.l.b16 %v1457
      %v1490 = vunpack.c.l.b16 %v1458
      %v1491 = vunpack.c.l.b16 %v1459
      %v1492 = vunpack.c.l.b16 %v1460
      %v1493 = vunpack.c.l.b16 %v1461
      %v1494 = vpack.c.b16 %v1479, %v1478
      %v1495 = vpack.c.b16 %v1481, %v1480
      %v1496 = vpack.c.b16 %v1483, %v1482
      %v1497 = vpack.c.b16 %v1485, %v1484
      %v1498 = vpack.c.b16 %v1487, %v1486
      %v1499 = vpack.c.b16 %v1489, %v1488
      %v1500 = vpack.c.b16 %v1491, %v1490
      %v1501 = vpack.c.b16 %v1493, %v1492
      %1510 = vmatpush.bf16.msra.mxu0 %v1501
      %1511 = vmatpush.bf16.msra.mxu0 %v1500
      %1512 = vmatpush.bf16.msra.mxu0 %v1499
      %1513 = vmatpush.bf16.msra.mxu0 %v1498
      %1514 = vmatpush.bf16.msra.mxu0 %v1497
      %1515 = vmatpush.bf16.msra.mxu0 %v1496
      %1516 = vmatpush.bf16.msra.mxu0 %v1495
      %1517 = vmatpush.bf16.msra.mxu0 %v1494
      %1518 = vmatmul.bf16.gmra.mxu0 %v1216
      %v1519 = vpop.f32.mrf.mxu0
      %v1520 = vadd.f32 0.0, %v1519
      %v1521 = vpop.f32.mrf.mxu0
      %1522 = vdwg.mxu0
      %v1523 = vperm.slane %v1520, 0
      %v1524 = vadd.f32 %v1406, %v1523
      %v1525 = vadd.f32 %v1408, %v1523
      %v1526 = vadd.f32 %v1411, %v1523
      %v1527 = vadd.f32 %v1413, %v1523
      %v1528 = vadd.f32 %v1416, %v1523
      %v1529 = vadd.f32 %v1418, %v1523
      %v1530 = vadd.f32 %v1421, %v1523
      %v1531 = vadd.f32 %v1423, %v1523
      %v1532 = vadd.f32 %v1426, %v1523
      %v1533 = vadd.f32 %v1428, %v1523
      %v1534 = vadd.f32 %v1431, %v1523
      %v1535 = vadd.f32 %v1433, %v1523
      %v1536 = vadd.f32 %v1436, %v1523
      %v1537 = vadd.f32 %v1438, %v1523
      %v1538 = vadd.f32 %v1441, %v1523
      %v1539 = vadd.f32 %v1443, %v1523
      %v1541 = vpack.i.b16 %v1216, %v1216
      %v1543 = vperm.slane %v1541, 0
      %v1544 = vunpack.c.l.bf16 %v1078
      %v1545 = vunpack.c.l.bf16 %v1079
      %v1546 = vunpack.c.l.bf16 %v1080
      %v1547 = vunpack.c.l.bf16 %v1081
      %v1548 = vunpack.c.l.bf16 %v1082
      %v1549 = vunpack.c.l.bf16 %v1083
      %v1550 = vunpack.c.l.bf16 %v1084
      %v1551 = vunpack.c.l.bf16 %v1085
      %v1552 = vunpack.c.l.bf16 %v1086
      %v1553 = vunpack.c.l.bf16 %v1087
      %v1554 = vunpack.c.l.bf16 %v1088
      %v1555 = vunpack.c.l.bf16 %v1089
      %v1556 = vunpack.c.l.bf16 %v1090
      %v1557 = vunpack.c.l.bf16 %v1091
      %v1558 = vunpack.c.l.bf16 %v1092
      %v1559 = vunpack.c.l.bf16 %v1093
      %v1560 = vunpack.c.l.bf16 %v1543
      %v1561 = vmul.f32 %v1544, %v1560
      %v1562 = vmul.f32 %v1545, %v1560
      %v1563 = vmul.f32 %v1546, %v1560
      %v1564 = vmul.f32 %v1547, %v1560
      %v1565 = vmul.f32 %v1548, %v1560
      %v1566 = vmul.f32 %v1549, %v1560
      %v1567 = vmul.f32 %v1550, %v1560
      %v1568 = vmul.f32 %v1551, %v1560
      %v1569 = vmul.f32 %v1552, %v1560
      %v1570 = vmul.f32 %v1553, %v1560
      %v1571 = vmul.f32 %v1554, %v1560
      %v1572 = vmul.f32 %v1555, %v1560
      %v1573 = vmul.f32 %v1556, %v1560
      %v1574 = vmul.f32 %v1557, %v1560
      %v1575 = vmul.f32 %v1558, %v1560
      %v1576 = vmul.f32 %v1559, %v1560
      %v1577 = vpack.c.bf16 %v1562, %v1561
      %v1578 = vpack.c.bf16 %v1564, %v1563
      %v1579 = vpack.c.bf16 %v1566, %v1565
      %v1580 = vpack.c.bf16 %v1568, %v1567
      %v1581 = vpack.c.bf16 %v1570, %v1569
      %v1582 = vpack.c.bf16 %v1572, %v1571
      %v1583 = vpack.c.bf16 %v1574, %v1573
      %v1584 = vpack.c.bf16 %v1576, %v1575
      %s1585 = scalar_lea.vmem %s5, 320
      %v1586 = vld [vmem:[%s1585] sm:$0xf]
      %v1587 = vld [vmem:[%s1585 + $0x4] sm:$0xf]
      %v1588 = vld [vmem:[%s1585 + $0x8] sm:$0xf]
      %v1589 = vld [vmem:[%s1585 + $0xc] sm:$0xf]
      %v1590 = vld [vmem:[%s1585 + $0x10] sm:$0xf]
      %v1591 = vld [vmem:[%s1585 + $0x14] sm:$0xf]
      %v1592 = vld [vmem:[%s1585 + $0x18] sm:$0xf]
      %v1593 = vld [vmem:[%s1585 + $0x1c] sm:$0xf]
      %v1594 = vld [vmem:[%s1585 + $0x20] sm:$0xf]
      %v1595 = vld [vmem:[%s1585 + $0x24] sm:$0xf]
      %v1596 = vld [vmem:[%s1585 + $0x28] sm:$0xf]
      %v1597 = vld [vmem:[%s1585 + $0x2c] sm:$0xf]
      %v1598 = vld [vmem:[%s1585 + $0x30] sm:$0xf]
      %v1599 = vld [vmem:[%s1585 + $0x34] sm:$0xf]
      %v1600 = vld [vmem:[%s1585 + $0x38] sm:$0xf]
      %v1601 = vld [vmem:[%s1585 + $0x3c] sm:$0xf]
      %v1618 = vunpack.c.l.b16 %v1586
      %v1619 = vunpack.c.l.b16 %v1587
      %v1620 = vunpack.c.l.b16 %v1588
      %v1621 = vunpack.c.l.b16 %v1589
      %v1622 = vunpack.c.l.b16 %v1590
      %v1623 = vunpack.c.l.b16 %v1591
      %v1624 = vunpack.c.l.b16 %v1592
      %v1625 = vunpack.c.l.b16 %v1593
      %v1626 = vunpack.c.l.b16 %v1594
      %v1627 = vunpack.c.l.b16 %v1595
      %v1628 = vunpack.c.l.b16 %v1596
      %v1629 = vunpack.c.l.b16 %v1597
      %v1630 = vunpack.c.l.b16 %v1598
      %v1631 = vunpack.c.l.b16 %v1599
      %v1632 = vunpack.c.l.b16 %v1600
      %v1633 = vunpack.c.l.b16 %v1601
      %v1634 = vpack.c.b16 %v1619, %v1618
      %v1635 = vpack.c.b16 %v1621, %v1620
      %v1636 = vpack.c.b16 %v1623, %v1622
      %v1637 = vpack.c.b16 %v1625, %v1624
      %v1638 = vpack.c.b16 %v1627, %v1626
      %v1639 = vpack.c.b16 %v1629, %v1628
      %v1640 = vpack.c.b16 %v1631, %v1630
      %v1641 = vpack.c.b16 %v1633, %v1632
      %1650 = vmatpush.bf16.msra.mxu0 %v1641
      %1651 = vmatpush.bf16.msra.mxu0 %v1640
      %1652 = vmatpush.bf16.msra.mxu0 %v1639
      %1653 = vmatpush.bf16.msra.mxu0 %v1638
      %1654 = vmatpush.bf16.msra.mxu0 %v1637
      %1655 = vmatpush.bf16.msra.mxu0 %v1636
      %1656 = vmatpush.bf16.msra.mxu0 %v1635
      %1657 = vmatpush.bf16.msra.mxu0 %v1634
      %1658 = vmatmul.bf16.gmra.mxu0 %v1577
      %v1659 = vpop.f32.mrf.mxu0
      %v1660 = vadd.f32 0.0, %v1659
      %v1661 = vpop.f32.mrf.mxu0
      %v1662 = vadd.f32 0.0, %v1661
      %1663 = vmatmul.bf16.gmra.mxu0 %v1578
      %v1664 = vpop.f32.mrf.mxu0
      %v1665 = vadd.f32 0.0, %v1664
      %v1666 = vpop.f32.mrf.mxu0
      %v1667 = vadd.f32 0.0, %v1666
      %1668 = vmatmul.bf16.gmra.mxu0 %v1579
      %v1669 = vpop.f32.mrf.mxu0
      %v1670 = vadd.f32 0.0, %v1669
      %v1671 = vpop.f32.mrf.mxu0
      %v1672 = vadd.f32 0.0, %v1671
      %1673 = vmatmul.bf16.gmra.mxu0 %v1580
      %v1674 = vpop.f32.mrf.mxu0
      %v1675 = vadd.f32 0.0, %v1674
      %v1676 = vpop.f32.mrf.mxu0
      %v1677 = vadd.f32 0.0, %v1676
      %1678 = vmatmul.bf16.gmra.mxu0 %v1581
      %v1679 = vpop.f32.mrf.mxu0
      %v1680 = vadd.f32 0.0, %v1679
      %v1681 = vpop.f32.mrf.mxu0
      %v1682 = vadd.f32 0.0, %v1681
      %1683 = vmatmul.bf16.gmra.mxu0 %v1582
      %v1684 = vpop.f32.mrf.mxu0
      %v1685 = vadd.f32 0.0, %v1684
      %v1686 = vpop.f32.mrf.mxu0
      %v1687 = vadd.f32 0.0, %v1686
      %1688 = vmatmul.bf16.gmra.mxu0 %v1583
      %v1689 = vpop.f32.mrf.mxu0
      %v1690 = vadd.f32 0.0, %v1689
      %v1691 = vpop.f32.mrf.mxu0
      %v1692 = vadd.f32 0.0, %v1691
      %1693 = vmatmul.bf16.gmra.mxu0 %v1584
      %v1694 = vpop.f32.mrf.mxu0
      %v1695 = vadd.f32 0.0, %v1694
      %v1696 = vpop.f32.mrf.mxu0
      %v1697 = vadd.f32 0.0, %v1696
      %1698 = vdwg.mxu0
      %v1699 = vadd.f32 %v1524, %v1660
      %v1700 = vadd.f32 %v1525, %v1662
      %v1701 = vadd.f32 %v1526, %v1665
      %v1702 = vadd.f32 %v1527, %v1667
      %v1703 = vadd.f32 %v1528, %v1670
      %v1704 = vadd.f32 %v1529, %v1672
      %v1705 = vadd.f32 %v1530, %v1675
      %v1706 = vadd.f32 %v1531, %v1677
      %v1707 = vadd.f32 %v1532, %v1680
      %v1708 = vadd.f32 %v1533, %v1682
      %v1709 = vadd.f32 %v1534, %v1685
      %v1710 = vadd.f32 %v1535, %v1687
      %v1711 = vadd.f32 %v1536, %v1690
      %v1712 = vadd.f32 %v1537, %v1692
      %v1713 = vadd.f32 %v1538, %v1695
      %v1714 = vadd.f32 %v1539, %v1697
      %v1715 = vperm.slane %v421, 2
      %v1716 = vadd.f32 %v1699, %v1715
      %v1717 = vadd.f32 %v1700, %v1715
      %v1718 = vadd.f32 %v1701, %v1715
      %v1719 = vadd.f32 %v1702, %v1715
      %v1720 = vadd.f32 %v1703, %v1715
      %v1721 = vadd.f32 %v1704, %v1715
      %v1722 = vadd.f32 %v1705, %v1715
      %v1723 = vadd.f32 %v1706, %v1715
      %v1724 = vadd.f32 %v1707, %v1715
      %v1725 = vadd.f32 %v1708, %v1715
      %v1726 = vadd.f32 %v1709, %v1715
      %v1727 = vadd.f32 %v1710, %v1715
      %v1728 = vadd.f32 %v1711, %v1715
      %v1729 = vadd.f32 %v1712, %v1715
      %v1730 = vadd.f32 %v1713, %v1715
      %v1731 = vadd.f32 %v1714, %v1715
      %v1732 = vtanh.pop %v1716
      %v1733 = vtanh.pop %v1717
      %v1734 = vtanh.pop %v1718
      %v1735 = vtanh.pop %v1719
      %v1736 = vtanh.pop %v1720
      %v1737 = vtanh.pop %v1721
      %v1738 = vtanh.pop %v1722
      %v1739 = vtanh.pop %v1723
      %v1740 = vtanh.pop %v1724
      %v1741 = vtanh.pop %v1725
      %v1742 = vtanh.pop %v1726
      %v1743 = vtanh.pop %v1727
      %v1744 = vtanh.pop %v1728
      %v1745 = vtanh.pop %v1729
      %v1746 = vtanh.pop %v1730
      %v1747 = vtanh.pop %v1731
      %v1748 = vpack.c.bf16 %v1733, %v1732
      %v1749 = vpack.c.bf16 %v1735, %v1734
      %v1750 = vpack.c.bf16 %v1737, %v1736
      %v1751 = vpack.c.bf16 %v1739, %v1738
      %v1752 = vpack.c.bf16 %v1741, %v1740
      %v1753 = vpack.c.bf16 %v1743, %v1742
      %v1754 = vpack.c.bf16 %v1745, %v1744
      %v1755 = vpack.c.bf16 %v1747, %v1746
      %1756 = vst [vmem:[#allocation1] ss:$4 sm:$0xff] %v422
      %v1757 = vld.sshfl [vmem:[#allocation1] sm:$0xff pattern:$0x73625140]
      %v1758 = vshrl.u32 %v1757, 16
      %v1760 = vrot.slane %v1758, 1
      %1762 = vmatpush.bf16.xpose.msra.mxu0 %v808
      %1763 = vmatpush.bf16.xpose.msra.mxu0 %v807
      %1764 = vmatpush.bf16.xpose.msra.mxu0 %v806
      %1765 = vmatpush.bf16.xpose.msra.mxu0 %v805
      %1766 = vmatpush.bf16.xpose.msra.mxu0 %v804
      %1767 = vmatpush.bf16.xpose.msra.mxu0 %v803
      %1768 = vmatpush.bf16.xpose.msra.mxu0 %v802
      %1769 = vmatpush.bf16.xpose.msra.mxu0 %v801
      %1770 = vmatmul.bf16.gmra.mxu0 %v1760
      %v1771 = vpop.f32.mrf.mxu0
      %v1772 = vadd.f32 0.0, %v1771
      %v1773 = vpop.f32.mrf.mxu0
      %1774 = vdwg.mxu0
      %1775 = vst [vmem:[#allocation1] ss:$4 sm:$0xff] %v422
      %v1776 = vld.sshfl [vmem:[#allocation1] sm:$0xff pattern:$0x73625140]
      %v1778 = vrot.slane %v1776, 1
      %1780 = vmatpush.bf16.xpose.msra.mxu0 %v1755
      %1781 = vmatpush.bf16.xpose.msra.mxu0 %v1754
      %1782 = vmatpush.bf16.xpose.msra.mxu0 %v1753
      %1783 = vmatpush.bf16.xpose.msra.mxu0 %v1752
      %1784 = vmatpush.bf16.xpose.msra.mxu0 %v1751
      %1785 = vmatpush.bf16.xpose.msra.mxu0 %v1750
      %1786 = vmatpush.bf16.xpose.msra.mxu0 %v1749
      %1787 = vmatpush.bf16.xpose.msra.mxu0 %v1748
      %1788 = vmatmul.bf16.gmra.mxu0 %v1778
      %v1789 = vpop.f32.mrf.mxu0
      %v1790 = vadd.f32 %v1772, %v1789
      %v1791 = vpop.f32.mrf.mxu0
      %1792 = vdwg.mxu0
      %v1793 = vsel %vm1174, %v1790, -1e+30
      %v1794 = vsel %vm1176, %v1793, -inf
      %1795 = vmax.xlane.f32.xlu0 %v1794
      %v1796 = vpop.xlane.xlu0 %1795
      %v1797 = vsub.f32 %v1793, %v1796
      %v1798 = vmul.f32 %v1797, 1.442695
      %v1799 = vpow.pop %v1798
      %v1800 = vsel %vm1176, %v1799, 0.0
      %1801 = vadd.xlane.f32.xlu0 %v1800
      %v1802 = vpop.xlane.xlu0 %1801
      %v1803 = vrcp.pop %v1802
      %v1804 = vmul.f32 %v1802, %v1803
      %v1805 = vsub.f32 1.0, %v1804
      %v1806 = vmul.f32 %v1803, %v1805
      %v1807 = vadd.f32 %v1803, %v1806
      %vm1808 = vweird.f32 %v1802
      %vm1809 = vweird.f32 %v1803
      %vm1810 = vmor %vm1808, %vm1809
      %v1811 = vsel %vm1810, %v1803, %v1807
      %v1812 = vand.u32 2147483647, %v1802
      %vm1813 = vcmp.eq.f32.partialorder %v1812, 8.507059e+37
      %v1814 = vand.u32 %v1802, 2147483648
      %v1815 = vor.u32 1.1754944e-38, %v1814
      %v1816 = vsel %vm1813, %v1815, %v1811
      %v1817 = vmul.f32 %v1799, %v1816
      %1818 = vst [vmem:[%s385] sm:$0x1] %v1817
      %p1819 = scmp.lt.s32.totalorder %s21, 1
      %s1820 = scalar_select %p1819, %s21, 1
      %s1821 = scalar_lea.vmem %s8, %s1820
      %p1822 = scmp.lt.s32.totalorder %s21, 1
      %s1823 = scalar_select %p1822, %s21, 1
      %s1824 = scalar_lea.vmem %s9, %s1823
      // Predicated region
      $region53: #{bidaf_forward.5} parent=51 // pred_check
        %p1825 = pneg %p227
      $region54: #{bidaf_forward.5} parent=51 // pred_check_branch
        %1827 = sbr.rel (%p1825) target = $region56
      $region55: #{bidaf_forward.5} parent=51 // pred_region
        _
      $region56: #{bidaf_forward.5} parent=51 // pred_fallthru
        _
      // Predicated region
      $region57: #{bidaf_forward.5} parent=51 // pred_check
        %p1828 = pneg %p253
      $region58: #{bidaf_forward.5} parent=51 // pred_check_branch
        %1830 = sbr.rel (%p1828) target = $region60
      $region59: #{bidaf_forward.5} parent=51 // pred_region
        _
      $region60: #{bidaf_forward.5} parent=51 // pred_fallthru
        _
    $region52: #{bidaf_forward.5} parent=5 // pred_fallthru
      _
    %p1831 = scmp.le.s32.totalorder 2, %s16
    // Predicated region
    $region61: #{bidaf_forward.5} parent=5 // pred_check
      %p1832 = pneg %p1831
    $region62: #{bidaf_forward.5} parent=5 // pred_check_branch
      %1834 = sbr.rel (%p1832) target = $region64
    $region63: #{bidaf_forward.5} parent=5 // pred_region
      %s1835 = ssub.s32 %s16, 2
      // Predicated region
      $region65: #{bidaf_forward.5} parent=63 // pred_check
        %p1836 = pneg %p233
      $region66: #{bidaf_forward.5} parent=63 // pred_check_branch
        %1838 = sbr.rel (%p1836) target = $region68
      $region67: #{bidaf_forward.5} parent=63 // pred_region
        %p1839 = scmp.lt.s32.totalorder %s22, 1
        %s1840 = scalar_select %p1839, %s22, 1
        %s1841 = scalar_lea.vmem %s8, %s1840
      $region68: #{bidaf_forward.5} parent=63 // pred_fallthru
        _
      // Predicated region
      $region69: #{bidaf_forward.5} parent=63 // pred_check
        %p1842 = pneg %p259
      $region70: #{bidaf_forward.5} parent=63 // pred_check_branch
        %1844 = sbr.rel (%p1842) target = $region72
      $region71: #{bidaf_forward.5} parent=63 // pred_region
        %p1845 = scmp.lt.s32.totalorder %s22, 1
        %s1846 = scalar_select %p1845, %s22, 1
        %s1847 = scalar_lea.vmem %s9, %s1846
      $region72: #{bidaf_forward.5} parent=63 // pred_fallthru
        _
    $region64: #{bidaf_forward.5} parent=5 // pred_fallthru
      _
  $region6: #{bidaf_forward.5} parent=0 // loop_footer
    %s20 = sadd.s32 1, %s16
  $region7: #{bidaf_forward.5} parent=0 // loop_footer_branch
    %15 = sbr.rel target = $region3
  $region8: #{bidaf_forward.5} parent=0 // loop_exit
    _

</llo_original>
